<compile_context>
chip_gen: v7x
topology: tpu7x:2x2x1
jax: 0.10.0
libtpu: 0.0.40
codegen_flags: <defaults>
</compile_context>

<pallas_src>
import jax
import jax.numpy as jnp
from jax.experimental import pallas as pl
from jax.experimental.pallas import tpu as pltpu

N_CLASSES = 3


# ----------------------------------------------------------------------------
# Parameter padding helper: split `axis` into n_blocks equal blocks and
# zero-pad each block to `new_block` (keeps the [real | zeros] lane layout
# consistent between the LSTM outputs and the head weights).
# ----------------------------------------------------------------------------
def pad_blocks(x, axis, n_blocks, new_block):
    parts = jnp.split(x, n_blocks, axis=axis)
    old = parts[0].shape[axis]
    cfg = [(0, 0)] * x.ndim
    cfg[axis] = (0, new_block - old)
    return jnp.concatenate([jnp.pad(p, cfg) for p in parts], axis=axis)


# ----------------------------------------------------------------------------
# LSTM recurrence kernel (one direction x one batch tile per grid program).
#   xg_ref : (T, Bt, 4*Hp) f32   precomputed x@Wih + b (time-major, already
#                                time-flipped for the backward direction)
#   m_ref  : (T, Bt, 1)    f32   valid-token mask (same flipping)
#   whh_ref: (Hp, 4*Hp)    bf16  fused recurrent weights, gate order (i, f, g, o)
#   out_ref: (T, Bt, Hp)   f32
# ----------------------------------------------------------------------------
def lstm_rec_kernel(xg_ref, m_ref, whh_ref, out_ref):
    T, Bt, _ = xg_ref.shape
    Hp = whh_ref.shape[0]
    whh = whh_ref[...]                                     # resident (Hp, 4Hp) bf16

    def step(t, carry):
        h, c = carry                                       # (Bt, Hp) f32
        pre = xg_ref[t] + jnp.dot(h.astype(jnp.bfloat16), whh,
                                  preferred_element_type=jnp.float32)   # (Bt, 4Hp)
        i_g = jax.nn.sigmoid(pre[:, 0 * Hp:1 * Hp])
        f_g = jax.nn.sigmoid(pre[:, 1 * Hp:2 * Hp])
        g_g = jnp.tanh(pre[:, 2 * Hp:3 * Hp])
        o_g = jax.nn.sigmoid(pre[:, 3 * Hp:4 * Hp])
        c_new = f_g * c + i_g * g_g
        h_new = o_g * jnp.tanh(c_new)
        m_t = m_ref[t]                                     # (Bt, 1)
        # packed-sequence semantics (zero-padded-at-end sequences only):
        # padded positions emit 0 and do not update the state.
        out_ref[t] = m_t * h_new
        h = m_t * h_new + (1.0 - m_t) * h
        c = m_t * c_new + (1.0 - m_t) * c
        return h, c

    jax.lax.fori_loop(
        0, T, step,
        (jnp.zeros((Bt, Hp), jnp.float32), jnp.zeros((Bt, Hp), jnp.float32)))


def bilstm(text, len_mask, p):
    """text: (B, T, E) f32, len_mask: (B, T) f32 -> (B, T, 2*Hp) f32."""
    B, T, _ = text.shape
    Hp = p["whh"].shape[1]
    G = 4 * Hp

    # Fused-gate input projection for both directions over all B*T tokens.
    # (Plain XLA GEMM -- hoisted out of the recurrence per the perf review.)
    xg = jnp.einsum("bte,deg->dtbg", text.astype(jnp.bfloat16), p["wih"],
                    preferred_element_type=jnp.float32) + p["b_ih"][:, None, None, :]
    m_tm = jnp.transpose(len_mask, (1, 0))[None, :, :, None]        # (1, T, B, 1)
    # Backward direction runs on the time-flipped stream (outputs un-flipped below).
    xg = jnp.stack([xg[0], xg[1, ::-1]], axis=0)                    # (2, T, B, G)
    m = jnp.concatenate([m_tm, m_tm[:, ::-1]], axis=0)              # (2, T, B, 1)

    bt = 8 if (B % 8 == 0 and B > 8) else B
    grid = (2, B // bt)
    out = pl.pallas_call(
        lstm_rec_kernel,
        out_shape=jax.ShapeDtypeStruct((2, T, B, Hp), jnp.float32),
        grid=grid,
        in_specs=[
            pl.BlockSpec((None, T, bt, G), lambda d, i: (d, 0, i, 0)),
            pl.BlockSpec((None, T, bt, 1), lambda d, i: (d, 0, i, 0)),
            pl.BlockSpec((None, Hp, G), lambda d, i: (d, 0, 0)),
        ],
        out_specs=pl.BlockSpec((None, T, bt, Hp), lambda d, i: (d, 0, i, 0)),
        compiler_params=pltpu.CompilerParams(
            dimension_semantics=("parallel", "parallel"),
            vmem_limit_bytes=48 * 1024 * 1024),
    )(xg, m, p["whh"])

    fwd = jnp.transpose(out[0], (1, 0, 2))                          # (B, T, Hp)
    bwd = jnp.transpose(out[1, ::-1], (1, 0, 2))                    # un-flip backward
    return jnp.concatenate([fwd, bwd], axis=-1)                     # (B, T, 2*Hp)


# ----------------------------------------------------------------------------
# ASGCN head kernel: location feature, 2x GraphConvolution, attention, fc2.
# One grid program handles a whole batch tile so the D x D GEMMs get M = Bt*T.
# ----------------------------------------------------------------------------
def asgcn_head_kernel(text_ref, off_ref, msk_ref, adj_ref,
                      w1_ref, b1_ref, w2_ref, b2_ref, wfc_ref, bfc_ref,
                      out_ref):
    Bt, T, D = text_ref.shape
    text3 = text_ref[...]                                           # (Bt, T, D)
    adj = adj_ref[...]                                              # (Bt, T, T)
    adj_b = adj.astype(jnp.bfloat16)                                # 0/1 -> exact in bf16
    inv_denom = pl.reciprocal(jnp.sum(adj, axis=2, keepdims=True) + 1.0,
                              approx=True)                          # (Bt, T, 1)

    # Flatten batch*tokens so the dense GEMMs run with M = Bt*T rows.
    # (T is a multiple of 8 here so the reshape is layout-preserving.)
    text2 = text3.reshape(Bt * T, D)
    off2 = off_ref[...].reshape(Bt * T, 1)
    msk2 = msk_ref[...].reshape(Bt * T, 1)

    def gcn(x2, w_ref, b_ref):
        hidden = jnp.dot(x2.astype(jnp.bfloat16), w_ref[...],
                         preferred_element_type=jnp.float32)        # (Bt*T, D)
        h3 = hidden.reshape(Bt, T, D).astype(jnp.bfloat16)
        agg = jnp.einsum("bij,bjd->bid", adj_b, h3,
                         preferred_element_type=jnp.float32)        # (Bt, T, D)
        agg = agg * inv_denom + b_ref[...]
        return agg.reshape(Bt * T, D)

    x = off2 * text2                                                # location_feature(text, offset)
    x = jnp.maximum(gcn(x, w1_ref, b1_ref), 0.0)                    # relu(gc1(...))
    x = off2 * x                                                    # location_feature(x, offset)
    x = jnp.maximum(gcn(x, w2_ref, b2_ref), 0.0)                    # relu(gc2(...))
    x = (msk2 * x).reshape(Bt, T, D)                                # location_feature(x, mask)

    # attention pooling:
    #   softmax_j( sum_i (x @ text^T)[i, j] ) == softmax_j( <sum_i x[i,:], text[j,:]> )
    # (exact reordering of sums; avoids materializing the (T, T) alpha_mat)
    xsum = jnp.sum(x, axis=1)                                       # (Bt, D)
    logits = jnp.sum(xsum[:, None, :] * text3, axis=2)              # (Bt, T)
    logits = logits - jnp.max(logits, axis=1, keepdims=True)
    e = jnp.exp(logits)
    alpha = e * pl.reciprocal(jnp.sum(e, axis=1, keepdims=True), approx=True)
    pooled = jnp.sum(alpha[:, :, None] * text3, axis=1)             # (Bt, D)

    out = jnp.dot(pooled.astype(jnp.bfloat16), wfc_ref[...],
                  preferred_element_type=jnp.float32) + bfc_ref[...]
    out_ref[...] = out.astype(out_ref.dtype)                        # (Bt, Cp)


def asgcn_head(text_out, off, msk, adj, p):
    B, T, D = text_out.shape
    Cp = p["wfc"].shape[1]
    bt = 8 if (B % 8 == 0 and B > 8) else B
    grid = (B // bt,)
    return pl.pallas_call(
        asgcn_head_kernel,
        out_shape=jax.ShapeDtypeStruct((B, Cp), jnp.float32),
        grid=grid,
        in_specs=[
            pl.BlockSpec((bt, T, D), lambda i: (i, 0, 0)),          # text_out
            pl.BlockSpec((bt, T, 1), lambda i: (i, 0, 0)),          # offset
            pl.BlockSpec((bt, T, 1), lambda i: (i, 0, 0)),          # mask
            pl.BlockSpec((bt, T, T), lambda i: (i, 0, 0)),          # adj
            pl.BlockSpec((D, D), lambda i: (0, 0)),                 # gc1 weight (bf16)
            pl.BlockSpec((1, D), lambda i: (0, 0)),                 # gc1 bias
            pl.BlockSpec((D, D), lambda i: (0, 0)),                 # gc2 weight (bf16)
            pl.BlockSpec((1, D), lambda i: (0, 0)),                 # gc2 bias
            pl.BlockSpec((D, Cp), lambda i: (0, 0)),                # fc2 weight (bf16)
            pl.BlockSpec((1, Cp), lambda i: (0, 0)),                # fc2 bias
        ],
        out_specs=pl.BlockSpec((bt, Cp), lambda i: (i, 0)),         # per-program block
        compiler_params=pltpu.CompilerParams(
            dimension_semantics=("parallel",),
            vmem_limit_bytes=48 * 1024 * 1024),
    )(text_out, off, msk, adj,
      p["w1"], p["b1"], p["w2"], p["b2"], p["wfc"], p["bfc"])


# ----------------------------------------------------------------------------
# Full forward (plain-JAX glue: embedding gather, flips/transposes, slicing)
# ----------------------------------------------------------------------------
def asgcn_forward(params, feature, aspect, offset, adj, mask):
    # `aspect` is unused by the reference forward (only cast to long there).
    feature = feature.astype(jnp.int32)
    adj = adj.astype(jnp.float32)
    mask = mask.astype(jnp.float32)
    offset = offset.astype(jnp.float32)

    len_mask = (feature != 0).astype(jnp.float32)                   # (B, T)
    text = jnp.take(params["embeddings"], feature, axis=0)          # embedding lookup (glue)
    # text_embed_dropout(0.3): identity in eval mode.

    text_out = bilstm(text, len_mask, params)                       # (B, T, 640), pads are 0
    seq_len = text_out.shape[1]                                     # all lens == T in this driver
    adj = adj[:, :seq_len, :seq_len]
    off = offset[:, :seq_len, None]
    msk = mask[:, :seq_len, None]

    logits = asgcn_head(text_out, off, msk, adj, params)            # (B, 128) padded classes
    return logits[:, :N_CLASSES]                                    # (B, 3)


# ----------------------------------------------------------------------------
# Deterministic parameter init (real ASGCN shapes, then zero-padded to lane
# multiples: H 300->320, D 600->640, classes 3->128).
# ----------------------------------------------------------------------------
def init_params(key, vocab, embed_dim=300, hidden=300, n_classes=N_CLASSES,
                hidden_pad=320, class_pad=128):
    Hp = hidden_pad
    ks = jax.random.split(key, 13)
    s = 0.1

    def lstm_dir(kw, kr, kb):
        wih = jax.random.normal(kw, (embed_dim, 4 * hidden), jnp.float32) * s
        whh = jax.random.normal(kr, (hidden, 4 * hidden), jnp.float32) * s
        b = jax.random.normal(kb, (4 * hidden,), jnp.float32) * s
        wih = pad_blocks(wih, 1, 4, Hp)                             # (E, 4Hp)
        whh = pad_blocks(pad_blocks(whh, 1, 4, Hp), 0, 1, Hp)       # (Hp, 4Hp)
        b = pad_blocks(b, 0, 4, Hp)                                 # (4Hp,)
        return wih, whh, b

    wih_f, whh_f, b_f = lstm_dir(ks[1], ks[2], ks[3])
    wih_b, whh_b, b_b = lstm_dir(ks[4], ks[5], ks[6])

    D = 2 * hidden

    def pad_dd(w):   # (600, 600) -> (640, 640) matching the [fwd|pad|bwd|pad] lane layout
        return pad_blocks(pad_blocks(w, 0, 2, Hp), 1, 2, Hp)

    w1 = jax.random.normal(ks[7], (D, D), jnp.float32) * 0.05
    b1 = jax.random.normal(ks[8], (1, D), jnp.float32) * 0.05
    w2 = jax.random.normal(ks[9], (D, D), jnp.float32) * 0.05
    b2 = jax.random.normal(ks[10], (1, D), jnp.float32) * 0.05
    wfc = jax.random.normal(ks[11], (D, n_classes), jnp.float32) * 0.05
    bfc = jax.random.normal(ks[12], (1, n_classes), jnp.float32) * 0.05

    return {
        "embeddings": jax.random.normal(ks[0], (vocab, embed_dim), jnp.float32),
        # fused-gate BiLSTM weights, gate order (i, f, g, o); bf16 for the MXU
        "wih": jnp.stack([wih_f, wih_b]).astype(jnp.bfloat16),      # (2, E, 4Hp)
        "whh": jnp.stack([whh_f, whh_b]).astype(jnp.bfloat16),      # (2, Hp, 4Hp)
        "b_ih": jnp.stack([b_f, b_b]),                              # (2, 4Hp) f32
        # GraphConvolution 1 & 2 and fc2 (padded; pads are zero)
        "w1": pad_dd(w1).astype(jnp.bfloat16),                      # (640, 640)
        "b1": pad_blocks(b1, 1, 2, Hp),                             # (1, 640)
        "w2": pad_dd(w2).astype(jnp.bfloat16),
        "b2": pad_blocks(b2, 1, 2, Hp),
        "wfc": jnp.pad(pad_blocks(wfc, 0, 2, Hp),
                       ((0, 0), (0, class_pad - n_classes))).astype(jnp.bfloat16),  # (640, 128)
        "bfc": jnp.pad(bfc, ((0, 0), (0, class_pad - n_classes))),  # (1, 128)
    }


if __name__ == "__main__":
    B, T, V = 2, 8, 50
    key = jax.random.PRNGKey(0)
    kp, kf, ka, ko, kadj, km = jax.random.split(key, 6)

    params = init_params(kp, vocab=V)

    # token ids in [1, V) so every position is valid (text_len == T, seq_len == T)
    feature = jax.random.randint(kf, (B, T), 1, V, dtype=jnp.int32)
    aspect = jax.random.randint(ka, (B, 3), 1, V, dtype=jnp.int32)   # unused by forward
    offset = jax.random.uniform(ko, (B, T), jnp.float32)
    adj = (jax.random.uniform(kadj, (B, T, T)) > 0.5).astype(jnp.float32)
    mask = (jax.random.uniform(km, (B, T)) > 0.5).astype(jnp.int32)

    out = jax.jit(asgcn_forward)(params, feature, aspect, offset, adj, mask)
    out = jax.block_until_ready(out)
    assert out.shape == (B, N_CLASSES) and out.dtype == jnp.float32
    assert bool(jnp.all(jnp.isfinite(out)))
    print("KERNEL_OK")
</pallas_src>

<mosaic_0001>
module attributes {stable_mosaic.version = 11 : i64} {
  func.func @lstm_rec_kernel(%arg0: i32, %arg1: i32, %arg2: memref<1x8x2x1280xf32, #tpu.memory_space<vmem>>, %arg3: memref<1x8x2x1xf32, #tpu.memory_space<vmem>>, %arg4: memref<1x320x1280xbf16, #tpu.memory_space<vmem>>, %arg5: memref<1x8x2x320xf32, #tpu.memory_space<vmem>>) attributes {dimension_semantics = [#tpu.dimension_semantics<parallel>, #tpu.dimension_semantics<parallel>], iteration_bounds = array<i64: 2, 1>, scalar_prefetch = 0 : i64, scratch_operands = 0 : i64, tpu.core_type = #tpu.core_type<tc>, window_params = [{transform_indices = @transform_0, window_bounds = array<i64: 1, 8, 2, 1280>}, {transform_indices = @transform_1, window_bounds = array<i64: 1, 8, 2, 1>}, {transform_indices = @transform_2, window_bounds = array<i64: 1, 320, 1280>}, {transform_indices = @transform_3, window_bounds = array<i64: 1, 8, 2, 320>}]} {
    %c0 = arith.constant 0 : index
    %c0_0 = arith.constant 0 : index
    %c0_1 = arith.constant 0 : index
    %0 = vector.load %arg4[%c0, %c0_0, %c0_1] : memref<1x320x1280xbf16, #tpu.memory_space<vmem>>, vector<1x320x1280xbf16>
    %1 = vector.shape_cast %0 : vector<1x320x1280xbf16> to vector<320x1280xbf16>
    %cst = arith.constant 0.000000e+00 : f32
    %2 = vector.broadcast %cst : f32 to vector<2x320xf32>
    %cst_2 = arith.constant 0.000000e+00 : f32
    %3 = vector.broadcast %cst_2 : f32 to vector<2x320xf32>
    %c0_i32 = arith.constant 0 : i32
    %c8_i32 = arith.constant 8 : i32
    %4 = arith.addi %c0_i32, %c8_i32 : i32
    %c1_i32 = arith.constant 1 : i32
    %5:2 = scf.for %arg6 = %c0_i32 to %4 step %c1_i32 iter_args(%arg7 = %2, %arg8 = %3) -> (vector<2x320xf32>, vector<2x320xf32>)  : i32 {
      %c0_4 = arith.constant 0 : index
      %6 = arith.index_cast %arg6 : i32 to index
      %c0_5 = arith.constant 0 : index
      %c0_6 = arith.constant 0 : index
      %7 = vector.load %arg2[%c0_4, %6, %c0_5, %c0_6] : memref<1x8x2x1280xf32, #tpu.memory_space<vmem>>, vector<1x1x2x1280xf32>
      %8 = vector.shape_cast %7 : vector<1x1x2x1280xf32> to vector<2x1280xf32>
      %9 = arith.truncf %arg7 : vector<2x320xf32> to vector<2x320xbf16>
      %cst_7 = arith.constant dense<0.000000e+00> : vector<2x1280xf32>
      %10 = tpu.matmul %9, %1, %cst_7 {dimension_numbers = #tpu.dot_dimension_numbers<[1], [0], [0], [1], [0, 0, 1, 1], [], []>} : vector<2x320xbf16>, vector<320x1280xbf16>, vector<2x1280xf32> -> vector<2x1280xf32>
      %11 = arith.addf %8, %10 : vector<2x1280xf32>
      %12 = vector.extract_strided_slice %11 {offsets = [0, 0], sizes = [2, 320], strides = [1, 1]} : vector<2x1280xf32> to vector<2x320xf32>
      %13 = arith.negf %12 : vector<2x320xf32>
      %14 = math.exp %13 : vector<2x320xf32>
      %cst_8 = arith.constant 1.000000e+00 : f32
      %15 = vector.broadcast %cst_8 : f32 to vector<2x320xf32>
      %16 = arith.addf %15, %14 : vector<2x320xf32>
      %17 = arith.divf %15, %16 : vector<2x320xf32>
      %18 = vector.extract_strided_slice %11 {offsets = [0, 320], sizes = [2, 320], strides = [1, 1]} : vector<2x1280xf32> to vector<2x320xf32>
      %19 = arith.negf %18 : vector<2x320xf32>
      %20 = math.exp %19 : vector<2x320xf32>
      %cst_9 = arith.constant 1.000000e+00 : f32
      %21 = vector.broadcast %cst_9 : f32 to vector<2x320xf32>
      %22 = arith.addf %21, %20 : vector<2x320xf32>
      %23 = arith.divf %21, %22 : vector<2x320xf32>
      %24 = vector.extract_strided_slice %11 {offsets = [0, 640], sizes = [2, 320], strides = [1, 1]} : vector<2x1280xf32> to vector<2x320xf32>
      %25 = math.tanh %24 : vector<2x320xf32>
      %26 = vector.extract_strided_slice %11 {offsets = [0, 960], sizes = [2, 320], strides = [1, 1]} : vector<2x1280xf32> to vector<2x320xf32>
      %27 = arith.negf %26 : vector<2x320xf32>
      %28 = math.exp %27 : vector<2x320xf32>
      %cst_10 = arith.constant 1.000000e+00 : f32
      %29 = vector.broadcast %cst_10 : f32 to vector<2x320xf32>
      %30 = arith.addf %29, %28 : vector<2x320xf32>
      %31 = arith.divf %29, %30 : vector<2x320xf32>
      %32 = arith.mulf %23, %arg8 : vector<2x320xf32>
      %33 = arith.mulf %17, %25 : vector<2x320xf32>
      %34 = arith.addf %32, %33 : vector<2x320xf32>
      %35 = math.tanh %34 : vector<2x320xf32>
      %36 = arith.mulf %31, %35 : vector<2x320xf32>
      %c0_11 = arith.constant 0 : index
      %37 = arith.index_cast %arg6 : i32 to index
      %c0_12 = arith.constant 0 : index
      %c0_13 = arith.constant 0 : index
      %38 = vector.load %arg3[%c0_11, %37, %c0_12, %c0_13] : memref<1x8x2x1xf32, #tpu.memory_space<vmem>>, vector<1x1x2x1xf32>
      %39 = vector.shape_cast %38 : vector<1x1x2x1xf32> to vector<2x1xf32>
      %40 = vector.broadcast %39 : vector<2x1xf32> to vector<2x320xf32>
      %41 = arith.mulf %40, %36 : vector<2x320xf32>
      %c0_14 = arith.constant 0 : index
      %42 = arith.index_cast %arg6 : i32 to index
      %c0_15 = arith.constant 0 : index
      %c0_16 = arith.constant 0 : index
      %43 = vector.load %arg5[%c0_14, %42, %c0_15, %c0_16] : memref<1x8x2x320xf32, #tpu.memory_space<vmem>>, vector<1x1x2x320xf32>
      %44 = vector.shape_cast %43 : vector<1x1x2x320xf32> to vector<2x320xf32>
      %45 = vector.shape_cast %41 : vector<2x320xf32> to vector<1x1x2x320xf32>
      tpu.vector_store %arg5[%c0_14, %42, %c0_15, %c0_16], %45 {strides = array<i32>} : memref<1x8x2x320xf32, #tpu.memory_space<vmem>>, vector<1x1x2x320xf32>,
      %46 = vector.broadcast %39 : vector<2x1xf32> to vector<2x320xf32>
      %47 = arith.mulf %46, %36 : vector<2x320xf32>
      %cst_17 = arith.constant 1.000000e+00 : f32
      %48 = vector.broadcast %cst_17 : f32 to vector<2x1xf32>
      %49 = arith.subf %48, %39 : vector<2x1xf32>
      %50 = vector.broadcast %49 : vector<2x1xf32> to vector<2x320xf32>
      %51 = arith.mulf %50, %arg7 : vector<2x320xf32>
      %52 = arith.addf %47, %51 : vector<2x320xf32>
      %53 = vector.broadcast %39 : vector<2x1xf32> to vector<2x320xf32>
      %54 = arith.mulf %53, %34 : vector<2x320xf32>
      %cst_18 = arith.constant 1.000000e+00 : f32
      %55 = vector.broadcast %cst_18 : f32 to vector<2x1xf32>
      %56 = arith.subf %55, %39 : vector<2x1xf32>
      %57 = vector.broadcast %56 : vector<2x1xf32> to vector<2x320xf32>
      %58 = arith.mulf %57, %arg8 : vector<2x320xf32>
      %59 = arith.addf %54, %58 : vector<2x320xf32>
      scf.yield %52, %59 : vector<2x320xf32>, vector<2x320xf32>
    }
    %c8_i32_3 = arith.constant 8 : i32
    return
  }
  func.func @transform_0(%arg0: i32, %arg1: i32) -> (i32, i32, i32, i32) {
    %c0_i32 = arith.constant 0 : i32
    %c0_i32_0 = arith.constant 0 : i32
    %c0_i32_1 = arith.constant 0 : i32
    return %arg0, %c0_i32, %arg1, %c0_i32_0 : i32, i32, i32, i32
  }
  func.func @transform_1(%arg0: i32, %arg1: i32) -> (i32, i32, i32, i32) {
    %c0_i32 = arith.constant 0 : i32
    %c0_i32_0 = arith.constant 0 : i32
    %c0_i32_1 = arith.constant 0 : i32
    return %arg0, %c0_i32, %arg1, %c0_i32_0 : i32, i32, i32, i32
  }
  func.func @transform_2(%arg0: i32, %arg1: i32) -> (i32, i32, i32) {
    %c0_i32 = arith.constant 0 : i32
    %c0_i32_0 = arith.constant 0 : i32
    %c0_i32_1 = arith.constant 0 : i32
    return %arg0, %c0_i32, %c0_i32_0 : i32, i32, i32
  }
  func.func @transform_3(%arg0: i32, %arg1: i32) -> (i32, i32, i32, i32) {
    %c0_i32 = arith.constant 0 : i32
    %c0_i32_0 = arith.constant 0 : i32
    %c0_i32_1 = arith.constant 0 : i32
    return %arg0, %c0_i32, %arg1, %c0_i32_0 : i32, i32, i32, i32
  }
}

module attributes {stable_mosaic.version = 11 : i64} {
  func.func @asgcn_head_kernel(%arg0: i32, %arg1: memref<2x8x640xf32, #tpu.memory_space<vmem>>, %arg2: memref<2x8x1xf32, #tpu.memory_space<vmem>>, %arg3: memref<2x8x1xf32, #tpu.memory_space<vmem>>, %arg4: memref<2x8x8xf32, #tpu.memory_space<vmem>>, %arg5: memref<640x640xbf16, #tpu.memory_space<vmem>>, %arg6: memref<1x640xf32, #tpu.memory_space<vmem>>, %arg7: memref<640x640xbf16, #tpu.memory_space<vmem>>, %arg8: memref<1x640xf32, #tpu.memory_space<vmem>>, %arg9: memref<640x128xbf16, #tpu.memory_space<vmem>>, %arg10: memref<1x128xf32, #tpu.memory_space<vmem>>, %arg11: memref<2x128xf32, #tpu.memory_space<vmem>>) attributes {dimension_semantics = [#tpu.dimension_semantics<parallel>], iteration_bounds = array<i64: 1>, scalar_prefetch = 0 : i64, scratch_operands = 0 : i64, tpu.core_type = #tpu.core_type<tc>, window_params = [{transform_indices = @transform_0, window_bounds = array<i64: 2, 8, 640>}, {transform_indices = @transform_1, window_bounds = array<i64: 2, 8, 1>}, {transform_indices = @transform_2, window_bounds = array<i64: 2, 8, 1>}, {transform_indices = @transform_3, window_bounds = array<i64: 2, 8, 8>}, {pipeline_mode = #tpu.pipeline_mode<synchronous>, transform_indices = @transform_4, window_bounds = array<i64: 640, 640>}, {pipeline_mode = #tpu.pipeline_mode<synchronous>, transform_indices = @transform_5, window_bounds = array<i64: 1, 640>}, {pipeline_mode = #tpu.pipeline_mode<synchronous>, transform_indices = @transform_6, window_bounds = array<i64: 640, 640>}, {pipeline_mode = #tpu.pipeline_mode<synchronous>, transform_indices = @transform_7, window_bounds = array<i64: 1, 640>}, {pipeline_mode = #tpu.pipeline_mode<synchronous>, transform_indices = @transform_8, window_bounds = array<i64: 640, 128>}, {pipeline_mode = #tpu.pipeline_mode<synchronous>, transform_indices = @transform_9, window_bounds = array<i64: 1, 128>}, {transform_indices = @transform_10, window_bounds = array<i64: 2, 128>}]} {
    %c0 = arith.constant 0 : index
    %c0_0 = arith.constant 0 : index
    %c0_1 = arith.constant 0 : index
    %0 = vector.load %arg1[%c0, %c0_0, %c0_1] : memref<2x8x640xf32, #tpu.memory_space<vmem>>, vector<2x8x640xf32>
    %c0_2 = arith.constant 0 : index
    %c0_3 = arith.constant 0 : index
    %c0_4 = arith.constant 0 : index
    %1 = vector.load %arg4[%c0_2, %c0_3, %c0_4] : memref<2x8x8xf32, #tpu.memory_space<vmem>>, vector<2x8x8xf32>
    %2 = arith.truncf %1 : vector<2x8x8xf32> to vector<2x8x8xbf16>
    %cst = arith.constant dense<0.000000e+00> : vector<2x8xf32>
    %3 = vector.multi_reduction <add>, %1, %cst [2] : vector<2x8x8xf32> to vector<2x8xf32>
    %4 = vector.shape_cast %3 : vector<2x8xf32> to vector<2x8x1xf32>
    %cst_5 = arith.constant 1.000000e+00 : f32
    %5 = vector.broadcast %cst_5 : f32 to vector<2x8x1xf32>
    %6 = arith.addf %4, %5 : vector<2x8x1xf32>
    %7 = tpu.reciprocal %6 {approx = true} : vector<2x8x1xf32> -> vector<2x8x1xf32>
    %8 = vector.shape_cast %0 : vector<2x8x640xf32> to vector<16x640xf32>
    %c0_6 = arith.constant 0 : index
    %c0_7 = arith.constant 0 : index
    %c0_8 = arith.constant 0 : index
    %9 = vector.load %arg2[%c0_6, %c0_7, %c0_8] : memref<2x8x1xf32, #tpu.memory_space<vmem>>, vector<2x8x1xf32>
    %10 = vector.shape_cast %9 : vector<2x8x1xf32> to vector<16x1xf32>
    %c0_9 = arith.constant 0 : index
    %c0_10 = arith.constant 0 : index
    %c0_11 = arith.constant 0 : index
    %11 = vector.load %arg3[%c0_9, %c0_10, %c0_11] : memref<2x8x1xf32, #tpu.memory_space<vmem>>, vector<2x8x1xf32>
    %12 = vector.shape_cast %11 : vector<2x8x1xf32> to vector<16x1xf32>
    %13 = vector.broadcast %10 : vector<16x1xf32> to vector<16x640xf32>
    %14 = arith.mulf %13, %8 : vector<16x640xf32>
    %15 = arith.truncf %14 : vector<16x640xf32> to vector<16x640xbf16>
    %c0_12 = arith.constant 0 : index
    %c0_13 = arith.constant 0 : index
    %16 = vector.load %arg5[%c0_12, %c0_13] : memref<640x640xbf16, #tpu.memory_space<vmem>>, vector<640x640xbf16>
    %cst_14 = arith.constant dense<0.000000e+00> : vector<16x640xf32>
    %17 = tpu.matmul %15, %16, %cst_14 {dimension_numbers = #tpu.dot_dimension_numbers<[1], [0], [0], [1], [0, 0, 1, 1], [], []>} : vector<16x640xbf16>, vector<640x640xbf16>, vector<16x640xf32> -> vector<16x640xf32>
    %18 = vector.shape_cast %17 : vector<16x640xf32> to vector<2x8x640xf32>
    %19 = arith.truncf %18 : vector<2x8x640xf32> to vector<2x8x640xbf16>
    "tpu.trace_start"() <{level = 10 : i32, message = "bij,bjd->bid"}> : () -> ()
    %cst_15 = arith.constant dense<0.000000e+00> : vector<2x8x640xf32>
    %20 = tpu.matmul %2, %19, %cst_15 {dimension_numbers = #tpu.dot_dimension_numbers<[2], [1], [1], [2], [0, 0, 0, 1, 1, 2], [0], [0]>} : vector<2x8x8xbf16>, vector<2x8x640xbf16>, vector<2x8x640xf32> -> vector<2x8x640xf32>
    "tpu.trace_stop"() : () -> ()
    %21 = vector.broadcast %7 : vector<2x8x1xf32> to vector<2x8x640xf32>
    %22 = arith.mulf %20, %21 : vector<2x8x640xf32>
    %c0_16 = arith.constant 0 : index
    %c0_17 = arith.constant 0 : index
    %23 = vector.load %arg6[%c0_16, %c0_17] : memref<1x640xf32, #tpu.memory_space<vmem>>, vector<1x640xf32>
    %24 = vector.shape_cast %23 : vector<1x640xf32> to vector<1x1x640xf32>
    %25 = vector.broadcast %24 : vector<1x1x640xf32> to vector<2x8x640xf32>
    %26 = arith.addf %22, %25 : vector<2x8x640xf32>
    %27 = vector.shape_cast %26 : vector<2x8x640xf32> to vector<16x640xf32>
    %cst_18 = arith.constant 0.000000e+00 : f32
    %28 = vector.broadcast %cst_18 : f32 to vector<16x640xf32>
    %29 = arith.maximumf %27, %28 : vector<16x640xf32>
    %30 = vector.broadcast %10 : vector<16x1xf32> to vector<16x640xf32>
    %31 = arith.mulf %30, %29 : vector<16x640xf32>
    %32 = arith.truncf %31 : vector<16x640xf32> to vector<16x640xbf16>
    %c0_19 = arith.constant 0 : index
    %c0_20 = arith.constant 0 : index
    %33 = vector.load %arg7[%c0_19, %c0_20] : memref<640x640xbf16, #tpu.memory_space<vmem>>, vector<640x640xbf16>
    %cst_21 = arith.constant dense<0.000000e+00> : vector<16x640xf32>
    %34 = tpu.matmul %32, %33, %cst_21 {dimension_numbers = #tpu.dot_dimension_numbers<[1], [0], [0], [1], [0, 0, 1, 1], [], []>} : vector<16x640xbf16>, vector<640x640xbf16>, vector<16x640xf32> -> vector<16x640xf32>
    %35 = vector.shape_cast %34 : vector<16x640xf32> to vector<2x8x640xf32>
    %36 = arith.truncf %35 : vector<2x8x640xf32> to vector<2x8x640xbf16>
    "tpu.trace_start"() <{level = 10 : i32, message = "bij,bjd->bid"}> : () -> ()
    %cst_22 = arith.constant dense<0.000000e+00> : vector<2x8x640xf32>
    %37 = tpu.matmul %2, %36, %cst_22 {dimension_numbers = #tpu.dot_dimension_numbers<[2], [1], [1], [2], [0, 0, 0, 1, 1, 2], [0], [0]>} : vector<2x8x8xbf16>, vector<2x8x640xbf16>, vector<2x8x640xf32> -> vector<2x8x640xf32>
    "tpu.trace_stop"() : () -> ()
    %38 = vector.broadcast %7 : vector<2x8x1xf32> to vector<2x8x640xf32>
    %39 = arith.mulf %37, %38 : vector<2x8x640xf32>
    %c0_23 = arith.constant 0 : index
    %c0_24 = arith.constant 0 : index
    %40 = vector.load %arg8[%c0_23, %c0_24] : memref<1x640xf32, #tpu.memory_space<vmem>>, vector<1x640xf32>
    %41 = vector.shape_cast %40 : vector<1x640xf32> to vector<1x1x640xf32>
    %42 = vector.broadcast %41 : vector<1x1x640xf32> to vector<2x8x640xf32>
    %43 = arith.addf %39, %42 : vector<2x8x640xf32>
    %44 = vector.shape_cast %43 : vector<2x8x640xf32> to vector<16x640xf32>
    %cst_25 = arith.constant 0.000000e+00 : f32
    %45 = vector.broadcast %cst_25 : f32 to vector<16x640xf32>
    %46 = arith.maximumf %44, %45 : vector<16x640xf32>
    %47 = vector.broadcast %12 : vector<16x1xf32> to vector<16x640xf32>
    %48 = arith.mulf %47, %46 : vector<16x640xf32>
    %49 = vector.shape_cast %48 : vector<16x640xf32> to vector<2x8x640xf32>
    %cst_26 = arith.constant dense<0.000000e+00> : vector<2x640xf32>
    %50 = vector.multi_reduction <add>, %49, %cst_26 [1] : vector<2x8x640xf32> to vector<2x640xf32>
    %51 = vector.shape_cast %50 : vector<2x640xf32> to vector<2x1x640xf32>
    %52 = vector.broadcast %51 : vector<2x1x640xf32> to vector<2x8x640xf32>
    %53 = arith.mulf %52, %0 : vector<2x8x640xf32>
    %cst_27 = arith.constant dense<0.000000e+00> : vector<2x8xf32>
    %54 = vector.multi_reduction <add>, %53, %cst_27 [2] : vector<2x8x640xf32> to vector<2x8xf32>
    %cst_28 = arith.constant dense<0xFF800000> : vector<2xf32>
    %55 = vector.multi_reduction <maximumf>, %54, %cst_28 [1] : vector<2x8xf32> to vector<2xf32>
    %56 = vector.shape_cast %55 : vector<2xf32> to vector<2x1xf32>
    %57 = vector.broadcast %56 : vector<2x1xf32> to vector<2x8xf32>
    %58 = arith.subf %54, %57 : vector<2x8xf32>
    %59 = math.exp %58 : vector<2x8xf32>
    %cst_29 = arith.constant dense<0.000000e+00> : vector<2xf32>
    %60 = vector.multi_reduction <add>, %59, %cst_29 [1] : vector<2x8xf32> to vector<2xf32>
    %61 = vector.shape_cast %60 : vector<2xf32> to vector<2x1xf32>
    %62 = tpu.reciprocal %61 {approx = true} : vector<2x1xf32> -> vector<2x1xf32>
    %63 = vector.broadcast %62 : vector<2x1xf32> to vector<2x8xf32>
    %64 = arith.mulf %59, %63 : vector<2x8xf32>
    %65 = vector.shape_cast %64 : vector<2x8xf32> to vector<2x8x1xf32>
    %66 = vector.broadcast %65 : vector<2x8x1xf32> to vector<2x8x640xf32>
    %67 = arith.mulf %66, %0 : vector<2x8x640xf32>
    %cst_30 = arith.constant dense<0.000000e+00> : vector<2x640xf32>
    %68 = vector.multi_reduction <add>, %67, %cst_30 [1] : vector<2x8x640xf32> to vector<2x640xf32>
    %69 = arith.truncf %68 : vector<2x640xf32> to vector<2x640xbf16>
    %c0_31 = arith.constant 0 : index
    %c0_32 = arith.constant 0 : index
    %70 = vector.load %arg9[%c0_31, %c0_32] : memref<640x128xbf16, #tpu.memory_space<vmem>>, vector<640x128xbf16>
    %cst_33 = arith.constant dense<0.000000e+00> : vector<2x128xf32>
    %71 = tpu.matmul %69, %70, %cst_33 {dimension_numbers = #tpu.dot_dimension_numbers<[1], [0], [0], [1], [0, 0, 1, 1], [], []>} : vector<2x640xbf16>, vector<640x128xbf16>, vector<2x128xf32> -> vector<2x128xf32>
    %c0_34 = arith.constant 0 : index
    %c0_35 = arith.constant 0 : index
    %72 = vector.load %arg10[%c0_34, %c0_35] : memref<1x128xf32, #tpu.memory_space<vmem>>, vector<1x128xf32>
    %73 = vector.broadcast %72 : vector<1x128xf32> to vector<2x128xf32>
    %74 = arith.addf %71, %73 : vector<2x128xf32>
    %c0_36 = arith.constant 0 : index
    %c0_37 = arith.constant 0 : index
    %75 = vector.load %arg11[%c0_36, %c0_37] : memref<2x128xf32, #tpu.memory_space<vmem>>, vector<2x128xf32>
    tpu.vector_store %arg11[%c0_36, %c0_37], %74 {strides = array<i32>} : memref<2x128xf32, #tpu.memory_space<vmem>>, vector<2x128xf32>,
    return
  }
  func.func @transform_0(%arg0: i32) -> (i32, i32, i32) {
    %c0_i32 = arith.constant 0 : i32
    %c0_i32_0 = arith.constant 0 : i32
    %c0_i32_1 = arith.constant 0 : i32
    return %arg0, %c0_i32, %c0_i32_0 : i32, i32, i32
  }
  func.func @transform_1(%arg0: i32) -> (i32, i32, i32) {
    %c0_i32 = arith.constant 0 : i32
    %c0_i32_0 = arith.constant 0 : i32
    %c0_i32_1 = arith.constant 0 : i32
    return %arg0, %c0_i32, %c0_i32_0 : i32, i32, i32
  }
  func.func @transform_2(%arg0: i32) -> (i32, i32, i32) {
    %c0_i32 = arith.constant 0 : i32
    %c0_i32_0 = arith.constant 0 : i32
    %c0_i32_1 = arith.constant 0 : i32
    return %arg0, %c0_i32, %c0_i32_0 : i32, i32, i32
  }
  func.func @transform_3(%arg0: i32) -> (i32, i32, i32) {
    %c0_i32 = arith.constant 0 : i32
    %c0_i32_0 = arith.constant 0 : i32
    %c0_i32_1 = arith.constant 0 : i32
    return %arg0, %c0_i32, %c0_i32_0 : i32, i32, i32
  }
  func.func @transform_4(%arg0: i32) -> (i32, i32) {
    %c0_i32 = arith.constant 0 : i32
    %c0_i32_0 = arith.constant 0 : i32
    %c0_i32_1 = arith.constant 0 : i32
    return %c0_i32, %c0_i32_0 : i32, i32
  }
  func.func @transform_5(%arg0: i32) -> (i32, i32) {
    %c0_i32 = arith.constant 0 : i32
    %c0_i32_0 = arith.constant 0 : i32
    %c0_i32_1 = arith.constant 0 : i32
    return %c0_i32, %c0_i32_0 : i32, i32
  }
  func.func @transform_6(%arg0: i32) -> (i32, i32) {
    %c0_i32 = arith.constant 0 : i32
    %c0_i32_0 = arith.constant 0 : i32
    %c0_i32_1 = arith.constant 0 : i32
    return %c0_i32, %c0_i32_0 : i32, i32
  }
  func.func @transform_7(%arg0: i32) -> (i32, i32) {
    %c0_i32 = arith.constant 0 : i32
    %c0_i32_0 = arith.constant 0 : i32
    %c0_i32_1 = arith.constant 0 : i32
    return %c0_i32, %c0_i32_0 : i32, i32
  }
  func.func @transform_8(%arg0: i32) -> (i32, i32) {
    %c0_i32 = arith.constant 0 : i32
    %c0_i32_0 = arith.constant 0 : i32
    %c0_i32_1 = arith.constant 0 : i32
    return %c0_i32, %c0_i32_0 : i32, i32
  }
  func.func @transform_9(%arg0: i32) -> (i32, i32) {
    %c0_i32 = arith.constant 0 : i32
    %c0_i32_0 = arith.constant 0 : i32
    %c0_i32_1 = arith.constant 0 : i32
    return %c0_i32, %c0_i32_0 : i32, i32
  }
  func.func @transform_10(%arg0: i32) -> (i32, i32) {
    %c0_i32 = arith.constant 0 : i32
    %c0_i32_0 = arith.constant 0 : i32
    return %arg0, %c0_i32 : i32, i32
  }
}

</mosaic_0001>

<llo_original>
// kernel: reverse
$region0: #{reverse}
  %s0 = inlined_call_operand.vmem [shape: f32[8,2], index: 0, kind: input, shape index: {}]
  %s1 = inlined_call_operand.vmem [shape: f32[8,2], index: 1, kind: output, shape index: {}]
  %v2 = vlaneseq
  %v3 = vsub.s32 7, %v2
  %4 = vset.pattern.permute.xlu0 %v3
  $region1: #{reverse} parent=0
    #allocation0 [shape = 'u8[4096]{0}', space=vmem, size = 0x1000, scoped, tag = 'operand span for operand 0']
    #allocation1 [shape = 'u8[1024]{0}', space=vmem, size = 0x400, scoped, tag = 'packed  for operand 0']
    #allocation2 [shape = 'u8[4096]{0}', space=vmem, size = 0x1000, scoped, tag = 'operand span for operand 1']
    #allocation3 [shape = 'u8[1024]{0}', space=vmem, size = 0x400, scoped, tag = 'packed  for operand 1']
    // Predicated region
    $region2: #{reverse} parent=1 // pred_check
      _
    $region3: #{reverse} parent=1 // pred_check_branch
      %6 = sbr.rel (0) target = $region5
    $region4: #{reverse} parent=1 // pred_region
      // Predicated region
      $region6: #{reverse} parent=4 // pred_check
        _
      $region7: #{reverse} parent=4 // pred_check_branch
        %8 = sbr.rel target = $region9
      $region8: #{reverse} parent=4 // pred_region
        // Predicated region
        $region21: #{reverse} parent=8 // pred_check
          _
        $region22: #{reverse} parent=8 // pred_check_branch
          %23 = sbr.rel (0) target = $region24
        $region23: #{reverse} parent=8 // pred_region
          loop: start=0, step=1, limit=1
          $region25: #{reverse} parent=23 // loop_pre_header
            _
          $region26: #{reverse} parent=23 // loop_header
            %s26 = sphi 0, %s30
            %p27 = scmp.ge.s32.totalorder %s26, 1
            %s31 = sphi %s0, %s0
            %s32 = sphi [#allocation1], [#allocation1]
          $region27: #{reverse} parent=23 // loop_header_branch
            %29 = sbr.rel (%p27) target = $region31
          $region28: #{reverse} parent=23 // loop_body
            %v33 = vld [vmem:[%s31] sm:$0x3]
            %34 = vst [vmem:[%s32] sm:$0x3] %v33
          $region29: #{reverse} parent=23 // loop_footer
            %s30 = sadd.s32 1, %s26
          $region30: #{reverse} parent=23 // loop_footer_branch
            %25 = sbr.rel target = $region26
          $region31: #{reverse} parent=23 // loop_exit
            _
        $region24: #{reverse} parent=8 // pred_fallthru
          _
      $region9: #{reverse} parent=4 // pred_fallthru
        _
      // Predicated region
      $region10: #{reverse} parent=4 // pred_check
        _
      $region11: #{reverse} parent=4 // pred_check_branch
        %10 = sbr.rel (0) target = $region13
      $region12: #{reverse} parent=4 // pred_region
        loop: start=0, step=1, limit=1
        $region14: #{reverse} parent=12 // loop_pre_header
          _
        $region15: #{reverse} parent=12 // loop_header
          %s13 = sphi 0, %s17
          %p14 = scmp.ge.s32.totalorder %s13, 1
          %s18 = sphi %s0, %s0
          %s19 = sphi [#allocation1], [#allocation1]
        $region16: #{reverse} parent=12 // loop_header_branch
          %16 = sbr.rel (%p14) target = $region20
        $region17: #{reverse} parent=12 // loop_body
          %v20 = vld [vmem:[%s18] sm:$0x3]
          %21 = vst [vmem:[%s19] sm:$0x3] %v20
        $region18: #{reverse} parent=12 // loop_footer
          %s17 = sadd.s32 1, %s13
        $region19: #{reverse} parent=12 // loop_footer_branch
          %12 = sbr.rel target = $region15
        $region20: #{reverse} parent=12 // loop_exit
          _
      $region13: #{reverse} parent=4 // pred_fallthru
        _
    $region5: #{reverse} parent=1 // pred_fallthru
      _
    %35 = vnop
    %s37 = sshllo.u32 0, 2
    %v38 = vld [vmem:[#allocation1] sm:%s37]
    %39 = vst [vmem:[#allocation0] sm:%s37] %v38
    %v40 = vld [vmem:[#allocation0] sm:$0xff]
    %41 = vperm.xlu0 %4, %v40
    %v42 = vpop.permute.xlu0 %41
    %43 = vst [vmem:[#allocation2] sm:$0xff] %v42
    %s45 = sshllo.u32 0, 2
    %v47 = vld [vmem:[#allocation2] sm:%s45]
    %s48 = sshllo.u32 0, 2
    %49 = vst [vmem:[#allocation3] sm:%s48] %v47
    // Predicated region
    $region32: #{reverse} parent=1 // pred_check
      _
    $region33: #{reverse} parent=1 // pred_check_branch
      %51 = sbr.rel (0) target = $region35
    $region34: #{reverse} parent=1 // pred_region
      // Predicated region
      $region36: #{reverse} parent=34 // pred_check
        _
      $region37: #{reverse} parent=34 // pred_check_branch
        %53 = sbr.rel target = $region39
      $region38: #{reverse} parent=34 // pred_region
        // Predicated region
        $region51: #{reverse} parent=38 // pred_check
          _
        $region52: #{reverse} parent=38 // pred_check_branch
          %68 = sbr.rel (0) target = $region54
        $region53: #{reverse} parent=38 // pred_region
          loop: start=0, step=1, limit=1
          $region55: #{reverse} parent=53 // loop_pre_header
            _
          $region56: #{reverse} parent=53 // loop_header
            %s71 = sphi 0, %s75
            %p72 = scmp.ge.s32.totalorder %s71, 1
            %s76 = sphi [#allocation3], [#allocation3]
            %s77 = sphi %s1, %s1
          $region57: #{reverse} parent=53 // loop_header_branch
            %74 = sbr.rel (%p72) target = $region61
          $region58: #{reverse} parent=53 // loop_body
            %v78 = vld [vmem:[%s76] sm:$0x3]
            %79 = vst [vmem:[%s77] sm:$0x3] %v78
          $region59: #{reverse} parent=53 // loop_footer
            %s75 = sadd.s32 1, %s71
          $region60: #{reverse} parent=53 // loop_footer_branch
            %70 = sbr.rel target = $region56
          $region61: #{reverse} parent=53 // loop_exit
            _
        $region54: #{reverse} parent=38 // pred_fallthru
          _
      $region39: #{reverse} parent=34 // pred_fallthru
        _
      // Predicated region
      $region40: #{reverse} parent=34 // pred_check
        _
      $region41: #{reverse} parent=34 // pred_check_branch
        %55 = sbr.rel (0) target = $region43
      $region42: #{reverse} parent=34 // pred_region
        loop: start=0, step=1, limit=1
        $region44: #{reverse} parent=42 // loop_pre_header
          _
        $region45: #{reverse} parent=42 // loop_header
          %s58 = sphi 0, %s62
          %p59 = scmp.ge.s32.totalorder %s58, 1
          %s63 = sphi [#allocation3], [#allocation3]
          %s64 = sphi %s1, %s1
        $region46: #{reverse} parent=42 // loop_header_branch
          %61 = sbr.rel (%p59) target = $region50
        $region47: #{reverse} parent=42 // loop_body
          %v65 = vld [vmem:[%s63] sm:$0x3]
          %66 = vst [vmem:[%s64] sm:$0x3] %v65
        $region48: #{reverse} parent=42 // loop_footer
          %s62 = sadd.s32 1, %s58
        $region49: #{reverse} parent=42 // loop_footer_branch
          %57 = sbr.rel target = $region45
        $region50: #{reverse} parent=42 // loop_exit
          _
      $region43: #{reverse} parent=34 // pred_fallthru
        _
    $region35: #{reverse} parent=1 // pred_fallthru
      _
    %80 = vnop

// kernel: asgcn_forward.2
$region0: #{asgcn_forward.2}
  #allocation0 [shape = 'u32[]', space=smem, size = 0x4, offset = 0x4, fixed_abs, tag = 'smem constant byte address 0x4 - core index']
  #allocation1 [shape = 'u32[144,128]{1,0:T(1,128)}', space=vmem, size = 0x12000, scoped, tag = 'internal scratch']
  %s0 = inlined_call_operand.vmem [shape: f32[2,8,2,1280], index: 0, kind: input, shape index: {}]
  %s1 = inlined_call_operand.vmem [shape: f32[2,8,2,1], index: 1, kind: input, shape index: {}]
  %s2 = inlined_call_operand.vmem [shape: bf16[2,320,1280], index: 2, kind: input, shape index: {}]
  %s3 = inlined_call_operand.vmem [shape: f32[2,8,2,320], index: 3, kind: output, shape index: {}]
  %s4 = sld [smem:[#allocation0]]
  $region52: #{asgcn_forward.2} parent=0
    _
  %s6 = ssub.s32 1, %s4
  %s7 = scalar_select 0, %s6, %s4
  loop: start=0, step=1, limit=4
  $region2: #{asgcn_forward.2} parent=0 // loop_pre_header
    _
  $region3: #{asgcn_forward.2} parent=0 // loop_header
    %s9 = sphi 0, %s13
    %p10 = scmp.ge.s32.totalorder %s9, 4
    %s16 = sphi 0, %s28
    %s17 = sphi 0, %s24
    %s18 = sphi 0, %s16
    %s19 = sphi 0, %s17
    %s20 = sphi 0, %s18
    %s21 = sphi 0, %s19
    %s33 = sphi 0, %s35
    %s36 = sphi 0, %s33
    %s37 = sphi 0, %s36
    %s53 = sphi 0, %s37
    %s61 = sphi 0, %s63
    %s64 = sphi 0, %s61
    %s65 = sphi 0, %s64
    %s81 = sphi 0, %s65
    %s87 = sphi 0, %s89
    %s90 = sphi 0, %s87
    %s91 = sphi 0, %s90
    %s107 = sphi 0, %s91
    %s115 = sphi 0, %s117
    %s118 = sphi 0, %s115
    %s119 = sphi 0, %s118
    %s135 = sphi 0, %s119
  $region4: #{asgcn_forward.2} parent=0 // loop_header_branch
    %12 = sbr.rel (%p10) target = $region8
  $region5: #{asgcn_forward.2} parent=0 // loop_body
    %s14 = ssub.s32 %s9, 1
    %s15 = ssub.s32 %s9, 2
    %s22 = sadd.s32 1, %s17
    %p23 = scmp.ge.s32.totalorder %s22, 1
    %s24 = scalar_select %p23, 0, %s22
    %s25 = sadd.s32 1, %s16
    %s26 = scalar_select %p23, %s25, %s16
    %p27 = scmp.ge.s32.totalorder %s26, 2
    %s28 = scalar_select %p27, 0, %s26
    %s29 = ssub.s32 %s16, %s28
    %s30 = ssub.s32 %s17, %s24
    %s31 = sor.u32 %s29, %s30
    %p32 = scmp.eq.s32.totalorder %s31, 0
    %s34 = sadd.s32 %s33, 1
    %s35 = scalar_select %p32, %s33, %s34
    %p38 = pneg %p32
    %p39 = scmp.eq.s32.totalorder %s9, 1
    %p40 = por %p38, %p39
    %p41 = scmp.ne.s32.totalorder %s33, %s36
    %p42 = scmp.eq.s32.totalorder %s9, 0
    %p43 = por %p41, %p42
    %p44 = scmp.ne.s32.totalorder %s33, %s36
    %p45 = scmp.eq.s32.totalorder %s14, 1
    %p46 = por %p44, %p45
    %p47 = scmp.ne.s32.totalorder %s36, %s37
    %p48 = scmp.eq.s32.totalorder %s14, 0
    %p49 = por %p47, %p48
    %p50 = scmp.ne.s32.totalorder %s36, %s37
    %p51 = scmp.eq.s32.totalorder %s15, 1
    %p52 = por %p50, %p51
    %p54 = scmp.ne.s32.totalorder %s37, %s53
    %p55 = scmp.eq.s32.totalorder %s15, 0
    %p56 = por %p54, %p55
    %s57 = ssub.s32 %s16, %s28
    %s58 = ssub.s32 %s17, %s24
    %s59 = sor.u32 %s57, %s58
    %p60 = scmp.eq.s32.totalorder %s59, 0
    %s62 = sadd.s32 %s61, 1
    %s63 = scalar_select %p60, %s61, %s62
    %p66 = pneg %p60
    %p67 = scmp.eq.s32.totalorder %s9, 1
    %p68 = por %p66, %p67
    %p69 = scmp.ne.s32.totalorder %s61, %s64
    %p70 = scmp.eq.s32.totalorder %s9, 0
    %p71 = por %p69, %p70
    %p72 = scmp.ne.s32.totalorder %s61, %s64
    %p73 = scmp.eq.s32.totalorder %s14, 1
    %p74 = por %p72, %p73
    %p75 = scmp.ne.s32.totalorder %s64, %s65
    %p76 = scmp.eq.s32.totalorder %s14, 0
    %p77 = por %p75, %p76
    %p78 = scmp.ne.s32.totalorder %s64, %s65
    %p79 = scmp.eq.s32.totalorder %s15, 1
    %p80 = por %p78, %p79
    %p82 = scmp.ne.s32.totalorder %s65, %s81
    %p83 = scmp.eq.s32.totalorder %s15, 0
    %p84 = por %p82, %p83
    %s85 = ssub.s32 %s16, %s28
    %p86 = scmp.eq.s32.totalorder %s85, 0
    %s88 = sadd.s32 %s87, 1
    %s89 = scalar_select %p86, %s87, %s88
    %p92 = pneg %p86
    %p93 = scmp.eq.s32.totalorder %s9, 1
    %p94 = por %p92, %p93
    %p95 = scmp.ne.s32.totalorder %s87, %s90
    %p96 = scmp.eq.s32.totalorder %s9, 0
    %p97 = por %p95, %p96
    %p98 = scmp.ne.s32.totalorder %s87, %s90
    %p99 = scmp.eq.s32.totalorder %s14, 1
    %p100 = por %p98, %p99
    %p101 = scmp.ne.s32.totalorder %s90, %s91
    %p102 = scmp.eq.s32.totalorder %s14, 0
    %p103 = por %p101, %p102
    %p104 = scmp.ne.s32.totalorder %s90, %s91
    %p105 = scmp.eq.s32.totalorder %s15, 1
    %p106 = por %p104, %p105
    %p108 = scmp.ne.s32.totalorder %s91, %s107
    %p109 = scmp.eq.s32.totalorder %s15, 0
    %p110 = por %p108, %p109
    %s111 = ssub.s32 %s16, %s28
    %s112 = ssub.s32 %s17, %s24
    %s113 = sor.u32 %s111, %s112
    %p114 = scmp.eq.s32.totalorder %s113, 0
    %s116 = sadd.s32 %s115, 1
    %s117 = scalar_select %p114, %s115, %s116
    %p120 = pneg %p114
    %p121 = scmp.eq.s32.totalorder %s9, 1
    %p122 = por %p120, %p121
    %p123 = scmp.ne.s32.totalorder %s115, %s118
    %p124 = scmp.eq.s32.totalorder %s9, 0
    %p125 = por %p123, %p124
    %p126 = scmp.ne.s32.totalorder %s115, %s118
    %p127 = scmp.eq.s32.totalorder %s14, 1
    %p128 = por %p126, %p127
    %p129 = scmp.ne.s32.totalorder %s118, %s119
    %p130 = scmp.eq.s32.totalorder %s14, 0
    %p131 = por %p129, %p130
    %p132 = scmp.ne.s32.totalorder %s118, %s119
    %p133 = scmp.eq.s32.totalorder %s15, 1
    %p134 = por %p132, %p133
    %p136 = scmp.ne.s32.totalorder %s119, %s135
    %p137 = scmp.eq.s32.totalorder %s15, 0
    %p138 = por %p136, %p137
    %p139 = scmp.le.s32.totalorder 1, %s9
    %p140 = scmp.lt.s32.totalorder %s9, 3
    %p141 = pnand %p139, %p140
    %p142 = pneg %p141
    // Predicated region
    $region9: #{asgcn_forward.2} parent=5 // pred_check
      _
    $region10: #{asgcn_forward.2} parent=5 // pred_check_branch
      %144 = sbr.rel (%p141) target = $region12
    $region11: #{asgcn_forward.2} parent=5 // pred_region
      %s145 = ssub.s32 %s9, 1
    $region12: #{asgcn_forward.2} parent=5 // pred_fallthru
      _
    %p146 = scmp.lt.s32.totalorder %s9, 2
    // Predicated region
    $region13: #{asgcn_forward.2} parent=5 // pred_check
      %p147 = pneg %p146
    $region14: #{asgcn_forward.2} parent=5 // pred_check_branch
      %149 = sbr.rel (%p147) target = $region16
    $region15: #{asgcn_forward.2} parent=5 // pred_region
      // Predicated region
      $region17: #{asgcn_forward.2} parent=15 // pred_check
        %p150 = pneg %p43
      $region18: #{asgcn_forward.2} parent=15 // pred_check_branch
        %152 = sbr.rel (%p150) target = $region20
      $region19: #{asgcn_forward.2} parent=15 // pred_region
        %p153 = scmp.lt.s32.totalorder %s16, 1
        %s154 = scalar_select %p153, %s16, 1
        %p155 = scmp.lt.s32.totalorder %s17, 0
        %s156 = scalar_select %p155, %s17, 0
        %s157 = smul.addr %s156, 10
        %s158 = smul.addr %s154, 80
        %s159 = sadd.s32 %s157, %s158
        %s160 = smul.addr %s159, 2
        %s161 = scalar_lea.vmem %s0, %s160
      $region20: #{asgcn_forward.2} parent=15 // pred_fallthru
        _
      // Predicated region
      $region21: #{asgcn_forward.2} parent=15 // pred_check
        %p162 = pneg %p71
      $region22: #{asgcn_forward.2} parent=15 // pred_check_branch
        %164 = sbr.rel (%p162) target = $region24
      $region23: #{asgcn_forward.2} parent=15 // pred_region
        %p165 = scmp.lt.s32.totalorder %s16, 1
        %s166 = scalar_select %p165, %s16, 1
        %p167 = scmp.lt.s32.totalorder %s17, 0
        %s168 = scalar_select %p167, %s17, 0
        %s169 = smul.addr %s166, 8
        %s170 = sadd.s32 %s168, %s169
        %s171 = smul.addr %s170, 2
        %s172 = scalar_lea.vmem %s1, %s171
      $region24: #{asgcn_forward.2} parent=15 // pred_fallthru
        _
      // Predicated region
      $region25: #{asgcn_forward.2} parent=15 // pred_check
        %p173 = pneg %p97
      $region26: #{asgcn_forward.2} parent=15 // pred_check_branch
        %175 = sbr.rel (%p173) target = $region28
      $region27: #{asgcn_forward.2} parent=15 // pred_region
        %p176 = scmp.lt.s32.totalorder %s16, 1
        %s177 = scalar_select %p176, %s16, 1
        %s178 = smul.addr %s177, 400
        %s179 = smul.addr %s178, 4
        %s180 = scalar_lea.vmem %s2, %s179
      $region28: #{asgcn_forward.2} parent=15 // pred_fallthru
        _
    $region16: #{asgcn_forward.2} parent=5 // pred_fallthru
      _
    %p181 = scmp.le.s32.totalorder 1, %s9
    %p182 = scmp.lt.s32.totalorder %s9, 3
    %p183 = pnand %p181, %p182
    %p184 = pneg %p183
    // Predicated region
    $region29: #{asgcn_forward.2} parent=5 // pred_check
      _
    $region30: #{asgcn_forward.2} parent=5 // pred_check_branch
      %186 = sbr.rel (%p183) target = $region32
    $region31: #{asgcn_forward.2} parent=5 // pred_region
      %s187 = ssub.s32 %s9, 1
      %p188 = scmp.lt.s32.totalorder %s18, 1
      %s189 = scalar_select %p188, %s18, 1
      %p190 = scmp.lt.s32.totalorder %s19, 0
      %s191 = scalar_select %p190, %s19, 0
      %s192 = smul.addr %s191, 10
      %s193 = smul.addr %s189, 80
      %s194 = sadd.s32 %s192, %s193
      %s195 = smul.addr %s194, 2
      %s196 = scalar_lea.vmem %s0, %s195
      %p197 = pneg %p49
      %p198 = pneg %p46
      %p199 = scmp.lt.s32.totalorder %s18, 1
      %s200 = scalar_select %p199, %s18, 1
      %p201 = scmp.lt.s32.totalorder %s19, 0
      %s202 = scalar_select %p201, %s19, 0
      %s203 = smul.addr %s200, 8
      %s204 = sadd.s32 %s202, %s203
      %s205 = smul.addr %s204, 2
      %s206 = scalar_lea.vmem %s1, %s205
      %p207 = pneg %p77
      %p208 = pneg %p74
      %p209 = scmp.lt.s32.totalorder %s18, 1
      %s210 = scalar_select %p209, %s18, 1
      %s211 = smul.addr %s210, 400
      %s212 = smul.addr %s211, 4
      %s213 = scalar_lea.vmem %s2, %s212
      %p214 = pneg %p103
      %p215 = pneg %p100
      %p216 = pneg %p131
      %p217 = pneg %p128
      %p218 = scmp.lt.s32.totalorder %s18, 1
      %s219 = scalar_select %p218, %s18, 1
      %p220 = scmp.lt.s32.totalorder %s19, 0
      %s221 = scalar_select %p220, %s19, 0
      %s222 = smul.addr %s221, 3
      %s223 = smul.addr %s219, 24
      %s224 = sadd.s32 %s222, %s223
      %s225 = smul.addr %s224, 2
      %s226 = scalar_lea.vmem %s3, %s225
      %p227 = scmp.lt.s32.totalorder %s18, 1
      %s228 = scalar_select %p227, %s18, 1
      %p229 = scmp.lt.s32.totalorder %s19, 0
      %s230 = scalar_select %p229, %s19, 0
      %s231 = smul.addr %s230, 10
      %s232 = smul.addr %s228, 80
      %s233 = sadd.s32 %s231, %s232
      %s234 = smul.addr %s233, 2
      %s235 = scalar_lea.vmem %s0, %s234
      %p236 = scmp.lt.s32.totalorder %s18, 1
      %s237 = scalar_select %p236, %s18, 1
      %p238 = scmp.lt.s32.totalorder %s19, 0
      %s239 = scalar_select %p238, %s19, 0
      %s240 = smul.addr %s237, 8
      %s241 = sadd.s32 %s239, %s240
      %s242 = smul.addr %s241, 2
      %s243 = scalar_lea.vmem %s1, %s242
      %p244 = scmp.lt.s32.totalorder %s18, 1
      %s245 = scalar_select %p244, %s18, 1
      %s246 = smul.addr %s245, 400
      %s247 = smul.addr %s246, 4
      %s248 = scalar_lea.vmem %s2, %s247
      %p249 = scmp.lt.s32.totalorder %s18, 1
      %s250 = scalar_select %p249, %s18, 1
      %p251 = scmp.lt.s32.totalorder %s19, 0
      %s252 = scalar_select %p251, %s19, 0
      %s253 = smul.addr %s252, 3
      %s254 = smul.addr %s250, 24
      %s255 = sadd.s32 %s253, %s254
      %s256 = smul.addr %s255, 2
      %s257 = scalar_lea.vmem %s3, %s256
      %v259 = vld [vmem:[%s248] sm:$0xff]
      %v260 = vld [vmem:[%s248 + $0x8] sm:$0xff]
      %v261 = vld [vmem:[%s248 + $0x10] sm:$0xff]
      %v262 = vld [vmem:[%s248 + $0x18] sm:$0xff]
      %v263 = vld [vmem:[%s248 + $0x20] sm:$0xff]
      %v264 = vld [vmem:[%s248 + $0x28] sm:$0xff]
      %v265 = vld [vmem:[%s248 + $0x30] sm:$0xff]
      %v266 = vld [vmem:[%s248 + $0x38] sm:$0xff]
      %v267 = vld [vmem:[%s248 + $0x40] sm:$0xff]
      %v268 = vld [vmem:[%s248 + $0x48] sm:$0xff]
      %v269 = vld [vmem:[%s248 + $0x50] sm:$0xff]
      %v270 = vld [vmem:[%s248 + $0x58] sm:$0xff]
      %v271 = vld [vmem:[%s248 + $0x60] sm:$0xff]
      %v272 = vld [vmem:[%s248 + $0x68] sm:$0xff]
      %v273 = vld [vmem:[%s248 + $0x70] sm:$0xff]
      %v274 = vld [vmem:[%s248 + $0x78] sm:$0xff]
      %v275 = vld [vmem:[%s248 + $0x80] sm:$0xff]
      %v276 = vld [vmem:[%s248 + $0x88] sm:$0xff]
      %v277 = vld [vmem:[%s248 + $0x90] sm:$0xff]
      %v278 = vld [vmem:[%s248 + $0x98] sm:$0xff]
      %v279 = vld [vmem:[%s248 + $0xa0] sm:$0xff]
      %v280 = vld [vmem:[%s248 + $0xa8] sm:$0xff]
      %v281 = vld [vmem:[%s248 + $0xb0] sm:$0xff]
      %v282 = vld [vmem:[%s248 + $0xb8] sm:$0xff]
      %v283 = vld [vmem:[%s248 + $0xc0] sm:$0xff]
      %v284 = vld [vmem:[%s248 + $0xc8] sm:$0xff]
      %v285 = vld [vmem:[%s248 + $0xd0] sm:$0xff]
      %v286 = vld [vmem:[%s248 + $0xd8] sm:$0xff]
      %v287 = vld [vmem:[%s248 + $0xe0] sm:$0xff]
      %v288 = vld [vmem:[%s248 + $0xe8] sm:$0xff]
      %v289 = vld [vmem:[%s248 + $0xf0] sm:$0xff]
      %v290 = vld [vmem:[%s248 + $0xf8] sm:$0xff]
      %v291 = vld [vmem:[%s248 + $0x100] sm:$0xff]
      %v292 = vld [vmem:[%s248 + $0x108] sm:$0xff]
      %v293 = vld [vmem:[%s248 + $0x110] sm:$0xff]
      %v294 = vld [vmem:[%s248 + $0x118] sm:$0xff]
      %v295 = vld [vmem:[%s248 + $0x120] sm:$0xff]
      %v296 = vld [vmem:[%s248 + $0x128] sm:$0xff]
      %v297 = vld [vmem:[%s248 + $0x130] sm:$0xff]
      %v298 = vld [vmem:[%s248 + $0x138] sm:$0xff]
      %v299 = vld [vmem:[%s248 + $0x140] sm:$0xff]
      %v300 = vld [vmem:[%s248 + $0x148] sm:$0xff]
      %v301 = vld [vmem:[%s248 + $0x150] sm:$0xff]
      %v302 = vld [vmem:[%s248 + $0x158] sm:$0xff]
      %v303 = vld [vmem:[%s248 + $0x160] sm:$0xff]
      %v304 = vld [vmem:[%s248 + $0x168] sm:$0xff]
      %v305 = vld [vmem:[%s248 + $0x170] sm:$0xff]
      %v306 = vld [vmem:[%s248 + $0x178] sm:$0xff]
      %v307 = vld [vmem:[%s248 + $0x180] sm:$0xff]
      %v308 = vld [vmem:[%s248 + $0x188] sm:$0xff]
      %v309 = vld [vmem:[%s248 + $0x190] sm:$0xff]
      %v310 = vld [vmem:[%s248 + $0x198] sm:$0xff]
      %v311 = vld [vmem:[%s248 + $0x1a0] sm:$0xff]
      %v312 = vld [vmem:[%s248 + $0x1a8] sm:$0xff]
      %v313 = vld [vmem:[%s248 + $0x1b0] sm:$0xff]
      %v314 = vld [vmem:[%s248 + $0x1b8] sm:$0xff]
      %v315 = vld [vmem:[%s248 + $0x1c0] sm:$0xff]
      %v316 = vld [vmem:[%s248 + $0x1c8] sm:$0xff]
      %v317 = vld [vmem:[%s248 + $0x1d0] sm:$0xff]
      %v318 = vld [vmem:[%s248 + $0x1d8] sm:$0xff]
      %v319 = vld [vmem:[%s248 + $0x1e0] sm:$0xff]
      %v320 = vld [vmem:[%s248 + $0x1e8] sm:$0xff]
      %v321 = vld [vmem:[%s248 + $0x1f0] sm:$0xff]
      %v322 = vld [vmem:[%s248 + $0x1f8] sm:$0xff]
      %v323 = vld [vmem:[%s248 + $0x200] sm:$0xff]
      %v324 = vld [vmem:[%s248 + $0x208] sm:$0xff]
      %v325 = vld [vmem:[%s248 + $0x210] sm:$0xff]
      %v326 = vld [vmem:[%s248 + $0x218] sm:$0xff]
      %v327 = vld [vmem:[%s248 + $0x220] sm:$0xff]
      %v328 = vld [vmem:[%s248 + $0x228] sm:$0xff]
      %v329 = vld [vmem:[%s248 + $0x230] sm:$0xff]
      %v330 = vld [vmem:[%s248 + $0x238] sm:$0xff]
      %v331 = vld [vmem:[%s248 + $0x240] sm:$0xff]
      %v332 = vld [vmem:[%s248 + $0x248] sm:$0xff]
      %v333 = vld [vmem:[%s248 + $0x250] sm:$0xff]
      %v334 = vld [vmem:[%s248 + $0x258] sm:$0xff]
      %v335 = vld [vmem:[%s248 + $0x260] sm:$0xff]
      %v336 = vld [vmem:[%s248 + $0x268] sm:$0xff]
      %v337 = vld [vmem:[%s248 + $0x270] sm:$0xff]
      %v338 = vld [vmem:[%s248 + $0x278] sm:$0xff]
      %v339 = vld [vmem:[%s248 + $0x280] sm:$0xff]
      %v340 = vld [vmem:[%s248 + $0x288] sm:$0xff]
      %v341 = vld [vmem:[%s248 + $0x290] sm:$0xff]
      %v342 = vld [vmem:[%s248 + $0x298] sm:$0xff]
      %v343 = vld [vmem:[%s248 + $0x2a0] sm:$0xff]
      %v344 = vld [vmem:[%s248 + $0x2a8] sm:$0xff]
      %v345 = vld [vmem:[%s248 + $0x2b0] sm:$0xff]
      %v346 = vld [vmem:[%s248 + $0x2b8] sm:$0xff]
      %v347 = vld [vmem:[%s248 + $0x2c0] sm:$0xff]
      %v348 = vld [vmem:[%s248 + $0x2c8] sm:$0xff]
      %v349 = vld [vmem:[%s248 + $0x2d0] sm:$0xff]
      %v350 = vld [vmem:[%s248 + $0x2d8] sm:$0xff]
      %v351 = vld [vmem:[%s248 + $0x2e0] sm:$0xff]
      %v352 = vld [vmem:[%s248 + $0x2e8] sm:$0xff]
      %v353 = vld [vmem:[%s248 + $0x2f0] sm:$0xff]
      %v354 = vld [vmem:[%s248 + $0x2f8] sm:$0xff]
      %v355 = vld [vmem:[%s248 + $0x300] sm:$0xff]
      %v356 = vld [vmem:[%s248 + $0x308] sm:$0xff]
      %v357 = vld [vmem:[%s248 + $0x310] sm:$0xff]
      %v358 = vld [vmem:[%s248 + $0x318] sm:$0xff]
      %v359 = vld [vmem:[%s248 + $0x320] sm:$0xff]
      %v360 = vld [vmem:[%s248 + $0x328] sm:$0xff]
      %v361 = vld [vmem:[%s248 + $0x330] sm:$0xff]
      %v362 = vld [vmem:[%s248 + $0x338] sm:$0xff]
      %v363 = vld [vmem:[%s248 + $0x340] sm:$0xff]
      %v364 = vld [vmem:[%s248 + $0x348] sm:$0xff]
      %v365 = vld [vmem:[%s248 + $0x350] sm:$0xff]
      %v366 = vld [vmem:[%s248 + $0x358] sm:$0xff]
      %v367 = vld [vmem:[%s248 + $0x360] sm:$0xff]
      %v368 = vld [vmem:[%s248 + $0x368] sm:$0xff]
      %v369 = vld [vmem:[%s248 + $0x370] sm:$0xff]
      %v370 = vld [vmem:[%s248 + $0x378] sm:$0xff]
      %v371 = vld [vmem:[%s248 + $0x380] sm:$0xff]
      %v372 = vld [vmem:[%s248 + $0x388] sm:$0xff]
      %v373 = vld [vmem:[%s248 + $0x390] sm:$0xff]
      %v374 = vld [vmem:[%s248 + $0x398] sm:$0xff]
      %v375 = vld [vmem:[%s248 + $0x3a0] sm:$0xff]
      %v376 = vld [vmem:[%s248 + $0x3a8] sm:$0xff]
      %v377 = vld [vmem:[%s248 + $0x3b0] sm:$0xff]
      %v378 = vld [vmem:[%s248 + $0x3b8] sm:$0xff]
      %v379 = vld [vmem:[%s248 + $0x3c0] sm:$0xff]
      %v380 = vld [vmem:[%s248 + $0x3c8] sm:$0xff]
      %v381 = vld [vmem:[%s248 + $0x3d0] sm:$0xff]
      %v382 = vld [vmem:[%s248 + $0x3d8] sm:$0xff]
      %v383 = vld [vmem:[%s248 + $0x3e0] sm:$0xff]
      %v384 = vld [vmem:[%s248 + $0x3e8] sm:$0xff]
      %v385 = vld [vmem:[%s248 + $0x3f0] sm:$0xff]
      %v386 = vld [vmem:[%s248 + $0x3f8] sm:$0xff]
      %v387 = vld [vmem:[%s248 + $0x400] sm:$0xff]
      %v388 = vld [vmem:[%s248 + $0x408] sm:$0xff]
      %v389 = vld [vmem:[%s248 + $0x410] sm:$0xff]
      %v390 = vld [vmem:[%s248 + $0x418] sm:$0xff]
      %v391 = vld [vmem:[%s248 + $0x420] sm:$0xff]
      %v392 = vld [vmem:[%s248 + $0x428] sm:$0xff]
      %v393 = vld [vmem:[%s248 + $0x430] sm:$0xff]
      %v394 = vld [vmem:[%s248 + $0x438] sm:$0xff]
      %v395 = vld [vmem:[%s248 + $0x440] sm:$0xff]
      %v396 = vld [vmem:[%s248 + $0x448] sm:$0xff]
      %v397 = vld [vmem:[%s248 + $0x450] sm:$0xff]
      %v398 = vld [vmem:[%s248 + $0x458] sm:$0xff]
      %v399 = vld [vmem:[%s248 + $0x460] sm:$0xff]
      %v400 = vld [vmem:[%s248 + $0x468] sm:$0xff]
      %v401 = vld [vmem:[%s248 + $0x470] sm:$0xff]
      %v402 = vld [vmem:[%s248 + $0x478] sm:$0xff]
      %v403 = vld [vmem:[%s248 + $0x480] sm:$0xff]
      %v404 = vld [vmem:[%s248 + $0x488] sm:$0xff]
      %v405 = vld [vmem:[%s248 + $0x490] sm:$0xff]
      %v406 = vld [vmem:[%s248 + $0x498] sm:$0xff]
      %v407 = vld [vmem:[%s248 + $0x4a0] sm:$0xff]
      %v408 = vld [vmem:[%s248 + $0x4a8] sm:$0xff]
      %v409 = vld [vmem:[%s248 + $0x4b0] sm:$0xff]
      %v410 = vld [vmem:[%s248 + $0x4b8] sm:$0xff]
      %v411 = vld [vmem:[%s248 + $0x4c0] sm:$0xff]
      %v412 = vld [vmem:[%s248 + $0x4c8] sm:$0xff]
      %v413 = vld [vmem:[%s248 + $0x4d0] sm:$0xff]
      %v414 = vld [vmem:[%s248 + $0x4d8] sm:$0xff]
      %v415 = vld [vmem:[%s248 + $0x4e0] sm:$0xff]
      %v416 = vld [vmem:[%s248 + $0x4e8] sm:$0xff]
      %v417 = vld [vmem:[%s248 + $0x4f0] sm:$0xff]
      %v418 = vld [vmem:[%s248 + $0x4f8] sm:$0xff]
      %v419 = vld [vmem:[%s248 + $0x500] sm:$0xff]
      %v420 = vld [vmem:[%s248 + $0x508] sm:$0xff]
      %v421 = vld [vmem:[%s248 + $0x510] sm:$0xff]
      %v422 = vld [vmem:[%s248 + $0x518] sm:$0xff]
      %v423 = vld [vmem:[%s248 + $0x520] sm:$0xff]
      %v424 = vld [vmem:[%s248 + $0x528] sm:$0xff]
      %v425 = vld [vmem:[%s248 + $0x530] sm:$0xff]
      %v426 = vld [vmem:[%s248 + $0x538] sm:$0xff]
      %v427 = vld [vmem:[%s248 + $0x540] sm:$0xff]
      %v428 = vld [vmem:[%s248 + $0x548] sm:$0xff]
      %v429 = vld [vmem:[%s248 + $0x550] sm:$0xff]
      %v430 = vld [vmem:[%s248 + $0x558] sm:$0xff]
      %v431 = vld [vmem:[%s248 + $0x560] sm:$0xff]
      %v432 = vld [vmem:[%s248 + $0x568] sm:$0xff]
      %v433 = vld [vmem:[%s248 + $0x570] sm:$0xff]
      %v434 = vld [vmem:[%s248 + $0x578] sm:$0xff]
      %v435 = vld [vmem:[%s248 + $0x580] sm:$0xff]
      %v436 = vld [vmem:[%s248 + $0x588] sm:$0xff]
      %v437 = vld [vmem:[%s248 + $0x590] sm:$0xff]
      %v438 = vld [vmem:[%s248 + $0x598] sm:$0xff]
      %v439 = vld [vmem:[%s248 + $0x5a0] sm:$0xff]
      %v440 = vld [vmem:[%s248 + $0x5a8] sm:$0xff]
      %v441 = vld [vmem:[%s248 + $0x5b0] sm:$0xff]
      %v442 = vld [vmem:[%s248 + $0x5b8] sm:$0xff]
      %v443 = vld [vmem:[%s248 + $0x5c0] sm:$0xff]
      %v444 = vld [vmem:[%s248 + $0x5c8] sm:$0xff]
      %v445 = vld [vmem:[%s248 + $0x5d0] sm:$0xff]
      %v446 = vld [vmem:[%s248 + $0x5d8] sm:$0xff]
      %v447 = vld [vmem:[%s248 + $0x5e0] sm:$0xff]
      %v448 = vld [vmem:[%s248 + $0x5e8] sm:$0xff]
      %v449 = vld [vmem:[%s248 + $0x5f0] sm:$0xff]
      %v450 = vld [vmem:[%s248 + $0x5f8] sm:$0xff]
      %v451 = vld [vmem:[%s248 + $0x600] sm:$0xff]
      %v452 = vld [vmem:[%s248 + $0x608] sm:$0xff]
      %v453 = vld [vmem:[%s248 + $0x610] sm:$0xff]
      %v454 = vld [vmem:[%s248 + $0x618] sm:$0xff]
      %v455 = vld [vmem:[%s248 + $0x620] sm:$0xff]
      %v456 = vld [vmem:[%s248 + $0x628] sm:$0xff]
      %v457 = vld [vmem:[%s248 + $0x630] sm:$0xff]
      %v458 = vld [vmem:[%s248 + $0x638] sm:$0xff]
      loop: start=0, step=1, limit=8
      $region33: #{asgcn_forward.2} parent=31 // loop_pre_header
        _
      $region34: #{asgcn_forward.2} parent=31 // loop_header
        %s460 = sphi 0, %s464
        %p461 = scmp.ge.s32.totalorder %s460, 8
        %v465 = vphi 0.0, %v2089
        %v466 = vphi 0.0, %v2090
        %v467 = vphi 0.0, %v2091
        %v468 = vphi 0.0, %v2118
        %v469 = vphi 0.0, %v2119
        %v470 = vphi 0.0, %v2120
      $region35: #{asgcn_forward.2} parent=31 // loop_header_branch
        %463 = sbr.rel (%p461) target = $region39
      $region36: #{asgcn_forward.2} parent=31 // loop_body
        %s471 = smul.u32 %s460, 10
        %s472 = smul.addr %s471, 2
        %s473 = scalar_lea.vmem %s235, %s472
        %v474 = vld [vmem:[%s473] sm:$0xff]
        %v475 = vld [vmem:[%s473 + $0x8] sm:$0xff]
        %v476 = vld [vmem:[%s473 + $0x10] sm:$0xf]
        %v477 = vpack.c.bf16 %v465, %v465
        %v478 = vpack.c.bf16 %v466, %v466
        %v479 = vpack.c.bf16 %v467, %v467
        %v680 = vunpack.c.l.b16 %v259
        %v681 = vunpack.c.h.b16 %v259
        %v682 = vunpack.c.l.b16 %v260
        %v683 = vunpack.c.h.b16 %v260
        %v684 = vunpack.c.l.b16 %v261
        %v685 = vunpack.c.h.b16 %v261
        %v686 = vunpack.c.l.b16 %v262
        %v687 = vunpack.c.h.b16 %v262
        %v688 = vunpack.c.l.b16 %v263
        %v689 = vunpack.c.h.b16 %v263
        %v690 = vunpack.c.l.b16 %v264
        %v691 = vunpack.c.h.b16 %v264
        %v692 = vunpack.c.l.b16 %v265
        %v693 = vunpack.c.h.b16 %v265
        %v694 = vunpack.c.l.b16 %v266
        %v695 = vunpack.c.h.b16 %v266
        %v696 = vunpack.c.l.b16 %v267
        %v697 = vunpack.c.h.b16 %v267
        %v698 = vunpack.c.l.b16 %v268
        %v699 = vunpack.c.h.b16 %v268
        %v700 = vunpack.c.l.b16 %v269
        %v701 = vunpack.c.h.b16 %v269
        %v702 = vunpack.c.l.b16 %v270
        %v703 = vunpack.c.h.b16 %v270
        %v704 = vunpack.c.l.b16 %v271
        %v705 = vunpack.c.h.b16 %v271
        %v706 = vunpack.c.l.b16 %v272
        %v707 = vunpack.c.h.b16 %v272
        %v708 = vunpack.c.l.b16 %v273
        %v709 = vunpack.c.h.b16 %v273
        %v710 = vunpack.c.l.b16 %v274
        %v711 = vunpack.c.h.b16 %v274
        %v712 = vunpack.c.l.b16 %v275
        %v713 = vunpack.c.h.b16 %v275
        %v714 = vunpack.c.l.b16 %v276
        %v715 = vunpack.c.h.b16 %v276
        %v716 = vunpack.c.l.b16 %v277
        %v717 = vunpack.c.h.b16 %v277
        %v718 = vunpack.c.l.b16 %v278
        %v719 = vunpack.c.h.b16 %v278
        %v720 = vunpack.c.l.b16 %v279
        %v721 = vunpack.c.h.b16 %v279
        %v722 = vunpack.c.l.b16 %v280
        %v723 = vunpack.c.h.b16 %v280
        %v724 = vunpack.c.l.b16 %v281
        %v725 = vunpack.c.h.b16 %v281
        %v726 = vunpack.c.l.b16 %v282
        %v727 = vunpack.c.h.b16 %v282
        %v728 = vunpack.c.l.b16 %v283
        %v729 = vunpack.c.h.b16 %v283
        %v730 = vunpack.c.l.b16 %v284
        %v731 = vunpack.c.h.b16 %v284
        %v732 = vunpack.c.l.b16 %v285
        %v733 = vunpack.c.h.b16 %v285
        %v734 = vunpack.c.l.b16 %v286
        %v735 = vunpack.c.h.b16 %v286
        %v736 = vunpack.c.l.b16 %v287
        %v737 = vunpack.c.h.b16 %v287
        %v738 = vunpack.c.l.b16 %v288
        %v739 = vunpack.c.h.b16 %v288
        %v740 = vunpack.c.l.b16 %v289
        %v741 = vunpack.c.h.b16 %v289
        %v742 = vunpack.c.l.b16 %v290
        %v743 = vunpack.c.h.b16 %v290
        %v744 = vunpack.c.l.b16 %v291
        %v745 = vunpack.c.h.b16 %v291
        %v746 = vunpack.c.l.b16 %v292
        %v747 = vunpack.c.h.b16 %v292
        %v748 = vunpack.c.l.b16 %v293
        %v749 = vunpack.c.h.b16 %v293
        %v750 = vunpack.c.l.b16 %v294
        %v751 = vunpack.c.h.b16 %v294
        %v752 = vunpack.c.l.b16 %v295
        %v753 = vunpack.c.h.b16 %v295
        %v754 = vunpack.c.l.b16 %v296
        %v755 = vunpack.c.h.b16 %v296
        %v756 = vunpack.c.l.b16 %v297
        %v757 = vunpack.c.h.b16 %v297
        %v758 = vunpack.c.l.b16 %v298
        %v759 = vunpack.c.h.b16 %v298
        %v760 = vunpack.c.l.b16 %v299
        %v761 = vunpack.c.h.b16 %v299
        %v762 = vunpack.c.l.b16 %v300
        %v763 = vunpack.c.h.b16 %v300
        %v764 = vunpack.c.l.b16 %v301
        %v765 = vunpack.c.h.b16 %v301
        %v766 = vunpack.c.l.b16 %v302
        %v767 = vunpack.c.h.b16 %v302
        %v768 = vunpack.c.l.b16 %v303
        %v769 = vunpack.c.h.b16 %v303
        %v770 = vunpack.c.l.b16 %v304
        %v771 = vunpack.c.h.b16 %v304
        %v772 = vunpack.c.l.b16 %v305
        %v773 = vunpack.c.h.b16 %v305
        %v774 = vunpack.c.l.b16 %v306
        %v775 = vunpack.c.h.b16 %v306
        %v776 = vunpack.c.l.b16 %v307
        %v777 = vunpack.c.h.b16 %v307
        %v778 = vunpack.c.l.b16 %v308
        %v779 = vunpack.c.h.b16 %v308
        %v780 = vunpack.c.l.b16 %v309
        %v781 = vunpack.c.h.b16 %v309
        %v782 = vunpack.c.l.b16 %v310
        %v783 = vunpack.c.h.b16 %v310
        %v784 = vunpack.c.l.b16 %v311
        %v785 = vunpack.c.h.b16 %v311
        %v786 = vunpack.c.l.b16 %v312
        %v787 = vunpack.c.h.b16 %v312
        %v788 = vunpack.c.l.b16 %v313
        %v789 = vunpack.c.h.b16 %v313
        %v790 = vunpack.c.l.b16 %v314
        %v791 = vunpack.c.h.b16 %v314
        %v792 = vunpack.c.l.b16 %v315
        %v793 = vunpack.c.h.b16 %v315
        %v794 = vunpack.c.l.b16 %v316
        %v795 = vunpack.c.h.b16 %v316
        %v796 = vunpack.c.l.b16 %v317
        %v797 = vunpack.c.h.b16 %v317
        %v798 = vunpack.c.l.b16 %v318
        %v799 = vunpack.c.h.b16 %v318
        %v800 = vunpack.c.l.b16 %v319
        %v801 = vunpack.c.h.b16 %v319
        %v802 = vunpack.c.l.b16 %v320
        %v803 = vunpack.c.h.b16 %v320
        %v804 = vunpack.c.l.b16 %v321
        %v805 = vunpack.c.h.b16 %v321
        %v806 = vunpack.c.l.b16 %v322
        %v807 = vunpack.c.h.b16 %v322
        %v808 = vunpack.c.l.b16 %v323
        %v809 = vunpack.c.h.b16 %v323
        %v810 = vunpack.c.l.b16 %v324
        %v811 = vunpack.c.h.b16 %v324
        %v812 = vunpack.c.l.b16 %v325
        %v813 = vunpack.c.h.b16 %v325
        %v814 = vunpack.c.l.b16 %v326
        %v815 = vunpack.c.h.b16 %v326
        %v816 = vunpack.c.l.b16 %v327
        %v817 = vunpack.c.h.b16 %v327
        %v818 = vunpack.c.l.b16 %v328
        %v819 = vunpack.c.h.b16 %v328
        %v820 = vunpack.c.l.b16 %v329
        %v821 = vunpack.c.h.b16 %v329
        %v822 = vunpack.c.l.b16 %v330
        %v823 = vunpack.c.h.b16 %v330
        %v824 = vunpack.c.l.b16 %v331
        %v825 = vunpack.c.h.b16 %v331
        %v826 = vunpack.c.l.b16 %v332
        %v827 = vunpack.c.h.b16 %v332
        %v828 = vunpack.c.l.b16 %v333
        %v829 = vunpack.c.h.b16 %v333
        %v830 = vunpack.c.l.b16 %v334
        %v831 = vunpack.c.h.b16 %v334
        %v832 = vunpack.c.l.b16 %v335
        %v833 = vunpack.c.h.b16 %v335
        %v834 = vunpack.c.l.b16 %v336
        %v835 = vunpack.c.h.b16 %v336
        %v836 = vunpack.c.l.b16 %v337
        %v837 = vunpack.c.h.b16 %v337
        %v838 = vunpack.c.l.b16 %v338
        %v839 = vunpack.c.h.b16 %v338
        %v840 = vunpack.c.l.b16 %v339
        %v841 = vunpack.c.h.b16 %v339
        %v842 = vunpack.c.l.b16 %v340
        %v843 = vunpack.c.h.b16 %v340
        %v844 = vunpack.c.l.b16 %v341
        %v845 = vunpack.c.h.b16 %v341
        %v846 = vunpack.c.l.b16 %v342
        %v847 = vunpack.c.h.b16 %v342
        %v848 = vunpack.c.l.b16 %v343
        %v849 = vunpack.c.h.b16 %v343
        %v850 = vunpack.c.l.b16 %v344
        %v851 = vunpack.c.h.b16 %v344
        %v852 = vunpack.c.l.b16 %v345
        %v853 = vunpack.c.h.b16 %v345
        %v854 = vunpack.c.l.b16 %v346
        %v855 = vunpack.c.h.b16 %v346
        %v856 = vunpack.c.l.b16 %v347
        %v857 = vunpack.c.h.b16 %v347
        %v858 = vunpack.c.l.b16 %v348
        %v859 = vunpack.c.h.b16 %v348
        %v860 = vunpack.c.l.b16 %v349
        %v861 = vunpack.c.h.b16 %v349
        %v862 = vunpack.c.l.b16 %v350
        %v863 = vunpack.c.h.b16 %v350
        %v864 = vunpack.c.l.b16 %v351
        %v865 = vunpack.c.h.b16 %v351
        %v866 = vunpack.c.l.b16 %v352
        %v867 = vunpack.c.h.b16 %v352
        %v868 = vunpack.c.l.b16 %v353
        %v869 = vunpack.c.h.b16 %v353
        %v870 = vunpack.c.l.b16 %v354
        %v871 = vunpack.c.h.b16 %v354
        %v872 = vunpack.c.l.b16 %v355
        %v873 = vunpack.c.h.b16 %v355
        %v874 = vunpack.c.l.b16 %v356
        %v875 = vunpack.c.h.b16 %v356
        %v876 = vunpack.c.l.b16 %v357
        %v877 = vunpack.c.h.b16 %v357
        %v878 = vunpack.c.l.b16 %v358
        %v879 = vunpack.c.h.b16 %v358
        %v880 = vunpack.c.l.b16 %v359
        %v881 = vunpack.c.h.b16 %v359
        %v882 = vunpack.c.l.b16 %v360
        %v883 = vunpack.c.h.b16 %v360
        %v884 = vunpack.c.l.b16 %v361
        %v885 = vunpack.c.h.b16 %v361
        %v886 = vunpack.c.l.b16 %v362
        %v887 = vunpack.c.h.b16 %v362
        %v888 = vunpack.c.l.b16 %v363
        %v889 = vunpack.c.h.b16 %v363
        %v890 = vunpack.c.l.b16 %v364
        %v891 = vunpack.c.h.b16 %v364
        %v892 = vunpack.c.l.b16 %v365
        %v893 = vunpack.c.h.b16 %v365
        %v894 = vunpack.c.l.b16 %v366
        %v895 = vunpack.c.h.b16 %v366
        %v896 = vunpack.c.l.b16 %v367
        %v897 = vunpack.c.h.b16 %v367
        %v898 = vunpack.c.l.b16 %v368
        %v899 = vunpack.c.h.b16 %v368
        %v900 = vunpack.c.l.b16 %v369
        %v901 = vunpack.c.h.b16 %v369
        %v902 = vunpack.c.l.b16 %v370
        %v903 = vunpack.c.h.b16 %v370
        %v904 = vunpack.c.l.b16 %v371
        %v905 = vunpack.c.h.b16 %v371
        %v906 = vunpack.c.l.b16 %v372
        %v907 = vunpack.c.h.b16 %v372
        %v908 = vunpack.c.l.b16 %v373
        %v909 = vunpack.c.h.b16 %v373
        %v910 = vunpack.c.l.b16 %v374
        %v911 = vunpack.c.h.b16 %v374
        %v912 = vunpack.c.l.b16 %v375
        %v913 = vunpack.c.h.b16 %v375
        %v914 = vunpack.c.l.b16 %v376
        %v915 = vunpack.c.h.b16 %v376
        %v916 = vunpack.c.l.b16 %v377
        %v917 = vunpack.c.h.b16 %v377
        %v918 = vunpack.c.l.b16 %v378
        %v919 = vunpack.c.h.b16 %v378
        %v920 = vunpack.c.l.b16 %v379
        %v921 = vunpack.c.h.b16 %v379
        %v922 = vunpack.c.l.b16 %v380
        %v923 = vunpack.c.h.b16 %v380
        %v924 = vunpack.c.l.b16 %v381
        %v925 = vunpack.c.h.b16 %v381
        %v926 = vunpack.c.l.b16 %v382
        %v927 = vunpack.c.h.b16 %v382
        %v928 = vunpack.c.l.b16 %v383
        %v929 = vunpack.c.h.b16 %v383
        %v930 = vunpack.c.l.b16 %v384
        %v931 = vunpack.c.h.b16 %v384
        %v932 = vunpack.c.l.b16 %v385
        %v933 = vunpack.c.h.b16 %v385
        %v934 = vunpack.c.l.b16 %v386
        %v935 = vunpack.c.h.b16 %v386
        %v936 = vunpack.c.l.b16 %v387
        %v937 = vunpack.c.h.b16 %v387
        %v938 = vunpack.c.l.b16 %v388
        %v939 = vunpack.c.h.b16 %v388
        %v940 = vunpack.c.l.b16 %v389
        %v941 = vunpack.c.h.b16 %v389
        %v942 = vunpack.c.l.b16 %v390
        %v943 = vunpack.c.h.b16 %v390
        %v944 = vunpack.c.l.b16 %v391
        %v945 = vunpack.c.h.b16 %v391
        %v946 = vunpack.c.l.b16 %v392
        %v947 = vunpack.c.h.b16 %v392
        %v948 = vunpack.c.l.b16 %v393
        %v949 = vunpack.c.h.b16 %v393
        %v950 = vunpack.c.l.b16 %v394
        %v951 = vunpack.c.h.b16 %v394
        %v952 = vunpack.c.l.b16 %v395
        %v953 = vunpack.c.h.b16 %v395
        %v954 = vunpack.c.l.b16 %v396
        %v955 = vunpack.c.h.b16 %v396
        %v956 = vunpack.c.l.b16 %v397
        %v957 = vunpack.c.h.b16 %v397
        %v958 = vunpack.c.l.b16 %v398
        %v959 = vunpack.c.h.b16 %v398
        %v960 = vunpack.c.l.b16 %v399
        %v961 = vunpack.c.h.b16 %v399
        %v962 = vunpack.c.l.b16 %v400
        %v963 = vunpack.c.h.b16 %v400
        %v964 = vunpack.c.l.b16 %v401
        %v965 = vunpack.c.h.b16 %v401
        %v966 = vunpack.c.l.b16 %v402
        %v967 = vunpack.c.h.b16 %v402
        %v968 = vunpack.c.l.b16 %v403
        %v969 = vunpack.c.h.b16 %v403
        %v970 = vunpack.c.l.b16 %v404
        %v971 = vunpack.c.h.b16 %v404
        %v972 = vunpack.c.l.b16 %v405
        %v973 = vunpack.c.h.b16 %v405
        %v974 = vunpack.c.l.b16 %v406
        %v975 = vunpack.c.h.b16 %v406
        %v976 = vunpack.c.l.b16 %v407
        %v977 = vunpack.c.h.b16 %v407
        %v978 = vunpack.c.l.b16 %v408
        %v979 = vunpack.c.h.b16 %v408
        %v980 = vunpack.c.l.b16 %v409
        %v981 = vunpack.c.h.b16 %v409
        %v982 = vunpack.c.l.b16 %v410
        %v983 = vunpack.c.h.b16 %v410
        %v984 = vunpack.c.l.b16 %v411
        %v985 = vunpack.c.h.b16 %v411
        %v986 = vunpack.c.l.b16 %v412
        %v987 = vunpack.c.h.b16 %v412
        %v988 = vunpack.c.l.b16 %v413
        %v989 = vunpack.c.h.b16 %v413
        %v990 = vunpack.c.l.b16 %v414
        %v991 = vunpack.c.h.b16 %v414
        %v992 = vunpack.c.l.b16 %v415
        %v993 = vunpack.c.h.b16 %v415
        %v994 = vunpack.c.l.b16 %v416
        %v995 = vunpack.c.h.b16 %v416
        %v996 = vunpack.c.l.b16 %v417
        %v997 = vunpack.c.h.b16 %v417
        %v998 = vunpack.c.l.b16 %v418
        %v999 = vunpack.c.h.b16 %v418
        %v1000 = vunpack.c.l.b16 %v419
        %v1001 = vunpack.c.h.b16 %v419
        %v1002 = vunpack.c.l.b16 %v420
        %v1003 = vunpack.c.h.b16 %v420
        %v1004 = vunpack.c.l.b16 %v421
        %v1005 = vunpack.c.h.b16 %v421
        %v1006 = vunpack.c.l.b16 %v422
        %v1007 = vunpack.c.h.b16 %v422
        %v1008 = vunpack.c.l.b16 %v423
        %v1009 = vunpack.c.h.b16 %v423
        %v1010 = vunpack.c.l.b16 %v424
        %v1011 = vunpack.c.h.b16 %v424
        %v1012 = vunpack.c.l.b16 %v425
        %v1013 = vunpack.c.h.b16 %v425
        %v1014 = vunpack.c.l.b16 %v426
        %v1015 = vunpack.c.h.b16 %v426
        %v1016 = vunpack.c.l.b16 %v427
        %v1017 = vunpack.c.h.b16 %v427
        %v1018 = vunpack.c.l.b16 %v428
        %v1019 = vunpack.c.h.b16 %v428
        %v1020 = vunpack.c.l.b16 %v429
        %v1021 = vunpack.c.h.b16 %v429
        %v1022 = vunpack.c.l.b16 %v430
        %v1023 = vunpack.c.h.b16 %v430
        %v1024 = vunpack.c.l.b16 %v431
        %v1025 = vunpack.c.h.b16 %v431
        %v1026 = vunpack.c.l.b16 %v432
        %v1027 = vunpack.c.h.b16 %v432
        %v1028 = vunpack.c.l.b16 %v433
        %v1029 = vunpack.c.h.b16 %v433
        %v1030 = vunpack.c.l.b16 %v434
        %v1031 = vunpack.c.h.b16 %v434
        %v1032 = vunpack.c.l.b16 %v435
        %v1033 = vunpack.c.h.b16 %v435
        %v1034 = vunpack.c.l.b16 %v436
        %v1035 = vunpack.c.h.b16 %v436
        %v1036 = vunpack.c.l.b16 %v437
        %v1037 = vunpack.c.h.b16 %v437
        %v1038 = vunpack.c.l.b16 %v438
        %v1039 = vunpack.c.h.b16 %v438
        %v1040 = vunpack.c.l.b16 %v439
        %v1041 = vunpack.c.h.b16 %v439
        %v1042 = vunpack.c.l.b16 %v440
        %v1043 = vunpack.c.h.b16 %v440
        %v1044 = vunpack.c.l.b16 %v441
        %v1045 = vunpack.c.h.b16 %v441
        %v1046 = vunpack.c.l.b16 %v442
        %v1047 = vunpack.c.h.b16 %v442
        %v1048 = vunpack.c.l.b16 %v443
        %v1049 = vunpack.c.h.b16 %v443
        %v1050 = vunpack.c.l.b16 %v444
        %v1051 = vunpack.c.h.b16 %v444
        %v1052 = vunpack.c.l.b16 %v445
        %v1053 = vunpack.c.h.b16 %v445
        %v1054 = vunpack.c.l.b16 %v446
        %v1055 = vunpack.c.h.b16 %v446
        %v1056 = vunpack.c.l.b16 %v447
        %v1057 = vunpack.c.h.b16 %v447
        %v1058 = vunpack.c.l.b16 %v448
        %v1059 = vunpack.c.h.b16 %v448
        %v1060 = vunpack.c.l.b16 %v449
        %v1061 = vunpack.c.h.b16 %v449
        %v1062 = vunpack.c.l.b16 %v450
        %v1063 = vunpack.c.h.b16 %v450
        %v1064 = vunpack.c.l.b16 %v451
        %v1065 = vunpack.c.h.b16 %v451
        %v1066 = vunpack.c.l.b16 %v452
        %v1067 = vunpack.c.h.b16 %v452
        %v1068 = vunpack.c.l.b16 %v453
        %v1069 = vunpack.c.h.b16 %v453
        %v1070 = vunpack.c.l.b16 %v454
        %v1071 = vunpack.c.h.b16 %v454
        %v1072 = vunpack.c.l.b16 %v455
        %v1073 = vunpack.c.h.b16 %v455
        %v1074 = vunpack.c.l.b16 %v456
        %v1075 = vunpack.c.h.b16 %v456
        %v1076 = vunpack.c.l.b16 %v457
        %v1077 = vunpack.c.h.b16 %v457
        %v1078 = vunpack.c.l.b16 %v458
        %v1079 = vunpack.c.h.b16 %v458
        %v1080 = vpack.c.b16 %v690, %v680
        %v1081 = vpack.c.b16 %v691, %v681
        %v1082 = vpack.c.b16 %v692, %v682
        %v1083 = vpack.c.b16 %v693, %v683
        %v1084 = vpack.c.b16 %v694, %v684
        %v1085 = vpack.c.b16 %v695, %v685
        %v1086 = vpack.c.b16 %v696, %v686
        %v1087 = vpack.c.b16 %v697, %v687
        %v1088 = vpack.c.b16 %v698, %v688
        %v1089 = vpack.c.b16 %v699, %v689
        %v1090 = vpack.c.b16 %v710, %v700
        %v1091 = vpack.c.b16 %v711, %v701
        %v1092 = vpack.c.b16 %v712, %v702
        %v1093 = vpack.c.b16 %v713, %v703
        %v1094 = vpack.c.b16 %v714, %v704
        %v1095 = vpack.c.b16 %v715, %v705
        %v1096 = vpack.c.b16 %v716, %v706
        %v1097 = vpack.c.b16 %v717, %v707
        %v1098 = vpack.c.b16 %v718, %v708
        %v1099 = vpack.c.b16 %v719, %v709
        %v1100 = vpack.c.b16 %v730, %v720
        %v1101 = vpack.c.b16 %v731, %v721
        %v1102 = vpack.c.b16 %v732, %v722
        %v1103 = vpack.c.b16 %v733, %v723
        %v1104 = vpack.c.b16 %v734, %v724
        %v1105 = vpack.c.b16 %v735, %v725
        %v1106 = vpack.c.b16 %v736, %v726
        %v1107 = vpack.c.b16 %v737, %v727
        %v1108 = vpack.c.b16 %v738, %v728
        %v1109 = vpack.c.b16 %v739, %v729
        %v1110 = vpack.c.b16 %v750, %v740
        %v1111 = vpack.c.b16 %v751, %v741
        %v1112 = vpack.c.b16 %v752, %v742
        %v1113 = vpack.c.b16 %v753, %v743
        %v1114 = vpack.c.b16 %v754, %v744
        %v1115 = vpack.c.b16 %v755, %v745
        %v1116 = vpack.c.b16 %v756, %v746
        %v1117 = vpack.c.b16 %v757, %v747
        %v1118 = vpack.c.b16 %v758, %v748
        %v1119 = vpack.c.b16 %v759, %v749
        %v1120 = vpack.c.b16 %v770, %v760
        %v1121 = vpack.c.b16 %v771, %v761
        %v1122 = vpack.c.b16 %v772, %v762
        %v1123 = vpack.c.b16 %v773, %v763
        %v1124 = vpack.c.b16 %v774, %v764
        %v1125 = vpack.c.b16 %v775, %v765
        %v1126 = vpack.c.b16 %v776, %v766
        %v1127 = vpack.c.b16 %v777, %v767
        %v1128 = vpack.c.b16 %v778, %v768
        %v1129 = vpack.c.b16 %v779, %v769
        %v1130 = vpack.c.b16 %v790, %v780
        %v1131 = vpack.c.b16 %v791, %v781
        %v1132 = vpack.c.b16 %v792, %v782
        %v1133 = vpack.c.b16 %v793, %v783
        %v1134 = vpack.c.b16 %v794, %v784
        %v1135 = vpack.c.b16 %v795, %v785
        %v1136 = vpack.c.b16 %v796, %v786
        %v1137 = vpack.c.b16 %v797, %v787
        %v1138 = vpack.c.b16 %v798, %v788
        %v1139 = vpack.c.b16 %v799, %v789
        %v1140 = vpack.c.b16 %v810, %v800
        %v1141 = vpack.c.b16 %v811, %v801
        %v1142 = vpack.c.b16 %v812, %v802
        %v1143 = vpack.c.b16 %v813, %v803
        %v1144 = vpack.c.b16 %v814, %v804
        %v1145 = vpack.c.b16 %v815, %v805
        %v1146 = vpack.c.b16 %v816, %v806
        %v1147 = vpack.c.b16 %v817, %v807
        %v1148 = vpack.c.b16 %v818, %v808
        %v1149 = vpack.c.b16 %v819, %v809
        %v1150 = vpack.c.b16 %v830, %v820
        %v1151 = vpack.c.b16 %v831, %v821
        %v1152 = vpack.c.b16 %v832, %v822
        %v1153 = vpack.c.b16 %v833, %v823
        %v1154 = vpack.c.b16 %v834, %v824
        %v1155 = vpack.c.b16 %v835, %v825
        %v1156 = vpack.c.b16 %v836, %v826
        %v1157 = vpack.c.b16 %v837, %v827
        %v1158 = vpack.c.b16 %v838, %v828
        %v1159 = vpack.c.b16 %v839, %v829
        %v1160 = vpack.c.b16 %v850, %v840
        %v1161 = vpack.c.b16 %v851, %v841
        %v1162 = vpack.c.b16 %v852, %v842
        %v1163 = vpack.c.b16 %v853, %v843
        %v1164 = vpack.c.b16 %v854, %v844
        %v1165 = vpack.c.b16 %v855, %v845
        %v1166 = vpack.c.b16 %v856, %v846
        %v1167 = vpack.c.b16 %v857, %v847
        %v1168 = vpack.c.b16 %v858, %v848
        %v1169 = vpack.c.b16 %v859, %v849
        %v1170 = vpack.c.b16 %v870, %v860
        %v1171 = vpack.c.b16 %v871, %v861
        %v1172 = vpack.c.b16 %v872, %v862
        %v1173 = vpack.c.b16 %v873, %v863
        %v1174 = vpack.c.b16 %v874, %v864
        %v1175 = vpack.c.b16 %v875, %v865
        %v1176 = vpack.c.b16 %v876, %v866
        %v1177 = vpack.c.b16 %v877, %v867
        %v1178 = vpack.c.b16 %v878, %v868
        %v1179 = vpack.c.b16 %v879, %v869
        %v1180 = vpack.c.b16 %v890, %v880
        %v1181 = vpack.c.b16 %v891, %v881
        %v1182 = vpack.c.b16 %v892, %v882
        %v1183 = vpack.c.b16 %v893, %v883
        %v1184 = vpack.c.b16 %v894, %v884
        %v1185 = vpack.c.b16 %v895, %v885
        %v1186 = vpack.c.b16 %v896, %v886
        %v1187 = vpack.c.b16 %v897, %v887
        %v1188 = vpack.c.b16 %v898, %v888
        %v1189 = vpack.c.b16 %v899, %v889
        %v1190 = vpack.c.b16 %v910, %v900
        %v1191 = vpack.c.b16 %v911, %v901
        %v1192 = vpack.c.b16 %v912, %v902
        %v1193 = vpack.c.b16 %v913, %v903
        %v1194 = vpack.c.b16 %v914, %v904
        %v1195 = vpack.c.b16 %v915, %v905
        %v1196 = vpack.c.b16 %v916, %v906
        %v1197 = vpack.c.b16 %v917, %v907
        %v1198 = vpack.c.b16 %v918, %v908
        %v1199 = vpack.c.b16 %v919, %v909
        %v1200 = vpack.c.b16 %v930, %v920
        %v1201 = vpack.c.b16 %v931, %v921
        %v1202 = vpack.c.b16 %v932, %v922
        %v1203 = vpack.c.b16 %v933, %v923
        %v1204 = vpack.c.b16 %v934, %v924
        %v1205 = vpack.c.b16 %v935, %v925
        %v1206 = vpack.c.b16 %v936, %v926
        %v1207 = vpack.c.b16 %v937, %v927
        %v1208 = vpack.c.b16 %v938, %v928
        %v1209 = vpack.c.b16 %v939, %v929
        %v1210 = vpack.c.b16 %v950, %v940
        %v1211 = vpack.c.b16 %v951, %v941
        %v1212 = vpack.c.b16 %v952, %v942
        %v1213 = vpack.c.b16 %v953, %v943
        %v1214 = vpack.c.b16 %v954, %v944
        %v1215 = vpack.c.b16 %v955, %v945
        %v1216 = vpack.c.b16 %v956, %v946
        %v1217 = vpack.c.b16 %v957, %v947
        %v1218 = vpack.c.b16 %v958, %v948
        %v1219 = vpack.c.b16 %v959, %v949
        %v1220 = vpack.c.b16 %v970, %v960
        %v1221 = vpack.c.b16 %v971, %v961
        %v1222 = vpack.c.b16 %v972, %v962
        %v1223 = vpack.c.b16 %v973, %v963
        %v1224 = vpack.c.b16 %v974, %v964
        %v1225 = vpack.c.b16 %v975, %v965
        %v1226 = vpack.c.b16 %v976, %v966
        %v1227 = vpack.c.b16 %v977, %v967
        %v1228 = vpack.c.b16 %v978, %v968
        %v1229 = vpack.c.b16 %v979, %v969
        %v1230 = vpack.c.b16 %v990, %v980
        %v1231 = vpack.c.b16 %v991, %v981
        %v1232 = vpack.c.b16 %v992, %v982
        %v1233 = vpack.c.b16 %v993, %v983
        %v1234 = vpack.c.b16 %v994, %v984
        %v1235 = vpack.c.b16 %v995, %v985
        %v1236 = vpack.c.b16 %v996, %v986
        %v1237 = vpack.c.b16 %v997, %v987
        %v1238 = vpack.c.b16 %v998, %v988
        %v1239 = vpack.c.b16 %v999, %v989
        %v1240 = vpack.c.b16 %v1010, %v1000
        %v1241 = vpack.c.b16 %v1011, %v1001
        %v1242 = vpack.c.b16 %v1012, %v1002
        %v1243 = vpack.c.b16 %v1013, %v1003
        %v1244 = vpack.c.b16 %v1014, %v1004
        %v1245 = vpack.c.b16 %v1015, %v1005
        %v1246 = vpack.c.b16 %v1016, %v1006
        %v1247 = vpack.c.b16 %v1017, %v1007
        %v1248 = vpack.c.b16 %v1018, %v1008
        %v1249 = vpack.c.b16 %v1019, %v1009
        %v1250 = vpack.c.b16 %v1030, %v1020
        %v1251 = vpack.c.b16 %v1031, %v1021
        %v1252 = vpack.c.b16 %v1032, %v1022
        %v1253 = vpack.c.b16 %v1033, %v1023
        %v1254 = vpack.c.b16 %v1034, %v1024
        %v1255 = vpack.c.b16 %v1035, %v1025
        %v1256 = vpack.c.b16 %v1036, %v1026
        %v1257 = vpack.c.b16 %v1037, %v1027
        %v1258 = vpack.c.b16 %v1038, %v1028
        %v1259 = vpack.c.b16 %v1039, %v1029
        %v1260 = vpack.c.b16 %v1050, %v1040
        %v1261 = vpack.c.b16 %v1051, %v1041
        %v1262 = vpack.c.b16 %v1052, %v1042
        %v1263 = vpack.c.b16 %v1053, %v1043
        %v1264 = vpack.c.b16 %v1054, %v1044
        %v1265 = vpack.c.b16 %v1055, %v1045
        %v1266 = vpack.c.b16 %v1056, %v1046
        %v1267 = vpack.c.b16 %v1057, %v1047
        %v1268 = vpack.c.b16 %v1058, %v1048
        %v1269 = vpack.c.b16 %v1059, %v1049
        %v1270 = vpack.c.b16 %v1070, %v1060
        %v1271 = vpack.c.b16 %v1071, %v1061
        %v1272 = vpack.c.b16 %v1072, %v1062
        %v1273 = vpack.c.b16 %v1073, %v1063
        %v1274 = vpack.c.b16 %v1074, %v1064
        %v1275 = vpack.c.b16 %v1075, %v1065
        %v1276 = vpack.c.b16 %v1076, %v1066
        %v1277 = vpack.c.b16 %v1077, %v1067
        %v1278 = vpack.c.b16 %v1078, %v1068
        %v1279 = vpack.c.b16 %v1079, %v1069
        %vm1480 = vcmask 523264
        %v1482 = vsel %vm1480, %v479, 0
        %1484 = vmatprep.subr.bf16.mxu0 %v1081
        %1485 = vmatpush1.bf16.msra.mxu0 %v1080
        %1486 = vmatprep.subr.bf16.mxu0 %v1091
        %1487 = vmatpush1.bf16.msra.mxu0 %v1090
        %1488 = vmatprep.subr.bf16.mxu0 %v1101
        %1489 = vmatpush1.bf16.msra.mxu0 %v1100
        %1490 = vmatprep.subr.bf16.mxu0 %v1111
        %1491 = vmatpush1.bf16.msra.mxu0 %v1110
        %1492 = vmatprep.subr.bf16.mxu0 %v1121
        %1493 = vmatpush1.bf16.msra.mxu0 %v1120
        %1494 = vmatprep.subr.bf16.mxu0 %v1131
        %1495 = vmatpush1.bf16.msra.mxu0 %v1130
        %1496 = vmatprep.subr.bf16.mxu0 %v1141
        %1497 = vmatpush1.bf16.msra.mxu0 %v1140
        %1498 = vmatprep.subr.bf16.mxu0 %v1151
        %1499 = vmatpush1.bf16.msra.mxu0 %v1150
        %1500 = vmatprep.subr.bf16.mxu0 %v1161
        %1501 = vmatpush1.bf16.msra.mxu0 %v1160
        %1502 = vmatprep.subr.bf16.mxu0 %v1171
        %1503 = vmatpush1.bf16.msra.mxu0 %v1170
        %1504 = vmatprep.subr.bf16.mxu0 %v1181
        %1505 = vmatpush1.bf16.msra.mxu0 %v1180
        %1506 = vmatprep.subr.bf16.mxu0 %v1191
        %1507 = vmatpush1.bf16.msra.mxu0 %v1190
        %1508 = vmatprep.subr.bf16.mxu0 %v1201
        %1509 = vmatpush1.bf16.msra.mxu0 %v1200
        %1510 = vmatprep.subr.bf16.mxu0 %v1211
        %1511 = vmatpush1.bf16.msra.mxu0 %v1210
        %1512 = vmatprep.subr.bf16.mxu0 %v1221
        %1513 = vmatpush1.bf16.msra.mxu0 %v1220
        %1514 = vmatprep.subr.bf16.mxu0 %v1231
        %1515 = vmatpush1.bf16.msra.mxu0 %v1230
        %1516 = vmatprep.mubr.bf16.mxu0 %v478
        %1517 = vmatmul.mubr.bf16.gmra.mrb[0].mxu0 %v477
        %v1518 = vpop.f32.mrb[0].mxu0
        %v1519 = vadd.f32 0.0, %v1518
        %v1520 = vpop.f32.mrb[0].mxu0
        %v1521 = vadd.f32 0.0, %v1520
        %v1522 = vpop.f32.mrb[0].mxu0
        %v1523 = vpop.f32.mrb[0].mxu0
        %1524 = vdwg.mxu0
        %1525 = vmatprep.subr.bf16.mxu0 %v1241
        %1526 = vmatpush1.bf16.msra.mxu0 %v1240
        %1527 = vmatprep.subr.bf16.mxu0 %v1251
        %1528 = vmatpush1.bf16.msra.mxu0 %v1250
        %1529 = vmatprep.subr.bf16.mxu0 %v1261
        %1530 = vmatpush1.bf16.msra.mxu0 %v1260
        %1531 = vmatprep.subr.bf16.mxu0 %v1271
        %1532 = vmatpush1.bf16.msra.mxu0 %v1270
        %1533 = vmatprep.subr.bf16.mxu0 0
        %1534 = vmatpush1.bf16.msra.mxu0 0
        %1535 = vmatprep.subr.bf16.mxu0 0
        %1536 = vmatpush1.bf16.msra.mxu0 0
        %1537 = vmatprep.subr.bf16.mxu0 0
        %1538 = vmatpush1.bf16.msra.mxu0 0
        %1539 = vmatprep.subr.bf16.mxu0 0
        %1540 = vmatpush1.bf16.msra.mxu0 0
        %1541 = vmatprep.subr.bf16.mxu0 0
        %1542 = vmatpush1.bf16.msra.mxu0 0
        %1543 = vmatprep.subr.bf16.mxu0 0
        %1544 = vmatpush1.bf16.msra.mxu0 0
        %1545 = vmatprep.subr.bf16.mxu0 0
        %1546 = vmatpush1.bf16.msra.mxu0 0
        %1547 = vmatprep.subr.bf16.mxu0 0
        %1548 = vmatpush1.bf16.msra.mxu0 0
        %1549 = vmatprep.subr.bf16.mxu0 0
        %1550 = vmatpush1.bf16.msra.mxu0 0
        %1551 = vmatprep.subr.bf16.mxu0 0
        %1552 = vmatpush1.bf16.msra.mxu0 0
        %1553 = vmatprep.subr.bf16.mxu0 0
        %1554 = vmatpush1.bf16.msra.mxu0 0
        %1555 = vmatprep.subr.bf16.mxu0 0
        %1556 = vmatpush1.bf16.msra.mxu0 0
        %1557 = vmatprep.mubr.bf16.mxu0 0
        %1558 = vmatmul.mubr.bf16.gmra.mrb[0].mxu0 %v1482
        %v1559 = vpop.f32.mrb[0].mxu0
        %v1560 = vadd.f32 %v1519, %v1559
        %v1561 = vpop.f32.mrb[0].mxu0
        %v1562 = vadd.f32 %v1521, %v1561
        %v1563 = vpop.f32.mrb[0].mxu0
        %v1564 = vpop.f32.mrb[0].mxu0
        %1565 = vdwg.mxu0
        %1566 = vmatprep.subr.bf16.mxu0 %v1083
        %1567 = vmatpush1.bf16.msra.mxu0 %v1082
        %1568 = vmatprep.subr.bf16.mxu0 %v1093
        %1569 = vmatpush1.bf16.msra.mxu0 %v1092
        %1570 = vmatprep.subr.bf16.mxu0 %v1103
        %1571 = vmatpush1.bf16.msra.mxu0 %v1102
        %1572 = vmatprep.subr.bf16.mxu0 %v1113
        %1573 = vmatpush1.bf16.msra.mxu0 %v1112
        %1574 = vmatprep.subr.bf16.mxu0 %v1123
        %1575 = vmatpush1.bf16.msra.mxu0 %v1122
        %1576 = vmatprep.subr.bf16.mxu0 %v1133
        %1577 = vmatpush1.bf16.msra.mxu0 %v1132
        %1578 = vmatprep.subr.bf16.mxu0 %v1143
        %1579 = vmatpush1.bf16.msra.mxu0 %v1142
        %1580 = vmatprep.subr.bf16.mxu0 %v1153
        %1581 = vmatpush1.bf16.msra.mxu0 %v1152
        %1582 = vmatprep.subr.bf16.mxu0 %v1163
        %1583 = vmatpush1.bf16.msra.mxu0 %v1162
        %1584 = vmatprep.subr.bf16.mxu0 %v1173
        %1585 = vmatpush1.bf16.msra.mxu0 %v1172
        %1586 = vmatprep.subr.bf16.mxu0 %v1183
        %1587 = vmatpush1.bf16.msra.mxu0 %v1182
        %1588 = vmatprep.subr.bf16.mxu0 %v1193
        %1589 = vmatpush1.bf16.msra.mxu0 %v1192
        %1590 = vmatprep.subr.bf16.mxu0 %v1203
        %1591 = vmatpush1.bf16.msra.mxu0 %v1202
        %1592 = vmatprep.subr.bf16.mxu0 %v1213
        %1593 = vmatpush1.bf16.msra.mxu0 %v1212
        %1594 = vmatprep.subr.bf16.mxu0 %v1223
        %1595 = vmatpush1.bf16.msra.mxu0 %v1222
        %1596 = vmatprep.subr.bf16.mxu0 %v1233
        %1597 = vmatpush1.bf16.msra.mxu0 %v1232
        %1598 = vmatprep.mubr.bf16.mxu0 %v478
        %1599 = vmatmul.mubr.bf16.gmra.mrb[0].mxu0 %v477
        %v1600 = vpop.f32.mrb[0].mxu0
        %v1601 = vadd.f32 0.0, %v1600
        %v1602 = vpop.f32.mrb[0].mxu0
        %v1603 = vadd.f32 0.0, %v1602
        %v1604 = vpop.f32.mrb[0].mxu0
        %v1605 = vpop.f32.mrb[0].mxu0
        %1606 = vdwg.mxu0
        %1607 = vmatprep.subr.bf16.mxu0 %v1243
        %1608 = vmatpush1.bf16.msra.mxu0 %v1242
        %1609 = vmatprep.subr.bf16.mxu0 %v1253
        %1610 = vmatpush1.bf16.msra.mxu0 %v1252
        %1611 = vmatprep.subr.bf16.mxu0 %v1263
        %1612 = vmatpush1.bf16.msra.mxu0 %v1262
        %1613 = vmatprep.subr.bf16.mxu0 %v1273
        %1614 = vmatpush1.bf16.msra.mxu0 %v1272
        %1615 = vmatprep.subr.bf16.mxu0 0
        %1616 = vmatpush1.bf16.msra.mxu0 0
        %1617 = vmatprep.subr.bf16.mxu0 0
        %1618 = vmatpush1.bf16.msra.mxu0 0
        %1619 = vmatprep.subr.bf16.mxu0 0
        %1620 = vmatpush1.bf16.msra.mxu0 0
        %1621 = vmatprep.subr.bf16.mxu0 0
        %1622 = vmatpush1.bf16.msra.mxu0 0
        %1623 = vmatprep.subr.bf16.mxu0 0
        %1624 = vmatpush1.bf16.msra.mxu0 0
        %1625 = vmatprep.subr.bf16.mxu0 0
        %1626 = vmatpush1.bf16.msra.mxu0 0
        %1627 = vmatprep.subr.bf16.mxu0 0
        %1628 = vmatpush1.bf16.msra.mxu0 0
        %1629 = vmatprep.subr.bf16.mxu0 0
        %1630 = vmatpush1.bf16.msra.mxu0 0
        %1631 = vmatprep.subr.bf16.mxu0 0
        %1632 = vmatpush1.bf16.msra.mxu0 0
        %1633 = vmatprep.subr.bf16.mxu0 0
        %1634 = vmatpush1.bf16.msra.mxu0 0
        %1635 = vmatprep.subr.bf16.mxu0 0
        %1636 = vmatpush1.bf16.msra.mxu0 0
        %1637 = vmatprep.subr.bf16.mxu0 0
        %1638 = vmatpush1.bf16.msra.mxu0 0
        %1639 = vmatprep.mubr.bf16.mxu0 0
        %1640 = vmatmul.mubr.bf16.gmra.mrb[0].mxu0 %v1482
        %v1641 = vpop.f32.mrb[0].mxu0
        %v1642 = vadd.f32 %v1601, %v1641
        %v1643 = vpop.f32.mrb[0].mxu0
        %v1644 = vadd.f32 %v1603, %v1643
        %v1645 = vpop.f32.mrb[0].mxu0
        %v1646 = vpop.f32.mrb[0].mxu0
        %1647 = vdwg.mxu0
        %1648 = vmatprep.subr.bf16.mxu0 %v1085
        %1649 = vmatpush1.bf16.msra.mxu0 %v1084
        %1650 = vmatprep.subr.bf16.mxu0 %v1095
        %1651 = vmatpush1.bf16.msra.mxu0 %v1094
        %1652 = vmatprep.subr.bf16.mxu0 %v1105
        %1653 = vmatpush1.bf16.msra.mxu0 %v1104
        %1654 = vmatprep.subr.bf16.mxu0 %v1115
        %1655 = vmatpush1.bf16.msra.mxu0 %v1114
        %1656 = vmatprep.subr.bf16.mxu0 %v1125
        %1657 = vmatpush1.bf16.msra.mxu0 %v1124
        %1658 = vmatprep.subr.bf16.mxu0 %v1135
        %1659 = vmatpush1.bf16.msra.mxu0 %v1134
        %1660 = vmatprep.subr.bf16.mxu0 %v1145
        %1661 = vmatpush1.bf16.msra.mxu0 %v1144
        %1662 = vmatprep.subr.bf16.mxu0 %v1155
        %1663 = vmatpush1.bf16.msra.mxu0 %v1154
        %1664 = vmatprep.subr.bf16.mxu0 %v1165
        %1665 = vmatpush1.bf16.msra.mxu0 %v1164
        %1666 = vmatprep.subr.bf16.mxu0 %v1175
        %1667 = vmatpush1.bf16.msra.mxu0 %v1174
        %1668 = vmatprep.subr.bf16.mxu0 %v1185
        %1669 = vmatpush1.bf16.msra.mxu0 %v1184
        %1670 = vmatprep.subr.bf16.mxu0 %v1195
        %1671 = vmatpush1.bf16.msra.mxu0 %v1194
        %1672 = vmatprep.subr.bf16.mxu0 %v1205
        %1673 = vmatpush1.bf16.msra.mxu0 %v1204
        %1674 = vmatprep.subr.bf16.mxu0 %v1215
        %1675 = vmatpush1.bf16.msra.mxu0 %v1214
        %1676 = vmatprep.subr.bf16.mxu0 %v1225
        %1677 = vmatpush1.bf16.msra.mxu0 %v1224
        %1678 = vmatprep.subr.bf16.mxu0 %v1235
        %1679 = vmatpush1.bf16.msra.mxu0 %v1234
        %1680 = vmatprep.mubr.bf16.mxu0 %v478
        %1681 = vmatmul.mubr.bf16.gmra.mrb[0].mxu0 %v477
        %v1682 = vpop.f32.mrb[0].mxu0
        %v1683 = vadd.f32 0.0, %v1682
        %v1684 = vpop.f32.mrb[0].mxu0
        %v1685 = vadd.f32 0.0, %v1684
        %v1686 = vpop.f32.mrb[0].mxu0
        %v1687 = vpop.f32.mrb[0].mxu0
        %1688 = vdwg.mxu0
        %1689 = vmatprep.subr.bf16.mxu0 %v1245
        %1690 = vmatpush1.bf16.msra.mxu0 %v1244
        %1691 = vmatprep.subr.bf16.mxu0 %v1255
        %1692 = vmatpush1.bf16.msra.mxu0 %v1254
        %1693 = vmatprep.subr.bf16.mxu0 %v1265
        %1694 = vmatpush1.bf16.msra.mxu0 %v1264
        %1695 = vmatprep.subr.bf16.mxu0 %v1275
        %1696 = vmatpush1.bf16.msra.mxu0 %v1274
        %1697 = vmatprep.subr.bf16.mxu0 0
        %1698 = vmatpush1.bf16.msra.mxu0 0
        %1699 = vmatprep.subr.bf16.mxu0 0
        %1700 = vmatpush1.bf16.msra.mxu0 0
        %1701 = vmatprep.subr.bf16.mxu0 0
        %1702 = vmatpush1.bf16.msra.mxu0 0
        %1703 = vmatprep.subr.bf16.mxu0 0
        %1704 = vmatpush1.bf16.msra.mxu0 0
        %1705 = vmatprep.subr.bf16.mxu0 0
        %1706 = vmatpush1.bf16.msra.mxu0 0
        %1707 = vmatprep.subr.bf16.mxu0 0
        %1708 = vmatpush1.bf16.msra.mxu0 0
        %1709 = vmatprep.subr.bf16.mxu0 0
        %1710 = vmatpush1.bf16.msra.mxu0 0
        %1711 = vmatprep.subr.bf16.mxu0 0
        %1712 = vmatpush1.bf16.msra.mxu0 0
        %1713 = vmatprep.subr.bf16.mxu0 0
        %1714 = vmatpush1.bf16.msra.mxu0 0
        %1715 = vmatprep.subr.bf16.mxu0 0
        %1716 = vmatpush1.bf16.msra.mxu0 0
        %1717 = vmatprep.subr.bf16.mxu0 0
        %1718 = vmatpush1.bf16.msra.mxu0 0
        %1719 = vmatprep.subr.bf16.mxu0 0
        %1720 = vmatpush1.bf16.msra.mxu0 0
        %1721 = vmatprep.mubr.bf16.mxu0 0
        %1722 = vmatmul.mubr.bf16.gmra.mrb[0].mxu0 %v1482
        %v1723 = vpop.f32.mrb[0].mxu0
        %v1724 = vadd.f32 %v1683, %v1723
        %v1725 = vpop.f32.mrb[0].mxu0
        %v1726 = vadd.f32 %v1685, %v1725
        %v1727 = vpop.f32.mrb[0].mxu0
        %v1728 = vpop.f32.mrb[0].mxu0
        %1729 = vdwg.mxu0
        %1730 = vmatprep.subr.bf16.mxu0 %v1087
        %1731 = vmatpush1.bf16.msra.mxu0 %v1086
        %1732 = vmatprep.subr.bf16.mxu0 %v1097
        %1733 = vmatpush1.bf16.msra.mxu0 %v1096
        %1734 = vmatprep.subr.bf16.mxu0 %v1107
        %1735 = vmatpush1.bf16.msra.mxu0 %v1106
        %1736 = vmatprep.subr.bf16.mxu0 %v1117
        %1737 = vmatpush1.bf16.msra.mxu0 %v1116
        %1738 = vmatprep.subr.bf16.mxu0 %v1127
        %1739 = vmatpush1.bf16.msra.mxu0 %v1126
        %1740 = vmatprep.subr.bf16.mxu0 %v1137
        %1741 = vmatpush1.bf16.msra.mxu0 %v1136
        %1742 = vmatprep.subr.bf16.mxu0 %v1147
        %1743 = vmatpush1.bf16.msra.mxu0 %v1146
        %1744 = vmatprep.subr.bf16.mxu0 %v1157
        %1745 = vmatpush1.bf16.msra.mxu0 %v1156
        %1746 = vmatprep.subr.bf16.mxu0 %v1167
        %1747 = vmatpush1.bf16.msra.mxu0 %v1166
        %1748 = vmatprep.subr.bf16.mxu0 %v1177
        %1749 = vmatpush1.bf16.msra.mxu0 %v1176
        %1750 = vmatprep.subr.bf16.mxu0 %v1187
        %1751 = vmatpush1.bf16.msra.mxu0 %v1186
        %1752 = vmatprep.subr.bf16.mxu0 %v1197
        %1753 = vmatpush1.bf16.msra.mxu0 %v1196
        %1754 = vmatprep.subr.bf16.mxu0 %v1207
        %1755 = vmatpush1.bf16.msra.mxu0 %v1206
        %1756 = vmatprep.subr.bf16.mxu0 %v1217
        %1757 = vmatpush1.bf16.msra.mxu0 %v1216
        %1758 = vmatprep.subr.bf16.mxu0 %v1227
        %1759 = vmatpush1.bf16.msra.mxu0 %v1226
        %1760 = vmatprep.subr.bf16.mxu0 %v1237
        %1761 = vmatpush1.bf16.msra.mxu0 %v1236
        %1762 = vmatprep.mubr.bf16.mxu0 %v478
        %1763 = vmatmul.mubr.bf16.gmra.mrb[0].mxu0 %v477
        %v1764 = vpop.f32.mrb[0].mxu0
        %v1765 = vadd.f32 0.0, %v1764
        %v1766 = vpop.f32.mrb[0].mxu0
        %v1767 = vadd.f32 0.0, %v1766
        %v1768 = vpop.f32.mrb[0].mxu0
        %v1769 = vpop.f32.mrb[0].mxu0
        %1770 = vdwg.mxu0
        %1771 = vmatprep.subr.bf16.mxu0 %v1247
        %1772 = vmatpush1.bf16.msra.mxu0 %v1246
        %1773 = vmatprep.subr.bf16.mxu0 %v1257
        %1774 = vmatpush1.bf16.msra.mxu0 %v1256
        %1775 = vmatprep.subr.bf16.mxu0 %v1267
        %1776 = vmatpush1.bf16.msra.mxu0 %v1266
        %1777 = vmatprep.subr.bf16.mxu0 %v1277
        %1778 = vmatpush1.bf16.msra.mxu0 %v1276
        %1779 = vmatprep.subr.bf16.mxu0 0
        %1780 = vmatpush1.bf16.msra.mxu0 0
        %1781 = vmatprep.subr.bf16.mxu0 0
        %1782 = vmatpush1.bf16.msra.mxu0 0
        %1783 = vmatprep.subr.bf16.mxu0 0
        %1784 = vmatpush1.bf16.msra.mxu0 0
        %1785 = vmatprep.subr.bf16.mxu0 0
        %1786 = vmatpush1.bf16.msra.mxu0 0
        %1787 = vmatprep.subr.bf16.mxu0 0
        %1788 = vmatpush1.bf16.msra.mxu0 0
        %1789 = vmatprep.subr.bf16.mxu0 0
        %1790 = vmatpush1.bf16.msra.mxu0 0
        %1791 = vmatprep.subr.bf16.mxu0 0
        %1792 = vmatpush1.bf16.msra.mxu0 0
        %1793 = vmatprep.subr.bf16.mxu0 0
        %1794 = vmatpush1.bf16.msra.mxu0 0
        %1795 = vmatprep.subr.bf16.mxu0 0
        %1796 = vmatpush1.bf16.msra.mxu0 0
        %1797 = vmatprep.subr.bf16.mxu0 0
        %1798 = vmatpush1.bf16.msra.mxu0 0
        %1799 = vmatprep.subr.bf16.mxu0 0
        %1800 = vmatpush1.bf16.msra.mxu0 0
        %1801 = vmatprep.subr.bf16.mxu0 0
        %1802 = vmatpush1.bf16.msra.mxu0 0
        %1803 = vmatprep.mubr.bf16.mxu0 0
        %1804 = vmatmul.mubr.bf16.gmra.mrb[0].mxu0 %v1482
        %v1805 = vpop.f32.mrb[0].mxu0
        %v1806 = vadd.f32 %v1765, %v1805
        %v1807 = vpop.f32.mrb[0].mxu0
        %v1808 = vadd.f32 %v1767, %v1807
        %v1809 = vpop.f32.mrb[0].mxu0
        %v1810 = vpop.f32.mrb[0].mxu0
        %1811 = vdwg.mxu0
        %1812 = vmatprep.subr.bf16.mxu0 %v1089
        %1813 = vmatpush1.bf16.msra.mxu0 %v1088
        %1814 = vmatprep.subr.bf16.mxu0 %v1099
        %1815 = vmatpush1.bf16.msra.mxu0 %v1098
        %1816 = vmatprep.subr.bf16.mxu0 %v1109
        %1817 = vmatpush1.bf16.msra.mxu0 %v1108
        %1818 = vmatprep.subr.bf16.mxu0 %v1119
        %1819 = vmatpush1.bf16.msra.mxu0 %v1118
        %1820 = vmatprep.subr.bf16.mxu0 %v1129
        %1821 = vmatpush1.bf16.msra.mxu0 %v1128
        %1822 = vmatprep.subr.bf16.mxu0 %v1139
        %1823 = vmatpush1.bf16.msra.mxu0 %v1138
        %1824 = vmatprep.subr.bf16.mxu0 %v1149
        %1825 = vmatpush1.bf16.msra.mxu0 %v1148
        %1826 = vmatprep.subr.bf16.mxu0 %v1159
        %1827 = vmatpush1.bf16.msra.mxu0 %v1158
        %1828 = vmatprep.subr.bf16.mxu0 %v1169
        %1829 = vmatpush1.bf16.msra.mxu0 %v1168
        %1830 = vmatprep.subr.bf16.mxu0 %v1179
        %1831 = vmatpush1.bf16.msra.mxu0 %v1178
        %1832 = vmatprep.subr.bf16.mxu0 %v1189
        %1833 = vmatpush1.bf16.msra.mxu0 %v1188
        %1834 = vmatprep.subr.bf16.mxu0 %v1199
        %1835 = vmatpush1.bf16.msra.mxu0 %v1198
        %1836 = vmatprep.subr.bf16.mxu0 %v1209
        %1837 = vmatpush1.bf16.msra.mxu0 %v1208
        %1838 = vmatprep.subr.bf16.mxu0 %v1219
        %1839 = vmatpush1.bf16.msra.mxu0 %v1218
        %1840 = vmatprep.subr.bf16.mxu0 %v1229
        %1841 = vmatpush1.bf16.msra.mxu0 %v1228
        %1842 = vmatprep.subr.bf16.mxu0 %v1239
        %1843 = vmatpush1.bf16.msra.mxu0 %v1238
        %1844 = vmatprep.mubr.bf16.mxu0 %v478
        %1845 = vmatmul.mubr.bf16.gmra.mrb[0].mxu0 %v477
        %v1846 = vpop.f32.mrb[0].mxu0
        %v1847 = vadd.f32 0.0, %v1846
        %v1848 = vpop.f32.mrb[0].mxu0
        %v1849 = vadd.f32 0.0, %v1848
        %v1850 = vpop.f32.mrb[0].mxu0
        %v1851 = vpop.f32.mrb[0].mxu0
        %1852 = vdwg.mxu0
        %1853 = vmatprep.subr.bf16.mxu0 %v1249
        %1854 = vmatpush1.bf16.msra.mxu0 %v1248
        %1855 = vmatprep.subr.bf16.mxu0 %v1259
        %1856 = vmatpush1.bf16.msra.mxu0 %v1258
        %1857 = vmatprep.subr.bf16.mxu0 %v1269
        %1858 = vmatpush1.bf16.msra.mxu0 %v1268
        %1859 = vmatprep.subr.bf16.mxu0 %v1279
        %1860 = vmatpush1.bf16.msra.mxu0 %v1278
        %1861 = vmatprep.subr.bf16.mxu0 0
        %1862 = vmatpush1.bf16.msra.mxu0 0
        %1863 = vmatprep.subr.bf16.mxu0 0
        %1864 = vmatpush1.bf16.msra.mxu0 0
        %1865 = vmatprep.subr.bf16.mxu0 0
        %1866 = vmatpush1.bf16.msra.mxu0 0
        %1867 = vmatprep.subr.bf16.mxu0 0
        %1868 = vmatpush1.bf16.msra.mxu0 0
        %1869 = vmatprep.subr.bf16.mxu0 0
        %1870 = vmatpush1.bf16.msra.mxu0 0
        %1871 = vmatprep.subr.bf16.mxu0 0
        %1872 = vmatpush1.bf16.msra.mxu0 0
        %1873 = vmatprep.subr.bf16.mxu0 0
        %1874 = vmatpush1.bf16.msra.mxu0 0
        %1875 = vmatprep.subr.bf16.mxu0 0
        %1876 = vmatpush1.bf16.msra.mxu0 0
        %1877 = vmatprep.subr.bf16.mxu0 0
        %1878 = vmatpush1.bf16.msra.mxu0 0
        %1879 = vmatprep.subr.bf16.mxu0 0
        %1880 = vmatpush1.bf16.msra.mxu0 0
        %1881 = vmatprep.subr.bf16.mxu0 0
        %1882 = vmatpush1.bf16.msra.mxu0 0
        %1883 = vmatprep.subr.bf16.mxu0 0
        %1884 = vmatpush1.bf16.msra.mxu0 0
        %1885 = vmatprep.mubr.bf16.mxu0 0
        %1886 = vmatmul.mubr.bf16.gmra.mrb[0].mxu0 %v1482
        %v1887 = vpop.f32.mrb[0].mxu0
        %v1888 = vadd.f32 %v1847, %v1887
        %v1889 = vpop.f32.mrb[0].mxu0
        %v1890 = vadd.f32 %v1849, %v1889
        %v1891 = vpop.f32.mrb[0].mxu0
        %v1892 = vpop.f32.mrb[0].mxu0
        %1893 = vdwg.mxu0
        %v1904 = vcombine.low %v1560, %v1562
        %v1905 = vcombine.low %v1642, %v1644
        %v1907 = vunpack.c.l.s4 1983009808
        %v1908 = vunpack.c.0.s8 %v1907
        %v1909 = vlaneseq
        %v1910 = vshrl.u32 %v1909, 7
        %v1911 = vsub.s32 %v1908, %v1910
        %v1912 = vrot.slane %v1904, %v1911
        %v1914 = vunpack.c.l.s4 1983009808
        %v1915 = vunpack.c.0.s8 %v1914
        %v1916 = vlaneseq
        %v1917 = vshrl.u32 %v1916, 7
        %v1918 = vsub.s32 %v1915, %v1917
        %v1919 = vrot.slane %v1905, %v1918
        %v1920 = vcombine.low %v1912, %v1919
        %v1921 = vcombine.low %v1724, %v1726
        %v1922 = vcombine.low %v1806, %v1808
        %v1924 = vunpack.c.l.s4 1983009808
        %v1925 = vunpack.c.0.s8 %v1924
        %v1926 = vlaneseq
        %v1927 = vshrl.u32 %v1926, 7
        %v1928 = vsub.s32 %v1925, %v1927
        %v1929 = vrot.slane %v1921, %v1928
        %v1931 = vunpack.c.l.s4 1983009808
        %v1932 = vunpack.c.0.s8 %v1931
        %v1933 = vlaneseq
        %v1934 = vshrl.u32 %v1933, 7
        %v1935 = vsub.s32 %v1932, %v1934
        %v1936 = vrot.slane %v1922, %v1935
        %v1937 = vcombine.low %v1929, %v1936
        %v1938 = vcombine.low %v1888, %v1890
        %v1940 = vunpack.c.l.s4 1983009808
        %v1941 = vunpack.c.0.s8 %v1940
        %v1942 = vlaneseq
        %v1943 = vshrl.u32 %v1942, 7
        %v1944 = vsub.s32 %v1941, %v1943
        %v1945 = vrot.slane %v1938, %v1944
        %v1949 = vadd.f32 %v474, %v1920
        %v1950 = vadd.f32 %v475, %v1937
        %v1951 = vadd.f32 %v476, %v1945
        %v1952 = vxor.u32 %v1949, 2147483648
        %v1953 = vmul.f32 %v1952, 1.442695
        %v1954 = vpow.pop %v1953
        %v1955 = vadd.f32 %v1954, 1.0
        %v1956 = vrcp.pop %v1955
        %v1957 = vmul.f32 1.0, %v1956
        %1960 = vrot.lane.b32.xlu0 %v1949, 64
        %v1961 = vpop.permute.xlu0 %1960
        %1962 = vrot.lane.b32.xlu0 %v1950, 64
        %v1963 = vpop.permute.xlu0 %1962
        %v1964 = vrot.slane %v1961, 4
        %v1965 = vrot.slane %v1963, 4
        %v1966 = vrot.slane %v1961, 6
        %v1967 = vrot.slane %v1963, 6
        %vm1968 = vcmask 1043456
        %v1969 = vsel %vm1968, %v1964, %v1965
        %vm1970 = vcmask 1041408
        %v1971 = vsel %vm1970, %v1966, %v1967
        %v1972 = vsel %vm1480, %v1969, %v1971
        %v1974 = vxor.u32 %v1972, 2147483648
        %v1975 = vmul.f32 %v1974, 1.442695
        %v1976 = vpow.pop %v1975
        %v1977 = vadd.f32 %v1976, 1.0
        %v1978 = vrcp.pop %v1977
        %v1979 = vmul.f32 1.0, %v1978
        %v1980 = vrot.slane %v1950, 2
        %v1982 = vtanh.pop %v1980
        %1984 = vrot.lane.b32.xlu0 %v1951, 64
        %v1985 = vpop.permute.xlu0 %1984
        %v1986 = vrot.slane %v1985, 6
        %v1987 = vsel %vm1970, %v1967, %v1986
        %v1988 = vsel %vm1480, %v1987, %v1985
        %v1990 = vxor.u32 %v1988, 2147483648
        %v1991 = vmul.f32 %v1990, 1.442695
        %v1992 = vpow.pop %v1991
        %v1993 = vadd.f32 %v1992, 1.0
        %v1994 = vrcp.pop %v1993
        %v1995 = vmul.f32 1.0, %v1994
        %v1999 = vcombine.low %v468, %v469
        %v2001 = vunpack.c.l.s4 1983009808
        %v2002 = vunpack.c.0.s8 %v2001
        %v2003 = vlaneseq
        %v2004 = vshrl.u32 %v2003, 7
        %v2005 = vsub.s32 %v2002, %v2004
        %v2006 = vrot.slane %v1999, %v2005
        %v2008 = vunpack.c.l.s4 1983009808
        %v2009 = vunpack.c.0.s8 %v2008
        %v2010 = vlaneseq
        %v2011 = vshrl.u32 %v2010, 7
        %v2012 = vsub.s32 %v2009, %v2011
        %v2013 = vrot.slane %v470, %v2012
        %v2014 = vcombine.low %v2006, %v2013
        %v2016 = vmul.f32 %v1979, %v2014
        %v2017 = vmul.f32 %v1957, %v1982
        %v2018 = vadd.f32 %v2016, %v2017
        %v2019 = vtanh.pop %v2018
        %v2020 = vmul.f32 %v1995, %v2019
        %s2021 = smul.u32 %s460, 2
        %s2022 = scalar_lea.vmem %s243, %s2021
        %v2023 = vld [vmem:[%s2022] sm:$0x3]
        %2025 = vset.pattern.permute.xlu0 0
        %2026 = vperm.xlu0 %2025, %v2023
        %v2027 = vpop.permute.xlu0 %2026
        %v2030 = vcombine.high %v2020, %v2020
        %v2032 = vunpack.c.l.s4 1983009808
        %v2033 = vunpack.c.0.s8 %v2032
        %v2034 = vlaneseq
        %v2035 = vshrl.u32 %v2034, 7
        %v2036 = vsub.s32 %v2033, %v2035
        %v2037 = vrot.slane %v2020, %v2036
        %v2039 = vunpack.c.l.s4 1983009808
        %v2040 = vunpack.c.0.s8 %v2039
        %v2041 = vlaneseq
        %v2042 = vshrl.u32 %v2041, 7
        %v2043 = vsub.s32 %v2040, %v2042
        %v2044 = vrot.slane %v2030, %v2043
        %v2045 = vcombine.high %v2037, %v2037
        %v2049 = vmul.f32 %v2027, %v2037
        %v2050 = vmul.f32 %v2027, %v2045
        %v2051 = vmul.f32 %v2027, %v2044
        %v2055 = vcombine.low %v2049, %v2050
        %v2057 = vunpack.c.l.s4 1983009808
        %v2058 = vunpack.c.0.s8 %v2057
        %v2059 = vlaneseq
        %v2060 = vshrl.u32 %v2059, 7
        %v2061 = vsub.s32 %v2058, %v2060
        %v2062 = vrot.slane %v2055, %v2061
        %v2064 = vunpack.c.l.s4 1983009808
        %v2065 = vunpack.c.0.s8 %v2064
        %v2066 = vlaneseq
        %v2067 = vshrl.u32 %v2066, 7
        %v2068 = vsub.s32 %v2065, %v2067
        %v2069 = vrot.slane %v2051, %v2068
        %v2070 = vcombine.low %v2062, %v2069
        %s2072 = smul.u32 %s460, 3
        %s2073 = smul.addr %s2072, 2
        %s2074 = scalar_lea.vmem %s257, %s2073
        %vm2075 = vcmask 1043458
        %vm2076 = vmor %vm2075, %vm1970
        %vm2077 = vcmask 521220
        %vm2078 = vmor %vm2077, %vm2076
        %2079 = vst.msk [vmem:[%s2074] sm:$0x3f] %vm2078, %v2070
        %v2080 = vsub.f32 1.0, %v2023
        %2082 = vset.pattern.permute.xlu0 0
        %2083 = vperm.xlu0 %2082, %v2080
        %v2084 = vpop.permute.xlu0 %2083
        %v2086 = vmul.f32 %v2084, %v465
        %v2087 = vmul.f32 %v2084, %v466
        %v2088 = vmul.f32 %v2084, %v467
        %v2089 = vadd.f32 %v2049, %v2086
        %v2090 = vadd.f32 %v2050, %v2087
        %v2091 = vadd.f32 %v2051, %v2088
        %v2093 = vcombine.high %v2018, %v2018
        %v2095 = vunpack.c.l.s4 1983009808
        %v2096 = vunpack.c.0.s8 %v2095
        %v2097 = vlaneseq
        %v2098 = vshrl.u32 %v2097, 7
        %v2099 = vsub.s32 %v2096, %v2098
        %v2100 = vrot.slane %v2018, %v2099
        %v2102 = vunpack.c.l.s4 1983009808
        %v2103 = vunpack.c.0.s8 %v2102
        %v2104 = vlaneseq
        %v2105 = vshrl.u32 %v2104, 7
        %v2106 = vsub.s32 %v2103, %v2105
        %v2107 = vrot.slane %v2093, %v2106
        %v2108 = vcombine.high %v2100, %v2100
        %v2112 = vmul.f32 %v2027, %v2100
        %v2113 = vmul.f32 %v2027, %v2108
        %v2114 = vmul.f32 %v2027, %v2107
        %v2115 = vmul.f32 %v2084, %v468
        %v2116 = vmul.f32 %v2084, %v469
        %v2117 = vmul.f32 %v2084, %v470
        %v2118 = vadd.f32 %v2112, %v2115
        %v2119 = vadd.f32 %v2113, %v2116
        %v2120 = vadd.f32 %v2114, %v2117
      $region37: #{asgcn_forward.2} parent=31 // loop_footer
        %s464 = sadd.s32 1, %s460
      $region38: #{asgcn_forward.2} parent=31 // loop_footer_branch
        %459 = sbr.rel target = $region34
      $region39: #{asgcn_forward.2} parent=31 // loop_exit
        _
      %p2121 = scmp.lt.s32.totalorder %s18, 1
      %s2122 = scalar_select %p2121, %s18, 1
      %p2123 = scmp.lt.s32.totalorder %s19, 0
      %s2124 = scalar_select %p2123, %s19, 0
      %s2125 = smul.addr %s2124, 3
      %s2126 = smul.addr %s2122, 24
      %s2127 = sadd.s32 %s2125, %s2126
      %s2128 = smul.addr %s2127, 2
      %s2129 = scalar_lea.vmem %s3, %s2128
      // Predicated region
      $region40: #{asgcn_forward.2} parent=31 // pred_check
        %p2130 = pneg %p128
      $region41: #{asgcn_forward.2} parent=31 // pred_check_branch
        %2132 = sbr.rel (%p2130) target = $region43
      $region42: #{asgcn_forward.2} parent=31 // pred_region
        _
      $region43: #{asgcn_forward.2} parent=31 // pred_fallthru
        _
    $region32: #{asgcn_forward.2} parent=5 // pred_fallthru
      _
    %p2133 = scmp.le.s32.totalorder 2, %s9
    // Predicated region
    $region44: #{asgcn_forward.2} parent=5 // pred_check
      %p2134 = pneg %p2133
    $region45: #{asgcn_forward.2} parent=5 // pred_check_branch
      %2136 = sbr.rel (%p2134) target = $region47
    $region46: #{asgcn_forward.2} parent=5 // pred_region
      %s2137 = ssub.s32 %s9, 2
      // Predicated region
      $region48: #{asgcn_forward.2} parent=46 // pred_check
        %p2138 = pneg %p134
      $region49: #{asgcn_forward.2} parent=46 // pred_check_branch
        %2140 = sbr.rel (%p2138) target = $region51
      $region50: #{asgcn_forward.2} parent=46 // pred_region
        %p2141 = scmp.lt.s32.totalorder %s20, 1
        %s2142 = scalar_select %p2141, %s20, 1
        %p2143 = scmp.lt.s32.totalorder %s21, 0
        %s2144 = scalar_select %p2143, %s21, 0
        %s2145 = smul.addr %s2144, 3
        %s2146 = smul.addr %s2142, 24
        %s2147 = sadd.s32 %s2145, %s2146
        %s2148 = smul.addr %s2147, 2
        %s2149 = scalar_lea.vmem %s3, %s2148
      $region51: #{asgcn_forward.2} parent=46 // pred_fallthru
        _
    $region47: #{asgcn_forward.2} parent=5 // pred_fallthru
      _
  $region6: #{asgcn_forward.2} parent=0 // loop_footer
    %s13 = sadd.s32 1, %s9
  $region7: #{asgcn_forward.2} parent=0 // loop_footer_branch
    %8 = sbr.rel target = $region3
  $region8: #{asgcn_forward.2} parent=0 // loop_exit
    _

// kernel: asgcn_forward.3
$region0: #{asgcn_forward.3}
  #allocation0 [shape = 'u32[]', space=smem, size = 0x4, offset = 0x4, fixed_abs, tag = 'smem constant byte address 0x4 - core index']
  #allocation1 [shape = 'u32[144,128]{1,0:T(1,128)}', space=vmem, size = 0x12000, scoped, tag = 'internal scratch']
  %s0 = inlined_call_operand.vmem [shape: f32[2,8,640], index: 0, kind: input, shape index: {}]
  %s1 = inlined_call_operand.vmem [shape: f32[2,8,1], index: 1, kind: input, shape index: {}]
  %s2 = inlined_call_operand.vmem [shape: f32[2,8,1], index: 2, kind: input, shape index: {}]
  %s3 = inlined_call_operand.vmem [shape: f32[2,8,8], index: 3, kind: input, shape index: {}]
  %s4 = inlined_call_operand.vmem [shape: bf16[640,640], index: 4, kind: input, shape index: {}]
  %s5 = inlined_call_operand.vmem [shape: f32[1,640], index: 5, kind: input, shape index: {}]
  %s6 = inlined_call_operand.vmem [shape: bf16[640,640], index: 6, kind: input, shape index: {}]
  %s7 = inlined_call_operand.vmem [shape: f32[1,640], index: 7, kind: input, shape index: {}]
  %s8 = inlined_call_operand.vmem [shape: bf16[640,128], index: 8, kind: input, shape index: {}]
  %s9 = inlined_call_operand.vmem [shape: f32[1,128], index: 9, kind: input, shape index: {}]
  %s10 = inlined_call_operand.hbm [shape: f32[2,128], index: 10, kind: output, shape index: {}]
  %s11 = sld [smem:[#allocation0]]
  $region50: #{asgcn_forward.3} parent=0
    _
  %s13 = ssub.s32 1, %s11
  %s14 = scalar_select 0, %s13, %s11
  $region1: #{asgcn_forward.3} parent=0
    #allocation2 [shape = 'u8[1024]{0}', space=vmem, size = 0x400, scoped, tag = 'output window, operand 0, single buffered']
    #allocation3 [shape = 's32[1]{0}', space=sflag, size = 0x4, scoped, tag = 'scoped memory for asgcn_forward.3']
    %15 = vsyncpa [#allocation3], 0
    // Predicated region
    $region2: #{asgcn_forward.3} parent=1 // pred_check
      _
    $region3: #{asgcn_forward.3} parent=1 // pred_check_branch
      %17 = sbr.rel (0) target = $region5
    $region4: #{asgcn_forward.3} parent=1 // pred_region
      _
    $region5: #{asgcn_forward.3} parent=1 // pred_fallthru
      _
    // Predicated region
    $region6: #{asgcn_forward.3} parent=1 // pred_check
      _
    $region7: #{asgcn_forward.3} parent=1 // pred_check_branch
      %19 = sbr.rel (0) target = $region9
    $region8: #{asgcn_forward.3} parent=1 // pred_region
      _
    $region9: #{asgcn_forward.3} parent=1 // pred_fallthru
      _
    // Predicated region
    $region10: #{asgcn_forward.3} parent=1 // pred_check
      _
    $region11: #{asgcn_forward.3} parent=1 // pred_check_branch
      %21 = sbr.rel (0) target = $region13
    $region12: #{asgcn_forward.3} parent=1 // pred_region
      _
    $region13: #{asgcn_forward.3} parent=1 // pred_fallthru
      _
    // Predicated region
    $region14: #{asgcn_forward.3} parent=1 // pred_check
      _
    $region15: #{asgcn_forward.3} parent=1 // pred_check_branch
      %23 = sbr.rel (0) target = $region17
    $region16: #{asgcn_forward.3} parent=1 // pred_region
      _
    $region17: #{asgcn_forward.3} parent=1 // pred_fallthru
      _
    // Predicated region
    $region18: #{asgcn_forward.3} parent=1 // pred_check
      _
    $region19: #{asgcn_forward.3} parent=1 // pred_check_branch
      %25 = sbr.rel (0) target = $region21
    $region20: #{asgcn_forward.3} parent=1 // pred_region
      _
    $region21: #{asgcn_forward.3} parent=1 // pred_fallthru
      _
    // Predicated region
    $region22: #{asgcn_forward.3} parent=1 // pred_check
      _
    $region23: #{asgcn_forward.3} parent=1 // pred_check_branch
      %27 = sbr.rel (0) target = $region25
    $region24: #{asgcn_forward.3} parent=1 // pred_region
      _
    $region25: #{asgcn_forward.3} parent=1 // pred_fallthru
      _
    // Predicated region
    $region26: #{asgcn_forward.3} parent=1 // pred_check
      _
    $region27: #{asgcn_forward.3} parent=1 // pred_check_branch
      %29 = sbr.rel (0) target = $region29
    $region28: #{asgcn_forward.3} parent=1 // pred_region
      _
    $region29: #{asgcn_forward.3} parent=1 // pred_fallthru
      _
    // Predicated region
    $region30: #{asgcn_forward.3} parent=1 // pred_check
      _
    $region31: #{asgcn_forward.3} parent=1 // pred_check_branch
      %31 = sbr.rel (0) target = $region33
    $region32: #{asgcn_forward.3} parent=1 // pred_region
      _
    $region33: #{asgcn_forward.3} parent=1 // pred_fallthru
      _
    // Predicated region
    $region34: #{asgcn_forward.3} parent=1 // pred_check
      _
    $region35: #{asgcn_forward.3} parent=1 // pred_check_branch
      %33 = sbr.rel (0) target = $region37
    $region36: #{asgcn_forward.3} parent=1 // pred_region
      _
    $region37: #{asgcn_forward.3} parent=1 // pred_fallthru
      _
    // Predicated region
    $region38: #{asgcn_forward.3} parent=1 // pred_check
      _
    $region39: #{asgcn_forward.3} parent=1 // pred_check_branch
      %35 = sbr.rel (0) target = $region41
    $region40: #{asgcn_forward.3} parent=1 // pred_region
      _
    $region41: #{asgcn_forward.3} parent=1 // pred_fallthru
      _
    %v37 = vld [vmem:[%s0] sm:$0xff]
    %v38 = vld [vmem:[%s0 + $0x8] sm:$0xff]
    %v39 = vld [vmem:[%s0 + $0x10] sm:$0xff]
    %v40 = vld [vmem:[%s0 + $0x18] sm:$0xff]
    %v41 = vld [vmem:[%s0 + $0x20] sm:$0xff]
    %v42 = vld [vmem:[%s0 + $0x28] sm:$0xff]
    %v43 = vld [vmem:[%s0 + $0x30] sm:$0xff]
    %v44 = vld [vmem:[%s0 + $0x38] sm:$0xff]
    %v45 = vld [vmem:[%s0 + $0x40] sm:$0xff]
    %v46 = vld [vmem:[%s0 + $0x48] sm:$0xff]
    %v47 = vld [vmem:[%s3] sm:$0xff]
    %v48 = vld [vmem:[%s3 + $0x8] sm:$0xff]
    %v49 = vpack.c.bf16 %v47, %v47
    %v50 = vpack.c.bf16 %v48, %v48
    %vm51 = vcmask 64512
    %v52 = vsel %vm51, %v47, 0.0
    %53 = vadd.xlane.f32.xlu0 %v52
    %v54 = vpop.xlane.xlu0 %53
    %v55 = vsel %vm51, %v48, 0.0
    %56 = vadd.xlane.f32.xlu0 %v55
    %v57 = vpop.xlane.xlu0 %56
    %v58 = vadd.f32 %v54, 1.0
    %v59 = vadd.f32 %v57, 1.0
    %v60 = vrcp.pop %v58
    %v61 = vrcp.pop %v59
    %v62 = vld [vmem:[%s1] sm:$0xff]
    %v63 = vld [vmem:[%s1 + $0x8] sm:$0xff]
    %v64 = vld [vmem:[%s2] sm:$0xff]
    %v65 = vld [vmem:[%s2 + $0x8] sm:$0xff]
    %67 = vset.pattern.permute.xlu0 0
    %68 = vperm.xlu0 %67, %v62
    %v69 = vpop.permute.xlu0 %68
    %72 = vset.pattern.permute.xlu0 0
    %73 = vperm.xlu0 %72, %v63
    %v74 = vpop.permute.xlu0 %73
    %v76 = vmul.f32 %v69, %v37
    %v77 = vmul.f32 %v69, %v38
    %v78 = vmul.f32 %v69, %v39
    %v79 = vmul.f32 %v69, %v40
    %v80 = vmul.f32 %v69, %v41
    %v81 = vmul.f32 %v74, %v42
    %v82 = vmul.f32 %v74, %v43
    %v83 = vmul.f32 %v74, %v44
    %v84 = vmul.f32 %v74, %v45
    %v85 = vmul.f32 %v74, %v46
    %v86 = vpack.c.bf16 %v81, %v76
    %v87 = vpack.c.bf16 %v82, %v77
    %v88 = vpack.c.bf16 %v83, %v78
    %v89 = vpack.c.bf16 %v84, %v79
    %v90 = vpack.c.bf16 %v85, %v80
    %v91 = vld [vmem:[%s4] sm:$0xff]
    %v92 = vld [vmem:[%s4 + $0x8] sm:$0xff]
    %v93 = vld [vmem:[%s4 + $0x10] sm:$0xf]
    %v94 = vld [vmem:[%s4 + $0x14] sm:$0xff]
    %v95 = vld [vmem:[%s4 + $0x1c] sm:$0xff]
    %v96 = vld [vmem:[%s4 + $0x24] sm:$0xf]
    %v97 = vld [vmem:[%s4 + $0x28] sm:$0xff]
    %v98 = vld [vmem:[%s4 + $0x30] sm:$0xff]
    %v99 = vld [vmem:[%s4 + $0x38] sm:$0xf]
    %v100 = vld [vmem:[%s4 + $0x3c] sm:$0xff]
    %v101 = vld [vmem:[%s4 + $0x44] sm:$0xff]
    %v102 = vld [vmem:[%s4 + $0x4c] sm:$0xf]
    %v103 = vld [vmem:[%s4 + $0x50] sm:$0xff]
    %v104 = vld [vmem:[%s4 + $0x58] sm:$0xff]
    %v105 = vld [vmem:[%s4 + $0x60] sm:$0xf]
    %v106 = vld [vmem:[%s4 + $0x64] sm:$0xff]
    %v107 = vld [vmem:[%s4 + $0x6c] sm:$0xff]
    %v108 = vld [vmem:[%s4 + $0x74] sm:$0xf]
    %v109 = vld [vmem:[%s4 + $0x78] sm:$0xff]
    %v110 = vld [vmem:[%s4 + $0x80] sm:$0xff]
    %v111 = vld [vmem:[%s4 + $0x88] sm:$0xf]
    %v112 = vld [vmem:[%s4 + $0x8c] sm:$0xff]
    %v113 = vld [vmem:[%s4 + $0x94] sm:$0xff]
    %v114 = vld [vmem:[%s4 + $0x9c] sm:$0xf]
    %v115 = vld [vmem:[%s4 + $0xa0] sm:$0xff]
    %v116 = vld [vmem:[%s4 + $0xa8] sm:$0xff]
    %v117 = vld [vmem:[%s4 + $0xb0] sm:$0xf]
    %v118 = vld [vmem:[%s4 + $0xb4] sm:$0xff]
    %v119 = vld [vmem:[%s4 + $0xbc] sm:$0xff]
    %v120 = vld [vmem:[%s4 + $0xc4] sm:$0xf]
    %v121 = vld [vmem:[%s4 + $0xc8] sm:$0xff]
    %v122 = vld [vmem:[%s4 + $0xd0] sm:$0xff]
    %v123 = vld [vmem:[%s4 + $0xd8] sm:$0xf]
    %v124 = vld [vmem:[%s4 + $0xdc] sm:$0xff]
    %v125 = vld [vmem:[%s4 + $0xe4] sm:$0xff]
    %v126 = vld [vmem:[%s4 + $0xec] sm:$0xf]
    %v127 = vld [vmem:[%s4 + $0xf0] sm:$0xff]
    %v128 = vld [vmem:[%s4 + $0xf8] sm:$0xff]
    %v129 = vld [vmem:[%s4 + $0x100] sm:$0xf]
    %v130 = vld [vmem:[%s4 + $0x104] sm:$0xff]
    %v131 = vld [vmem:[%s4 + $0x10c] sm:$0xff]
    %v132 = vld [vmem:[%s4 + $0x114] sm:$0xf]
    %v133 = vld [vmem:[%s4 + $0x118] sm:$0xff]
    %v134 = vld [vmem:[%s4 + $0x120] sm:$0xff]
    %v135 = vld [vmem:[%s4 + $0x128] sm:$0xf]
    %v136 = vld [vmem:[%s4 + $0x12c] sm:$0xff]
    %v137 = vld [vmem:[%s4 + $0x134] sm:$0xff]
    %v138 = vld [vmem:[%s4 + $0x13c] sm:$0xf]
    %v139 = vld [vmem:[%s4 + $0x140] sm:$0xff]
    %v140 = vld [vmem:[%s4 + $0x148] sm:$0xff]
    %v141 = vld [vmem:[%s4 + $0x150] sm:$0xf]
    %v142 = vld [vmem:[%s4 + $0x154] sm:$0xff]
    %v143 = vld [vmem:[%s4 + $0x15c] sm:$0xff]
    %v144 = vld [vmem:[%s4 + $0x164] sm:$0xf]
    %v145 = vld [vmem:[%s4 + $0x168] sm:$0xff]
    %v146 = vld [vmem:[%s4 + $0x170] sm:$0xff]
    %v147 = vld [vmem:[%s4 + $0x178] sm:$0xf]
    %v148 = vld [vmem:[%s4 + $0x17c] sm:$0xff]
    %v149 = vld [vmem:[%s4 + $0x184] sm:$0xff]
    %v150 = vld [vmem:[%s4 + $0x18c] sm:$0xf]
    %v151 = vld [vmem:[%s4 + $0x190] sm:$0xff]
    %v152 = vld [vmem:[%s4 + $0x198] sm:$0xff]
    %v153 = vld [vmem:[%s4 + $0x1a0] sm:$0xf]
    %v154 = vld [vmem:[%s4 + $0x1a4] sm:$0xff]
    %v155 = vld [vmem:[%s4 + $0x1ac] sm:$0xff]
    %v156 = vld [vmem:[%s4 + $0x1b4] sm:$0xf]
    %v157 = vld [vmem:[%s4 + $0x1b8] sm:$0xff]
    %v158 = vld [vmem:[%s4 + $0x1c0] sm:$0xff]
    %v159 = vld [vmem:[%s4 + $0x1c8] sm:$0xf]
    %v160 = vld [vmem:[%s4 + $0x1cc] sm:$0xff]
    %v161 = vld [vmem:[%s4 + $0x1d4] sm:$0xff]
    %v162 = vld [vmem:[%s4 + $0x1dc] sm:$0xf]
    %v163 = vld [vmem:[%s4 + $0x1e0] sm:$0xff]
    %v164 = vld [vmem:[%s4 + $0x1e8] sm:$0xff]
    %v165 = vld [vmem:[%s4 + $0x1f0] sm:$0xf]
    %v166 = vld [vmem:[%s4 + $0x1f4] sm:$0xff]
    %v167 = vld [vmem:[%s4 + $0x1fc] sm:$0xff]
    %v168 = vld [vmem:[%s4 + $0x204] sm:$0xf]
    %v169 = vld [vmem:[%s4 + $0x208] sm:$0xff]
    %v170 = vld [vmem:[%s4 + $0x210] sm:$0xff]
    %v171 = vld [vmem:[%s4 + $0x218] sm:$0xf]
    %v172 = vld [vmem:[%s4 + $0x21c] sm:$0xff]
    %v173 = vld [vmem:[%s4 + $0x224] sm:$0xff]
    %v174 = vld [vmem:[%s4 + $0x22c] sm:$0xf]
    %v175 = vld [vmem:[%s4 + $0x230] sm:$0xff]
    %v176 = vld [vmem:[%s4 + $0x238] sm:$0xff]
    %v177 = vld [vmem:[%s4 + $0x240] sm:$0xf]
    %v178 = vld [vmem:[%s4 + $0x244] sm:$0xff]
    %v179 = vld [vmem:[%s4 + $0x24c] sm:$0xff]
    %v180 = vld [vmem:[%s4 + $0x254] sm:$0xf]
    %v181 = vld [vmem:[%s4 + $0x258] sm:$0xff]
    %v182 = vld [vmem:[%s4 + $0x260] sm:$0xff]
    %v183 = vld [vmem:[%s4 + $0x268] sm:$0xf]
    %v184 = vld [vmem:[%s4 + $0x26c] sm:$0xff]
    %v185 = vld [vmem:[%s4 + $0x274] sm:$0xff]
    %v186 = vld [vmem:[%s4 + $0x27c] sm:$0xf]
    %v187 = vld [vmem:[%s4 + $0x280] sm:$0xff]
    %v188 = vld [vmem:[%s4 + $0x288] sm:$0xff]
    %v189 = vld [vmem:[%s4 + $0x290] sm:$0xf]
    %v190 = vld [vmem:[%s4 + $0x294] sm:$0xff]
    %v191 = vld [vmem:[%s4 + $0x29c] sm:$0xff]
    %v192 = vld [vmem:[%s4 + $0x2a4] sm:$0xf]
    %v193 = vld [vmem:[%s4 + $0x2a8] sm:$0xff]
    %v194 = vld [vmem:[%s4 + $0x2b0] sm:$0xff]
    %v195 = vld [vmem:[%s4 + $0x2b8] sm:$0xf]
    %v196 = vld [vmem:[%s4 + $0x2bc] sm:$0xff]
    %v197 = vld [vmem:[%s4 + $0x2c4] sm:$0xff]
    %v198 = vld [vmem:[%s4 + $0x2cc] sm:$0xf]
    %v199 = vld [vmem:[%s4 + $0x2d0] sm:$0xff]
    %v200 = vld [vmem:[%s4 + $0x2d8] sm:$0xff]
    %v201 = vld [vmem:[%s4 + $0x2e0] sm:$0xf]
    %v202 = vld [vmem:[%s4 + $0x2e4] sm:$0xff]
    %v203 = vld [vmem:[%s4 + $0x2ec] sm:$0xff]
    %v204 = vld [vmem:[%s4 + $0x2f4] sm:$0xf]
    %v205 = vld [vmem:[%s4 + $0x2f8] sm:$0xff]
    %v206 = vld [vmem:[%s4 + $0x300] sm:$0xff]
    %v207 = vld [vmem:[%s4 + $0x308] sm:$0xf]
    %v208 = vld [vmem:[%s4 + $0x30c] sm:$0xff]
    %v209 = vld [vmem:[%s4 + $0x314] sm:$0xff]
    %v210 = vld [vmem:[%s4 + $0x31c] sm:$0xf]
    %v211 = vld [vmem:[%s4 + $0x320] sm:$0xff]
    %v212 = vld [vmem:[%s4 + $0x328] sm:$0xff]
    %v213 = vld [vmem:[%s4 + $0x330] sm:$0xf]
    %v214 = vld [vmem:[%s4 + $0x334] sm:$0xff]
    %v215 = vld [vmem:[%s4 + $0x33c] sm:$0xff]
    %v216 = vld [vmem:[%s4 + $0x344] sm:$0xf]
    %v217 = vld [vmem:[%s4 + $0x348] sm:$0xff]
    %v218 = vld [vmem:[%s4 + $0x350] sm:$0xff]
    %v219 = vld [vmem:[%s4 + $0x358] sm:$0xf]
    %v220 = vld [vmem:[%s4 + $0x35c] sm:$0xff]
    %v221 = vld [vmem:[%s4 + $0x364] sm:$0xff]
    %v222 = vld [vmem:[%s4 + $0x36c] sm:$0xf]
    %v223 = vld [vmem:[%s4 + $0x370] sm:$0xff]
    %v224 = vld [vmem:[%s4 + $0x378] sm:$0xff]
    %v225 = vld [vmem:[%s4 + $0x380] sm:$0xf]
    %v226 = vld [vmem:[%s4 + $0x384] sm:$0xff]
    %v227 = vld [vmem:[%s4 + $0x38c] sm:$0xff]
    %v228 = vld [vmem:[%s4 + $0x394] sm:$0xf]
    %v229 = vld [vmem:[%s4 + $0x398] sm:$0xff]
    %v230 = vld [vmem:[%s4 + $0x3a0] sm:$0xff]
    %v231 = vld [vmem:[%s4 + $0x3a8] sm:$0xf]
    %v232 = vld [vmem:[%s4 + $0x3ac] sm:$0xff]
    %v233 = vld [vmem:[%s4 + $0x3b4] sm:$0xff]
    %v234 = vld [vmem:[%s4 + $0x3bc] sm:$0xf]
    %v235 = vld [vmem:[%s4 + $0x3c0] sm:$0xff]
    %v236 = vld [vmem:[%s4 + $0x3c8] sm:$0xff]
    %v237 = vld [vmem:[%s4 + $0x3d0] sm:$0xf]
    %v238 = vld [vmem:[%s4 + $0x3d4] sm:$0xff]
    %v239 = vld [vmem:[%s4 + $0x3dc] sm:$0xff]
    %v240 = vld [vmem:[%s4 + $0x3e4] sm:$0xf]
    %v241 = vld [vmem:[%s4 + $0x3e8] sm:$0xff]
    %v242 = vld [vmem:[%s4 + $0x3f0] sm:$0xff]
    %v243 = vld [vmem:[%s4 + $0x3f8] sm:$0xf]
    %v244 = vld [vmem:[%s4 + $0x3fc] sm:$0xff]
    %v245 = vld [vmem:[%s4 + $0x404] sm:$0xff]
    %v246 = vld [vmem:[%s4 + $0x40c] sm:$0xf]
    %v247 = vld [vmem:[%s4 + $0x410] sm:$0xff]
    %v248 = vld [vmem:[%s4 + $0x418] sm:$0xff]
    %v249 = vld [vmem:[%s4 + $0x420] sm:$0xf]
    %v250 = vld [vmem:[%s4 + $0x424] sm:$0xff]
    %v251 = vld [vmem:[%s4 + $0x42c] sm:$0xff]
    %v252 = vld [vmem:[%s4 + $0x434] sm:$0xf]
    %v253 = vld [vmem:[%s4 + $0x438] sm:$0xff]
    %v254 = vld [vmem:[%s4 + $0x440] sm:$0xff]
    %v255 = vld [vmem:[%s4 + $0x448] sm:$0xf]
    %v256 = vld [vmem:[%s4 + $0x44c] sm:$0xff]
    %v257 = vld [vmem:[%s4 + $0x454] sm:$0xff]
    %v258 = vld [vmem:[%s4 + $0x45c] sm:$0xf]
    %v259 = vld [vmem:[%s4 + $0x460] sm:$0xff]
    %v260 = vld [vmem:[%s4 + $0x468] sm:$0xff]
    %v261 = vld [vmem:[%s4 + $0x470] sm:$0xf]
    %v262 = vld [vmem:[%s4 + $0x474] sm:$0xff]
    %v263 = vld [vmem:[%s4 + $0x47c] sm:$0xff]
    %v264 = vld [vmem:[%s4 + $0x484] sm:$0xf]
    %v265 = vld [vmem:[%s4 + $0x488] sm:$0xff]
    %v266 = vld [vmem:[%s4 + $0x490] sm:$0xff]
    %v267 = vld [vmem:[%s4 + $0x498] sm:$0xf]
    %v268 = vld [vmem:[%s4 + $0x49c] sm:$0xff]
    %v269 = vld [vmem:[%s4 + $0x4a4] sm:$0xff]
    %v270 = vld [vmem:[%s4 + $0x4ac] sm:$0xf]
    %v271 = vld [vmem:[%s4 + $0x4b0] sm:$0xff]
    %v272 = vld [vmem:[%s4 + $0x4b8] sm:$0xff]
    %v273 = vld [vmem:[%s4 + $0x4c0] sm:$0xf]
    %v274 = vld [vmem:[%s4 + $0x4c4] sm:$0xff]
    %v275 = vld [vmem:[%s4 + $0x4cc] sm:$0xff]
    %v276 = vld [vmem:[%s4 + $0x4d4] sm:$0xf]
    %v277 = vld [vmem:[%s4 + $0x4d8] sm:$0xff]
    %v278 = vld [vmem:[%s4 + $0x4e0] sm:$0xff]
    %v279 = vld [vmem:[%s4 + $0x4e8] sm:$0xf]
    %v280 = vld [vmem:[%s4 + $0x4ec] sm:$0xff]
    %v281 = vld [vmem:[%s4 + $0x4f4] sm:$0xff]
    %v282 = vld [vmem:[%s4 + $0x4fc] sm:$0xf]
    %v283 = vld [vmem:[%s4 + $0x500] sm:$0xff]
    %v284 = vld [vmem:[%s4 + $0x508] sm:$0xff]
    %v285 = vld [vmem:[%s4 + $0x510] sm:$0xf]
    %v286 = vld [vmem:[%s4 + $0x514] sm:$0xff]
    %v287 = vld [vmem:[%s4 + $0x51c] sm:$0xff]
    %v288 = vld [vmem:[%s4 + $0x524] sm:$0xf]
    %v289 = vld [vmem:[%s4 + $0x528] sm:$0xff]
    %v290 = vld [vmem:[%s4 + $0x530] sm:$0xff]
    %v291 = vld [vmem:[%s4 + $0x538] sm:$0xf]
    %v292 = vld [vmem:[%s4 + $0x53c] sm:$0xff]
    %v293 = vld [vmem:[%s4 + $0x544] sm:$0xff]
    %v294 = vld [vmem:[%s4 + $0x54c] sm:$0xf]
    %v295 = vld [vmem:[%s4 + $0x550] sm:$0xff]
    %v296 = vld [vmem:[%s4 + $0x558] sm:$0xff]
    %v297 = vld [vmem:[%s4 + $0x560] sm:$0xf]
    %v298 = vld [vmem:[%s4 + $0x564] sm:$0xff]
    %v299 = vld [vmem:[%s4 + $0x56c] sm:$0xff]
    %v300 = vld [vmem:[%s4 + $0x574] sm:$0xf]
    %v301 = vld [vmem:[%s4 + $0x578] sm:$0xff]
    %v302 = vld [vmem:[%s4 + $0x580] sm:$0xff]
    %v303 = vld [vmem:[%s4 + $0x588] sm:$0xf]
    %v304 = vld [vmem:[%s4 + $0x58c] sm:$0xff]
    %v305 = vld [vmem:[%s4 + $0x594] sm:$0xff]
    %v306 = vld [vmem:[%s4 + $0x59c] sm:$0xf]
    %v307 = vld [vmem:[%s4 + $0x5a0] sm:$0xff]
    %v308 = vld [vmem:[%s4 + $0x5a8] sm:$0xff]
    %v309 = vld [vmem:[%s4 + $0x5b0] sm:$0xf]
    %v310 = vld [vmem:[%s4 + $0x5b4] sm:$0xff]
    %v311 = vld [vmem:[%s4 + $0x5bc] sm:$0xff]
    %v312 = vld [vmem:[%s4 + $0x5c4] sm:$0xf]
    %v313 = vld [vmem:[%s4 + $0x5c8] sm:$0xff]
    %v314 = vld [vmem:[%s4 + $0x5d0] sm:$0xff]
    %v315 = vld [vmem:[%s4 + $0x5d8] sm:$0xf]
    %v316 = vld [vmem:[%s4 + $0x5dc] sm:$0xff]
    %v317 = vld [vmem:[%s4 + $0x5e4] sm:$0xff]
    %v318 = vld [vmem:[%s4 + $0x5ec] sm:$0xf]
    %v319 = vld [vmem:[%s4 + $0x5f0] sm:$0xff]
    %v320 = vld [vmem:[%s4 + $0x5f8] sm:$0xff]
    %v321 = vld [vmem:[%s4 + $0x600] sm:$0xf]
    %v322 = vld [vmem:[%s4 + $0x604] sm:$0xff]
    %v323 = vld [vmem:[%s4 + $0x60c] sm:$0xff]
    %v324 = vld [vmem:[%s4 + $0x614] sm:$0xf]
    %v325 = vld [vmem:[%s4 + $0x618] sm:$0xff]
    %v326 = vld [vmem:[%s4 + $0x620] sm:$0xff]
    %v327 = vld [vmem:[%s4 + $0x628] sm:$0xf]
    %v328 = vld [vmem:[%s4 + $0x62c] sm:$0xff]
    %v329 = vld [vmem:[%s4 + $0x634] sm:$0xff]
    %v330 = vld [vmem:[%s4 + $0x63c] sm:$0xf]
    %v571 = vunpack.c.l.b16 %v91
    %v572 = vunpack.c.h.b16 %v91
    %v573 = vunpack.c.l.b16 %v92
    %v574 = vunpack.c.h.b16 %v92
    %v575 = vunpack.c.l.b16 %v93
    %v576 = vunpack.c.l.b16 %v94
    %v577 = vunpack.c.h.b16 %v94
    %v578 = vunpack.c.l.b16 %v95
    %v579 = vunpack.c.h.b16 %v95
    %v580 = vunpack.c.l.b16 %v96
    %v581 = vunpack.c.l.b16 %v97
    %v582 = vunpack.c.h.b16 %v97
    %v583 = vunpack.c.l.b16 %v98
    %v584 = vunpack.c.h.b16 %v98
    %v585 = vunpack.c.l.b16 %v99
    %v586 = vunpack.c.l.b16 %v100
    %v587 = vunpack.c.h.b16 %v100
    %v588 = vunpack.c.l.b16 %v101
    %v589 = vunpack.c.h.b16 %v101
    %v590 = vunpack.c.l.b16 %v102
    %v591 = vunpack.c.l.b16 %v103
    %v592 = vunpack.c.h.b16 %v103
    %v593 = vunpack.c.l.b16 %v104
    %v594 = vunpack.c.h.b16 %v104
    %v595 = vunpack.c.l.b16 %v105
    %v596 = vunpack.c.l.b16 %v106
    %v597 = vunpack.c.h.b16 %v106
    %v598 = vunpack.c.l.b16 %v107
    %v599 = vunpack.c.h.b16 %v107
    %v600 = vunpack.c.l.b16 %v108
    %v601 = vunpack.c.l.b16 %v109
    %v602 = vunpack.c.h.b16 %v109
    %v603 = vunpack.c.l.b16 %v110
    %v604 = vunpack.c.h.b16 %v110
    %v605 = vunpack.c.l.b16 %v111
    %v606 = vunpack.c.l.b16 %v112
    %v607 = vunpack.c.h.b16 %v112
    %v608 = vunpack.c.l.b16 %v113
    %v609 = vunpack.c.h.b16 %v113
    %v610 = vunpack.c.l.b16 %v114
    %v611 = vunpack.c.l.b16 %v115
    %v612 = vunpack.c.h.b16 %v115
    %v613 = vunpack.c.l.b16 %v116
    %v614 = vunpack.c.h.b16 %v116
    %v615 = vunpack.c.l.b16 %v117
    %v616 = vunpack.c.l.b16 %v118
    %v617 = vunpack.c.h.b16 %v118
    %v618 = vunpack.c.l.b16 %v119
    %v619 = vunpack.c.h.b16 %v119
    %v620 = vunpack.c.l.b16 %v120
    %v621 = vunpack.c.l.b16 %v121
    %v622 = vunpack.c.h.b16 %v121
    %v623 = vunpack.c.l.b16 %v122
    %v624 = vunpack.c.h.b16 %v122
    %v625 = vunpack.c.l.b16 %v123
    %v626 = vunpack.c.l.b16 %v124
    %v627 = vunpack.c.h.b16 %v124
    %v628 = vunpack.c.l.b16 %v125
    %v629 = vunpack.c.h.b16 %v125
    %v630 = vunpack.c.l.b16 %v126
    %v631 = vunpack.c.l.b16 %v127
    %v632 = vunpack.c.h.b16 %v127
    %v633 = vunpack.c.l.b16 %v128
    %v634 = vunpack.c.h.b16 %v128
    %v635 = vunpack.c.l.b16 %v129
    %v636 = vunpack.c.l.b16 %v130
    %v637 = vunpack.c.h.b16 %v130
    %v638 = vunpack.c.l.b16 %v131
    %v639 = vunpack.c.h.b16 %v131
    %v640 = vunpack.c.l.b16 %v132
    %v641 = vunpack.c.l.b16 %v133
    %v642 = vunpack.c.h.b16 %v133
    %v643 = vunpack.c.l.b16 %v134
    %v644 = vunpack.c.h.b16 %v134
    %v645 = vunpack.c.l.b16 %v135
    %v646 = vunpack.c.l.b16 %v136
    %v647 = vunpack.c.h.b16 %v136
    %v648 = vunpack.c.l.b16 %v137
    %v649 = vunpack.c.h.b16 %v137
    %v650 = vunpack.c.l.b16 %v138
    %v651 = vunpack.c.l.b16 %v139
    %v652 = vunpack.c.h.b16 %v139
    %v653 = vunpack.c.l.b16 %v140
    %v654 = vunpack.c.h.b16 %v140
    %v655 = vunpack.c.l.b16 %v141
    %v656 = vunpack.c.l.b16 %v142
    %v657 = vunpack.c.h.b16 %v142
    %v658 = vunpack.c.l.b16 %v143
    %v659 = vunpack.c.h.b16 %v143
    %v660 = vunpack.c.l.b16 %v144
    %v661 = vunpack.c.l.b16 %v145
    %v662 = vunpack.c.h.b16 %v145
    %v663 = vunpack.c.l.b16 %v146
    %v664 = vunpack.c.h.b16 %v146
    %v665 = vunpack.c.l.b16 %v147
    %v666 = vunpack.c.l.b16 %v148
    %v667 = vunpack.c.h.b16 %v148
    %v668 = vunpack.c.l.b16 %v149
    %v669 = vunpack.c.h.b16 %v149
    %v670 = vunpack.c.l.b16 %v150
    %v671 = vunpack.c.l.b16 %v151
    %v672 = vunpack.c.h.b16 %v151
    %v673 = vunpack.c.l.b16 %v152
    %v674 = vunpack.c.h.b16 %v152
    %v675 = vunpack.c.l.b16 %v153
    %v676 = vunpack.c.l.b16 %v154
    %v677 = vunpack.c.h.b16 %v154
    %v678 = vunpack.c.l.b16 %v155
    %v679 = vunpack.c.h.b16 %v155
    %v680 = vunpack.c.l.b16 %v156
    %v681 = vunpack.c.l.b16 %v157
    %v682 = vunpack.c.h.b16 %v157
    %v683 = vunpack.c.l.b16 %v158
    %v684 = vunpack.c.h.b16 %v158
    %v685 = vunpack.c.l.b16 %v159
    %v686 = vunpack.c.l.b16 %v160
    %v687 = vunpack.c.h.b16 %v160
    %v688 = vunpack.c.l.b16 %v161
    %v689 = vunpack.c.h.b16 %v161
    %v690 = vunpack.c.l.b16 %v162
    %v691 = vunpack.c.l.b16 %v163
    %v692 = vunpack.c.h.b16 %v163
    %v693 = vunpack.c.l.b16 %v164
    %v694 = vunpack.c.h.b16 %v164
    %v695 = vunpack.c.l.b16 %v165
    %v696 = vunpack.c.l.b16 %v166
    %v697 = vunpack.c.h.b16 %v166
    %v698 = vunpack.c.l.b16 %v167
    %v699 = vunpack.c.h.b16 %v167
    %v700 = vunpack.c.l.b16 %v168
    %v701 = vunpack.c.l.b16 %v169
    %v702 = vunpack.c.h.b16 %v169
    %v703 = vunpack.c.l.b16 %v170
    %v704 = vunpack.c.h.b16 %v170
    %v705 = vunpack.c.l.b16 %v171
    %v706 = vunpack.c.l.b16 %v172
    %v707 = vunpack.c.h.b16 %v172
    %v708 = vunpack.c.l.b16 %v173
    %v709 = vunpack.c.h.b16 %v173
    %v710 = vunpack.c.l.b16 %v174
    %v711 = vunpack.c.l.b16 %v175
    %v712 = vunpack.c.h.b16 %v175
    %v713 = vunpack.c.l.b16 %v176
    %v714 = vunpack.c.h.b16 %v176
    %v715 = vunpack.c.l.b16 %v177
    %v716 = vunpack.c.l.b16 %v178
    %v717 = vunpack.c.h.b16 %v178
    %v718 = vunpack.c.l.b16 %v179
    %v719 = vunpack.c.h.b16 %v179
    %v720 = vunpack.c.l.b16 %v180
    %v721 = vunpack.c.l.b16 %v181
    %v722 = vunpack.c.h.b16 %v181
    %v723 = vunpack.c.l.b16 %v182
    %v724 = vunpack.c.h.b16 %v182
    %v725 = vunpack.c.l.b16 %v183
    %v726 = vunpack.c.l.b16 %v184
    %v727 = vunpack.c.h.b16 %v184
    %v728 = vunpack.c.l.b16 %v185
    %v729 = vunpack.c.h.b16 %v185
    %v730 = vunpack.c.l.b16 %v186
    %v731 = vunpack.c.l.b16 %v187
    %v732 = vunpack.c.h.b16 %v187
    %v733 = vunpack.c.l.b16 %v188
    %v734 = vunpack.c.h.b16 %v188
    %v735 = vunpack.c.l.b16 %v189
    %v736 = vunpack.c.l.b16 %v190
    %v737 = vunpack.c.h.b16 %v190
    %v738 = vunpack.c.l.b16 %v191
    %v739 = vunpack.c.h.b16 %v191
    %v740 = vunpack.c.l.b16 %v192
    %v741 = vunpack.c.l.b16 %v193
    %v742 = vunpack.c.h.b16 %v193
    %v743 = vunpack.c.l.b16 %v194
    %v744 = vunpack.c.h.b16 %v194
    %v745 = vunpack.c.l.b16 %v195
    %v746 = vunpack.c.l.b16 %v196
    %v747 = vunpack.c.h.b16 %v196
    %v748 = vunpack.c.l.b16 %v197
    %v749 = vunpack.c.h.b16 %v197
    %v750 = vunpack.c.l.b16 %v198
    %v751 = vunpack.c.l.b16 %v199
    %v752 = vunpack.c.h.b16 %v199
    %v753 = vunpack.c.l.b16 %v200
    %v754 = vunpack.c.h.b16 %v200
    %v755 = vunpack.c.l.b16 %v201
    %v756 = vunpack.c.l.b16 %v202
    %v757 = vunpack.c.h.b16 %v202
    %v758 = vunpack.c.l.b16 %v203
    %v759 = vunpack.c.h.b16 %v203
    %v760 = vunpack.c.l.b16 %v204
    %v761 = vunpack.c.l.b16 %v205
    %v762 = vunpack.c.h.b16 %v205
    %v763 = vunpack.c.l.b16 %v206
    %v764 = vunpack.c.h.b16 %v206
    %v765 = vunpack.c.l.b16 %v207
    %v766 = vunpack.c.l.b16 %v208
    %v767 = vunpack.c.h.b16 %v208
    %v768 = vunpack.c.l.b16 %v209
    %v769 = vunpack.c.h.b16 %v209
    %v770 = vunpack.c.l.b16 %v210
    %v771 = vunpack.c.l.b16 %v211
    %v772 = vunpack.c.h.b16 %v211
    %v773 = vunpack.c.l.b16 %v212
    %v774 = vunpack.c.h.b16 %v212
    %v775 = vunpack.c.l.b16 %v213
    %v776 = vunpack.c.l.b16 %v214
    %v777 = vunpack.c.h.b16 %v214
    %v778 = vunpack.c.l.b16 %v215
    %v779 = vunpack.c.h.b16 %v215
    %v780 = vunpack.c.l.b16 %v216
    %v781 = vunpack.c.l.b16 %v217
    %v782 = vunpack.c.h.b16 %v217
    %v783 = vunpack.c.l.b16 %v218
    %v784 = vunpack.c.h.b16 %v218
    %v785 = vunpack.c.l.b16 %v219
    %v786 = vunpack.c.l.b16 %v220
    %v787 = vunpack.c.h.b16 %v220
    %v788 = vunpack.c.l.b16 %v221
    %v789 = vunpack.c.h.b16 %v221
    %v790 = vunpack.c.l.b16 %v222
    %v791 = vunpack.c.l.b16 %v223
    %v792 = vunpack.c.h.b16 %v223
    %v793 = vunpack.c.l.b16 %v224
    %v794 = vunpack.c.h.b16 %v224
    %v795 = vunpack.c.l.b16 %v225
    %v796 = vunpack.c.l.b16 %v226
    %v797 = vunpack.c.h.b16 %v226
    %v798 = vunpack.c.l.b16 %v227
    %v799 = vunpack.c.h.b16 %v227
    %v800 = vunpack.c.l.b16 %v228
    %v801 = vunpack.c.l.b16 %v229
    %v802 = vunpack.c.h.b16 %v229
    %v803 = vunpack.c.l.b16 %v230
    %v804 = vunpack.c.h.b16 %v230
    %v805 = vunpack.c.l.b16 %v231
    %v806 = vunpack.c.l.b16 %v232
    %v807 = vunpack.c.h.b16 %v232
    %v808 = vunpack.c.l.b16 %v233
    %v809 = vunpack.c.h.b16 %v233
    %v810 = vunpack.c.l.b16 %v234
    %v811 = vunpack.c.l.b16 %v235
    %v812 = vunpack.c.h.b16 %v235
    %v813 = vunpack.c.l.b16 %v236
    %v814 = vunpack.c.h.b16 %v236
    %v815 = vunpack.c.l.b16 %v237
    %v816 = vunpack.c.l.b16 %v238
    %v817 = vunpack.c.h.b16 %v238
    %v818 = vunpack.c.l.b16 %v239
    %v819 = vunpack.c.h.b16 %v239
    %v820 = vunpack.c.l.b16 %v240
    %v821 = vunpack.c.l.b16 %v241
    %v822 = vunpack.c.h.b16 %v241
    %v823 = vunpack.c.l.b16 %v242
    %v824 = vunpack.c.h.b16 %v242
    %v825 = vunpack.c.l.b16 %v243
    %v826 = vunpack.c.l.b16 %v244
    %v827 = vunpack.c.h.b16 %v244
    %v828 = vunpack.c.l.b16 %v245
    %v829 = vunpack.c.h.b16 %v245
    %v830 = vunpack.c.l.b16 %v246
    %v831 = vunpack.c.l.b16 %v247
    %v832 = vunpack.c.h.b16 %v247
    %v833 = vunpack.c.l.b16 %v248
    %v834 = vunpack.c.h.b16 %v248
    %v835 = vunpack.c.l.b16 %v249
    %v836 = vunpack.c.l.b16 %v250
    %v837 = vunpack.c.h.b16 %v250
    %v838 = vunpack.c.l.b16 %v251
    %v839 = vunpack.c.h.b16 %v251
    %v840 = vunpack.c.l.b16 %v252
    %v841 = vunpack.c.l.b16 %v253
    %v842 = vunpack.c.h.b16 %v253
    %v843 = vunpack.c.l.b16 %v254
    %v844 = vunpack.c.h.b16 %v254
    %v845 = vunpack.c.l.b16 %v255
    %v846 = vunpack.c.l.b16 %v256
    %v847 = vunpack.c.h.b16 %v256
    %v848 = vunpack.c.l.b16 %v257
    %v849 = vunpack.c.h.b16 %v257
    %v850 = vunpack.c.l.b16 %v258
    %v851 = vunpack.c.l.b16 %v259
    %v852 = vunpack.c.h.b16 %v259
    %v853 = vunpack.c.l.b16 %v260
    %v854 = vunpack.c.h.b16 %v260
    %v855 = vunpack.c.l.b16 %v261
    %v856 = vunpack.c.l.b16 %v262
    %v857 = vunpack.c.h.b16 %v262
    %v858 = vunpack.c.l.b16 %v263
    %v859 = vunpack.c.h.b16 %v263
    %v860 = vunpack.c.l.b16 %v264
    %v861 = vunpack.c.l.b16 %v265
    %v862 = vunpack.c.h.b16 %v265
    %v863 = vunpack.c.l.b16 %v266
    %v864 = vunpack.c.h.b16 %v266
    %v865 = vunpack.c.l.b16 %v267
    %v866 = vunpack.c.l.b16 %v268
    %v867 = vunpack.c.h.b16 %v268
    %v868 = vunpack.c.l.b16 %v269
    %v869 = vunpack.c.h.b16 %v269
    %v870 = vunpack.c.l.b16 %v270
    %v871 = vunpack.c.l.b16 %v271
    %v872 = vunpack.c.h.b16 %v271
    %v873 = vunpack.c.l.b16 %v272
    %v874 = vunpack.c.h.b16 %v272
    %v875 = vunpack.c.l.b16 %v273
    %v876 = vunpack.c.l.b16 %v274
    %v877 = vunpack.c.h.b16 %v274
    %v878 = vunpack.c.l.b16 %v275
    %v879 = vunpack.c.h.b16 %v275
    %v880 = vunpack.c.l.b16 %v276
    %v881 = vunpack.c.l.b16 %v277
    %v882 = vunpack.c.h.b16 %v277
    %v883 = vunpack.c.l.b16 %v278
    %v884 = vunpack.c.h.b16 %v278
    %v885 = vunpack.c.l.b16 %v279
    %v886 = vunpack.c.l.b16 %v280
    %v887 = vunpack.c.h.b16 %v280
    %v888 = vunpack.c.l.b16 %v281
    %v889 = vunpack.c.h.b16 %v281
    %v890 = vunpack.c.l.b16 %v282
    %v891 = vunpack.c.l.b16 %v283
    %v892 = vunpack.c.h.b16 %v283
    %v893 = vunpack.c.l.b16 %v284
    %v894 = vunpack.c.h.b16 %v284
    %v895 = vunpack.c.l.b16 %v285
    %v896 = vunpack.c.l.b16 %v286
    %v897 = vunpack.c.h.b16 %v286
    %v898 = vunpack.c.l.b16 %v287
    %v899 = vunpack.c.h.b16 %v287
    %v900 = vunpack.c.l.b16 %v288
    %v901 = vunpack.c.l.b16 %v289
    %v902 = vunpack.c.h.b16 %v289
    %v903 = vunpack.c.l.b16 %v290
    %v904 = vunpack.c.h.b16 %v290
    %v905 = vunpack.c.l.b16 %v291
    %v906 = vunpack.c.l.b16 %v292
    %v907 = vunpack.c.h.b16 %v292
    %v908 = vunpack.c.l.b16 %v293
    %v909 = vunpack.c.h.b16 %v293
    %v910 = vunpack.c.l.b16 %v294
    %v911 = vunpack.c.l.b16 %v295
    %v912 = vunpack.c.h.b16 %v295
    %v913 = vunpack.c.l.b16 %v296
    %v914 = vunpack.c.h.b16 %v296
    %v915 = vunpack.c.l.b16 %v297
    %v916 = vunpack.c.l.b16 %v298
    %v917 = vunpack.c.h.b16 %v298
    %v918 = vunpack.c.l.b16 %v299
    %v919 = vunpack.c.h.b16 %v299
    %v920 = vunpack.c.l.b16 %v300
    %v921 = vunpack.c.l.b16 %v301
    %v922 = vunpack.c.h.b16 %v301
    %v923 = vunpack.c.l.b16 %v302
    %v924 = vunpack.c.h.b16 %v302
    %v925 = vunpack.c.l.b16 %v303
    %v926 = vunpack.c.l.b16 %v304
    %v927 = vunpack.c.h.b16 %v304
    %v928 = vunpack.c.l.b16 %v305
    %v929 = vunpack.c.h.b16 %v305
    %v930 = vunpack.c.l.b16 %v306
    %v931 = vunpack.c.l.b16 %v307
    %v932 = vunpack.c.h.b16 %v307
    %v933 = vunpack.c.l.b16 %v308
    %v934 = vunpack.c.h.b16 %v308
    %v935 = vunpack.c.l.b16 %v309
    %v936 = vunpack.c.l.b16 %v310
    %v937 = vunpack.c.h.b16 %v310
    %v938 = vunpack.c.l.b16 %v311
    %v939 = vunpack.c.h.b16 %v311
    %v940 = vunpack.c.l.b16 %v312
    %v941 = vunpack.c.l.b16 %v313
    %v942 = vunpack.c.h.b16 %v313
    %v943 = vunpack.c.l.b16 %v314
    %v944 = vunpack.c.h.b16 %v314
    %v945 = vunpack.c.l.b16 %v315
    %v946 = vunpack.c.l.b16 %v316
    %v947 = vunpack.c.h.b16 %v316
    %v948 = vunpack.c.l.b16 %v317
    %v949 = vunpack.c.h.b16 %v317
    %v950 = vunpack.c.l.b16 %v318
    %v951 = vunpack.c.l.b16 %v319
    %v952 = vunpack.c.h.b16 %v319
    %v953 = vunpack.c.l.b16 %v320
    %v954 = vunpack.c.h.b16 %v320
    %v955 = vunpack.c.l.b16 %v321
    %v956 = vunpack.c.l.b16 %v322
    %v957 = vunpack.c.h.b16 %v322
    %v958 = vunpack.c.l.b16 %v323
    %v959 = vunpack.c.h.b16 %v323
    %v960 = vunpack.c.l.b16 %v324
    %v961 = vunpack.c.l.b16 %v325
    %v962 = vunpack.c.h.b16 %v325
    %v963 = vunpack.c.l.b16 %v326
    %v964 = vunpack.c.h.b16 %v326
    %v965 = vunpack.c.l.b16 %v327
    %v966 = vunpack.c.l.b16 %v328
    %v967 = vunpack.c.h.b16 %v328
    %v968 = vunpack.c.l.b16 %v329
    %v969 = vunpack.c.h.b16 %v329
    %v970 = vunpack.c.l.b16 %v330
    %v971 = vpack.c.b16 %v576, %v571
    %v972 = vpack.c.b16 %v577, %v572
    %v973 = vpack.c.b16 %v578, %v573
    %v974 = vpack.c.b16 %v579, %v574
    %v975 = vpack.c.b16 %v580, %v575
    %v976 = vpack.c.b16 %v586, %v581
    %v977 = vpack.c.b16 %v587, %v582
    %v978 = vpack.c.b16 %v588, %v583
    %v979 = vpack.c.b16 %v589, %v584
    %v980 = vpack.c.b16 %v590, %v585
    %v981 = vpack.c.b16 %v596, %v591
    %v982 = vpack.c.b16 %v597, %v592
    %v983 = vpack.c.b16 %v598, %v593
    %v984 = vpack.c.b16 %v599, %v594
    %v985 = vpack.c.b16 %v600, %v595
    %v986 = vpack.c.b16 %v606, %v601
    %v987 = vpack.c.b16 %v607, %v602
    %v988 = vpack.c.b16 %v608, %v603
    %v989 = vpack.c.b16 %v609, %v604
    %v990 = vpack.c.b16 %v610, %v605
    %v991 = vpack.c.b16 %v616, %v611
    %v992 = vpack.c.b16 %v617, %v612
    %v993 = vpack.c.b16 %v618, %v613
    %v994 = vpack.c.b16 %v619, %v614
    %v995 = vpack.c.b16 %v620, %v615
    %v996 = vpack.c.b16 %v626, %v621
    %v997 = vpack.c.b16 %v627, %v622
    %v998 = vpack.c.b16 %v628, %v623
    %v999 = vpack.c.b16 %v629, %v624
    %v1000 = vpack.c.b16 %v630, %v625
    %v1001 = vpack.c.b16 %v636, %v631
    %v1002 = vpack.c.b16 %v637, %v632
    %v1003 = vpack.c.b16 %v638, %v633
    %v1004 = vpack.c.b16 %v639, %v634
    %v1005 = vpack.c.b16 %v640, %v635
    %v1006 = vpack.c.b16 %v646, %v641
    %v1007 = vpack.c.b16 %v647, %v642
    %v1008 = vpack.c.b16 %v648, %v643
    %v1009 = vpack.c.b16 %v649, %v644
    %v1010 = vpack.c.b16 %v650, %v645
    %v1011 = vpack.c.b16 %v656, %v651
    %v1012 = vpack.c.b16 %v657, %v652
    %v1013 = vpack.c.b16 %v658, %v653
    %v1014 = vpack.c.b16 %v659, %v654
    %v1015 = vpack.c.b16 %v660, %v655
    %v1016 = vpack.c.b16 %v666, %v661
    %v1017 = vpack.c.b16 %v667, %v662
    %v1018 = vpack.c.b16 %v668, %v663
    %v1019 = vpack.c.b16 %v669, %v664
    %v1020 = vpack.c.b16 %v670, %v665
    %v1021 = vpack.c.b16 %v676, %v671
    %v1022 = vpack.c.b16 %v677, %v672
    %v1023 = vpack.c.b16 %v678, %v673
    %v1024 = vpack.c.b16 %v679, %v674
    %v1025 = vpack.c.b16 %v680, %v675
    %v1026 = vpack.c.b16 %v686, %v681
    %v1027 = vpack.c.b16 %v687, %v682
    %v1028 = vpack.c.b16 %v688, %v683
    %v1029 = vpack.c.b16 %v689, %v684
    %v1030 = vpack.c.b16 %v690, %v685
    %v1031 = vpack.c.b16 %v696, %v691
    %v1032 = vpack.c.b16 %v697, %v692
    %v1033 = vpack.c.b16 %v698, %v693
    %v1034 = vpack.c.b16 %v699, %v694
    %v1035 = vpack.c.b16 %v700, %v695
    %v1036 = vpack.c.b16 %v706, %v701
    %v1037 = vpack.c.b16 %v707, %v702
    %v1038 = vpack.c.b16 %v708, %v703
    %v1039 = vpack.c.b16 %v709, %v704
    %v1040 = vpack.c.b16 %v710, %v705
    %v1041 = vpack.c.b16 %v716, %v711
    %v1042 = vpack.c.b16 %v717, %v712
    %v1043 = vpack.c.b16 %v718, %v713
    %v1044 = vpack.c.b16 %v719, %v714
    %v1045 = vpack.c.b16 %v720, %v715
    %v1046 = vpack.c.b16 %v726, %v721
    %v1047 = vpack.c.b16 %v727, %v722
    %v1048 = vpack.c.b16 %v728, %v723
    %v1049 = vpack.c.b16 %v729, %v724
    %v1050 = vpack.c.b16 %v730, %v725
    %v1051 = vpack.c.b16 %v736, %v731
    %v1052 = vpack.c.b16 %v737, %v732
    %v1053 = vpack.c.b16 %v738, %v733
    %v1054 = vpack.c.b16 %v739, %v734
    %v1055 = vpack.c.b16 %v740, %v735
    %v1056 = vpack.c.b16 %v746, %v741
    %v1057 = vpack.c.b16 %v747, %v742
    %v1058 = vpack.c.b16 %v748, %v743
    %v1059 = vpack.c.b16 %v749, %v744
    %v1060 = vpack.c.b16 %v750, %v745
    %v1061 = vpack.c.b16 %v756, %v751
    %v1062 = vpack.c.b16 %v757, %v752
    %v1063 = vpack.c.b16 %v758, %v753
    %v1064 = vpack.c.b16 %v759, %v754
    %v1065 = vpack.c.b16 %v760, %v755
    %v1066 = vpack.c.b16 %v766, %v761
    %v1067 = vpack.c.b16 %v767, %v762
    %v1068 = vpack.c.b16 %v768, %v763
    %v1069 = vpack.c.b16 %v769, %v764
    %v1070 = vpack.c.b16 %v770, %v765
    %v1071 = vpack.c.b16 %v776, %v771
    %v1072 = vpack.c.b16 %v777, %v772
    %v1073 = vpack.c.b16 %v778, %v773
    %v1074 = vpack.c.b16 %v779, %v774
    %v1075 = vpack.c.b16 %v780, %v775
    %v1076 = vpack.c.b16 %v786, %v781
    %v1077 = vpack.c.b16 %v787, %v782
    %v1078 = vpack.c.b16 %v788, %v783
    %v1079 = vpack.c.b16 %v789, %v784
    %v1080 = vpack.c.b16 %v790, %v785
    %v1081 = vpack.c.b16 %v796, %v791
    %v1082 = vpack.c.b16 %v797, %v792
    %v1083 = vpack.c.b16 %v798, %v793
    %v1084 = vpack.c.b16 %v799, %v794
    %v1085 = vpack.c.b16 %v800, %v795
    %v1086 = vpack.c.b16 %v806, %v801
    %v1087 = vpack.c.b16 %v807, %v802
    %v1088 = vpack.c.b16 %v808, %v803
    %v1089 = vpack.c.b16 %v809, %v804
    %v1090 = vpack.c.b16 %v810, %v805
    %v1091 = vpack.c.b16 %v816, %v811
    %v1092 = vpack.c.b16 %v817, %v812
    %v1093 = vpack.c.b16 %v818, %v813
    %v1094 = vpack.c.b16 %v819, %v814
    %v1095 = vpack.c.b16 %v820, %v815
    %v1096 = vpack.c.b16 %v826, %v821
    %v1097 = vpack.c.b16 %v827, %v822
    %v1098 = vpack.c.b16 %v828, %v823
    %v1099 = vpack.c.b16 %v829, %v824
    %v1100 = vpack.c.b16 %v830, %v825
    %v1101 = vpack.c.b16 %v836, %v831
    %v1102 = vpack.c.b16 %v837, %v832
    %v1103 = vpack.c.b16 %v838, %v833
    %v1104 = vpack.c.b16 %v839, %v834
    %v1105 = vpack.c.b16 %v840, %v835
    %v1106 = vpack.c.b16 %v846, %v841
    %v1107 = vpack.c.b16 %v847, %v842
    %v1108 = vpack.c.b16 %v848, %v843
    %v1109 = vpack.c.b16 %v849, %v844
    %v1110 = vpack.c.b16 %v850, %v845
    %v1111 = vpack.c.b16 %v856, %v851
    %v1112 = vpack.c.b16 %v857, %v852
    %v1113 = vpack.c.b16 %v858, %v853
    %v1114 = vpack.c.b16 %v859, %v854
    %v1115 = vpack.c.b16 %v860, %v855
    %v1116 = vpack.c.b16 %v866, %v861
    %v1117 = vpack.c.b16 %v867, %v862
    %v1118 = vpack.c.b16 %v868, %v863
    %v1119 = vpack.c.b16 %v869, %v864
    %v1120 = vpack.c.b16 %v870, %v865
    %v1121 = vpack.c.b16 %v876, %v871
    %v1122 = vpack.c.b16 %v877, %v872
    %v1123 = vpack.c.b16 %v878, %v873
    %v1124 = vpack.c.b16 %v879, %v874
    %v1125 = vpack.c.b16 %v880, %v875
    %v1126 = vpack.c.b16 %v886, %v881
    %v1127 = vpack.c.b16 %v887, %v882
    %v1128 = vpack.c.b16 %v888, %v883
    %v1129 = vpack.c.b16 %v889, %v884
    %v1130 = vpack.c.b16 %v890, %v885
    %v1131 = vpack.c.b16 %v896, %v891
    %v1132 = vpack.c.b16 %v897, %v892
    %v1133 = vpack.c.b16 %v898, %v893
    %v1134 = vpack.c.b16 %v899, %v894
    %v1135 = vpack.c.b16 %v900, %v895
    %v1136 = vpack.c.b16 %v906, %v901
    %v1137 = vpack.c.b16 %v907, %v902
    %v1138 = vpack.c.b16 %v908, %v903
    %v1139 = vpack.c.b16 %v909, %v904
    %v1140 = vpack.c.b16 %v910, %v905
    %v1141 = vpack.c.b16 %v916, %v911
    %v1142 = vpack.c.b16 %v917, %v912
    %v1143 = vpack.c.b16 %v918, %v913
    %v1144 = vpack.c.b16 %v919, %v914
    %v1145 = vpack.c.b16 %v920, %v915
    %v1146 = vpack.c.b16 %v926, %v921
    %v1147 = vpack.c.b16 %v927, %v922
    %v1148 = vpack.c.b16 %v928, %v923
    %v1149 = vpack.c.b16 %v929, %v924
    %v1150 = vpack.c.b16 %v930, %v925
    %v1151 = vpack.c.b16 %v936, %v931
    %v1152 = vpack.c.b16 %v937, %v932
    %v1153 = vpack.c.b16 %v938, %v933
    %v1154 = vpack.c.b16 %v939, %v934
    %v1155 = vpack.c.b16 %v940, %v935
    %v1156 = vpack.c.b16 %v946, %v941
    %v1157 = vpack.c.b16 %v947, %v942
    %v1158 = vpack.c.b16 %v948, %v943
    %v1159 = vpack.c.b16 %v949, %v944
    %v1160 = vpack.c.b16 %v950, %v945
    %v1161 = vpack.c.b16 %v956, %v951
    %v1162 = vpack.c.b16 %v957, %v952
    %v1163 = vpack.c.b16 %v958, %v953
    %v1164 = vpack.c.b16 %v959, %v954
    %v1165 = vpack.c.b16 %v960, %v955
    %v1166 = vpack.c.b16 %v966, %v961
    %v1167 = vpack.c.b16 %v967, %v962
    %v1168 = vpack.c.b16 %v968, %v963
    %v1169 = vpack.c.b16 %v969, %v964
    %v1170 = vpack.c.b16 %v970, %v965
    %1371 = vmatprep.subr.bf16.mxu0 %v972
    %1372 = vmatpush1.bf16.msra.mxu0 %v971
    %1373 = vmatprep.subr.bf16.mxu0 %v977
    %1374 = vmatpush1.bf16.msra.mxu0 %v976
    %1375 = vmatprep.subr.bf16.mxu0 %v982
    %1376 = vmatpush1.bf16.msra.mxu0 %v981
    %1377 = vmatprep.subr.bf16.mxu0 %v987
    %1378 = vmatpush1.bf16.msra.mxu0 %v986
    %1379 = vmatprep.subr.bf16.mxu0 %v992
    %1380 = vmatpush1.bf16.msra.mxu0 %v991
    %1381 = vmatprep.subr.bf16.mxu0 %v997
    %1382 = vmatpush1.bf16.msra.mxu0 %v996
    %1383 = vmatprep.subr.bf16.mxu0 %v1002
    %1384 = vmatpush1.bf16.msra.mxu0 %v1001
    %1385 = vmatprep.subr.bf16.mxu0 %v1007
    %1386 = vmatpush1.bf16.msra.mxu0 %v1006
    %1387 = vmatprep.subr.bf16.mxu0 %v1012
    %1388 = vmatpush1.bf16.msra.mxu0 %v1011
    %1389 = vmatprep.subr.bf16.mxu0 %v1017
    %1390 = vmatpush1.bf16.msra.mxu0 %v1016
    %1391 = vmatprep.subr.bf16.mxu0 %v1022
    %1392 = vmatpush1.bf16.msra.mxu0 %v1021
    %1393 = vmatprep.subr.bf16.mxu0 %v1027
    %1394 = vmatpush1.bf16.msra.mxu0 %v1026
    %1395 = vmatprep.subr.bf16.mxu0 %v1032
    %1396 = vmatpush1.bf16.msra.mxu0 %v1031
    %1397 = vmatprep.subr.bf16.mxu0 %v1037
    %1398 = vmatpush1.bf16.msra.mxu0 %v1036
    %1399 = vmatprep.subr.bf16.mxu0 %v1042
    %1400 = vmatpush1.bf16.msra.mxu0 %v1041
    %1401 = vmatprep.subr.bf16.mxu0 %v1047
    %1402 = vmatpush1.bf16.msra.mxu0 %v1046
    %1403 = vmatprep.mubr.bf16.mxu0 %v87
    %1404 = vmatmul.mubr.bf16.gmra.mrb[0].mxu0 %v86
    %v1405 = vpop.f32.mrb[0].mxu0
    %v1406 = vadd.f32 0.0, %v1405
    %v1407 = vpop.f32.mrb[0].mxu0
    %v1408 = vadd.f32 0.0, %v1407
    %v1409 = vpop.f32.mrb[0].mxu0
    %v1410 = vadd.f32 0.0, %v1409
    %v1411 = vpop.f32.mrb[0].mxu0
    %v1412 = vadd.f32 0.0, %v1411
    %1413 = vdwg.mxu0
    %1414 = vmatprep.subr.bf16.mxu0 %v1052
    %1415 = vmatpush1.bf16.msra.mxu0 %v1051
    %1416 = vmatprep.subr.bf16.mxu0 %v1057
    %1417 = vmatpush1.bf16.msra.mxu0 %v1056
    %1418 = vmatprep.subr.bf16.mxu0 %v1062
    %1419 = vmatpush1.bf16.msra.mxu0 %v1061
    %1420 = vmatprep.subr.bf16.mxu0 %v1067
    %1421 = vmatpush1.bf16.msra.mxu0 %v1066
    %1422 = vmatprep.subr.bf16.mxu0 %v1072
    %1423 = vmatpush1.bf16.msra.mxu0 %v1071
    %1424 = vmatprep.subr.bf16.mxu0 %v1077
    %1425 = vmatpush1.bf16.msra.mxu0 %v1076
    %1426 = vmatprep.subr.bf16.mxu0 %v1082
    %1427 = vmatpush1.bf16.msra.mxu0 %v1081
    %1428 = vmatprep.subr.bf16.mxu0 %v1087
    %1429 = vmatpush1.bf16.msra.mxu0 %v1086
    %1430 = vmatprep.subr.bf16.mxu0 %v1092
    %1431 = vmatpush1.bf16.msra.mxu0 %v1091
    %1432 = vmatprep.subr.bf16.mxu0 %v1097
    %1433 = vmatpush1.bf16.msra.mxu0 %v1096
    %1434 = vmatprep.subr.bf16.mxu0 %v1102
    %1435 = vmatpush1.bf16.msra.mxu0 %v1101
    %1436 = vmatprep.subr.bf16.mxu0 %v1107
    %1437 = vmatpush1.bf16.msra.mxu0 %v1106
    %1438 = vmatprep.subr.bf16.mxu0 %v1112
    %1439 = vmatpush1.bf16.msra.mxu0 %v1111
    %1440 = vmatprep.subr.bf16.mxu0 %v1117
    %1441 = vmatpush1.bf16.msra.mxu0 %v1116
    %1442 = vmatprep.subr.bf16.mxu0 %v1122
    %1443 = vmatpush1.bf16.msra.mxu0 %v1121
    %1444 = vmatprep.subr.bf16.mxu0 %v1127
    %1445 = vmatpush1.bf16.msra.mxu0 %v1126
    %1446 = vmatprep.mubr.bf16.mxu0 %v89
    %1447 = vmatmul.mubr.bf16.gmra.mrb[0].mxu0 %v88
    %v1448 = vpop.f32.mrb[0].mxu0
    %v1449 = vadd.f32 %v1406, %v1448
    %v1450 = vpop.f32.mrb[0].mxu0
    %v1451 = vadd.f32 %v1408, %v1450
    %v1452 = vpop.f32.mrb[0].mxu0
    %v1453 = vadd.f32 %v1410, %v1452
    %v1454 = vpop.f32.mrb[0].mxu0
    %v1455 = vadd.f32 %v1412, %v1454
    %1456 = vdwg.mxu0
    %1457 = vmatprep.subr.bf16.mxu0 %v1132
    %1458 = vmatpush1.bf16.msra.mxu0 %v1131
    %1459 = vmatprep.subr.bf16.mxu0 %v1137
    %1460 = vmatpush1.bf16.msra.mxu0 %v1136
    %1461 = vmatprep.subr.bf16.mxu0 %v1142
    %1462 = vmatpush1.bf16.msra.mxu0 %v1141
    %1463 = vmatprep.subr.bf16.mxu0 %v1147
    %1464 = vmatpush1.bf16.msra.mxu0 %v1146
    %1465 = vmatprep.subr.bf16.mxu0 %v1152
    %1466 = vmatpush1.bf16.msra.mxu0 %v1151
    %1467 = vmatprep.subr.bf16.mxu0 %v1157
    %1468 = vmatpush1.bf16.msra.mxu0 %v1156
    %1469 = vmatprep.subr.bf16.mxu0 %v1162
    %1470 = vmatpush1.bf16.msra.mxu0 %v1161
    %1471 = vmatprep.subr.bf16.mxu0 %v1167
    %1472 = vmatpush1.bf16.msra.mxu0 %v1166
    %1473 = vmatprep.subr.bf16.mxu0 0
    %1474 = vmatpush1.bf16.msra.mxu0 0
    %1475 = vmatprep.subr.bf16.mxu0 0
    %1476 = vmatpush1.bf16.msra.mxu0 0
    %1477 = vmatprep.subr.bf16.mxu0 0
    %1478 = vmatpush1.bf16.msra.mxu0 0
    %1479 = vmatprep.subr.bf16.mxu0 0
    %1480 = vmatpush1.bf16.msra.mxu0 0
    %1481 = vmatprep.subr.bf16.mxu0 0
    %1482 = vmatpush1.bf16.msra.mxu0 0
    %1483 = vmatprep.subr.bf16.mxu0 0
    %1484 = vmatpush1.bf16.msra.mxu0 0
    %1485 = vmatprep.subr.bf16.mxu0 0
    %1486 = vmatpush1.bf16.msra.mxu0 0
    %1487 = vmatprep.subr.bf16.mxu0 0
    %1488 = vmatpush1.bf16.msra.mxu0 0
    %1489 = vmatprep.mubr.bf16.mxu0 0
    %1490 = vmatmul.mubr.bf16.gmra.mrb[0].mxu0 %v90
    %v1491 = vpop.f32.mrb[0].mxu0
    %v1492 = vadd.f32 %v1449, %v1491
    %v1493 = vpop.f32.mrb[0].mxu0
    %v1494 = vadd.f32 %v1451, %v1493
    %v1495 = vpop.f32.mrb[0].mxu0
    %v1496 = vadd.f32 %v1453, %v1495
    %v1497 = vpop.f32.mrb[0].mxu0
    %v1498 = vadd.f32 %v1455, %v1497
    %1499 = vdwg.mxu0
    %1500 = vmatprep.subr.bf16.mxu0 %v974
    %1501 = vmatpush1.bf16.msra.mxu0 %v973
    %1502 = vmatprep.subr.bf16.mxu0 %v979
    %1503 = vmatpush1.bf16.msra.mxu0 %v978
    %1504 = vmatprep.subr.bf16.mxu0 %v984
    %1505 = vmatpush1.bf16.msra.mxu0 %v983
    %1506 = vmatprep.subr.bf16.mxu0 %v989
    %1507 = vmatpush1.bf16.msra.mxu0 %v988
    %1508 = vmatprep.subr.bf16.mxu0 %v994
    %1509 = vmatpush1.bf16.msra.mxu0 %v993
    %1510 = vmatprep.subr.bf16.mxu0 %v999
    %1511 = vmatpush1.bf16.msra.mxu0 %v998
    %1512 = vmatprep.subr.bf16.mxu0 %v1004
    %1513 = vmatpush1.bf16.msra.mxu0 %v1003
    %1514 = vmatprep.subr.bf16.mxu0 %v1009
    %1515 = vmatpush1.bf16.msra.mxu0 %v1008
    %1516 = vmatprep.subr.bf16.mxu0 %v1014
    %1517 = vmatpush1.bf16.msra.mxu0 %v1013
    %1518 = vmatprep.subr.bf16.mxu0 %v1019
    %1519 = vmatpush1.bf16.msra.mxu0 %v1018
    %1520 = vmatprep.subr.bf16.mxu0 %v1024
    %1521 = vmatpush1.bf16.msra.mxu0 %v1023
    %1522 = vmatprep.subr.bf16.mxu0 %v1029
    %1523 = vmatpush1.bf16.msra.mxu0 %v1028
    %1524 = vmatprep.subr.bf16.mxu0 %v1034
    %1525 = vmatpush1.bf16.msra.mxu0 %v1033
    %1526 = vmatprep.subr.bf16.mxu0 %v1039
    %1527 = vmatpush1.bf16.msra.mxu0 %v1038
    %1528 = vmatprep.subr.bf16.mxu0 %v1044
    %1529 = vmatpush1.bf16.msra.mxu0 %v1043
    %1530 = vmatprep.subr.bf16.mxu0 %v1049
    %1531 = vmatpush1.bf16.msra.mxu0 %v1048
    %1532 = vmatprep.mubr.bf16.mxu0 %v87
    %1533 = vmatmul.mubr.bf16.gmra.mrb[0].mxu0 %v86
    %v1534 = vpop.f32.mrb[0].mxu0
    %v1535 = vadd.f32 0.0, %v1534
    %v1536 = vpop.f32.mrb[0].mxu0
    %v1537 = vadd.f32 0.0, %v1536
    %v1538 = vpop.f32.mrb[0].mxu0
    %v1539 = vadd.f32 0.0, %v1538
    %v1540 = vpop.f32.mrb[0].mxu0
    %v1541 = vadd.f32 0.0, %v1540
    %1542 = vdwg.mxu0
    %1543 = vmatprep.subr.bf16.mxu0 %v1054
    %1544 = vmatpush1.bf16.msra.mxu0 %v1053
    %1545 = vmatprep.subr.bf16.mxu0 %v1059
    %1546 = vmatpush1.bf16.msra.mxu0 %v1058
    %1547 = vmatprep.subr.bf16.mxu0 %v1064
    %1548 = vmatpush1.bf16.msra.mxu0 %v1063
    %1549 = vmatprep.subr.bf16.mxu0 %v1069
    %1550 = vmatpush1.bf16.msra.mxu0 %v1068
    %1551 = vmatprep.subr.bf16.mxu0 %v1074
    %1552 = vmatpush1.bf16.msra.mxu0 %v1073
    %1553 = vmatprep.subr.bf16.mxu0 %v1079
    %1554 = vmatpush1.bf16.msra.mxu0 %v1078
    %1555 = vmatprep.subr.bf16.mxu0 %v1084
    %1556 = vmatpush1.bf16.msra.mxu0 %v1083
    %1557 = vmatprep.subr.bf16.mxu0 %v1089
    %1558 = vmatpush1.bf16.msra.mxu0 %v1088
    %1559 = vmatprep.subr.bf16.mxu0 %v1094
    %1560 = vmatpush1.bf16.msra.mxu0 %v1093
    %1561 = vmatprep.subr.bf16.mxu0 %v1099
    %1562 = vmatpush1.bf16.msra.mxu0 %v1098
    %1563 = vmatprep.subr.bf16.mxu0 %v1104
    %1564 = vmatpush1.bf16.msra.mxu0 %v1103
    %1565 = vmatprep.subr.bf16.mxu0 %v1109
    %1566 = vmatpush1.bf16.msra.mxu0 %v1108
    %1567 = vmatprep.subr.bf16.mxu0 %v1114
    %1568 = vmatpush1.bf16.msra.mxu0 %v1113
    %1569 = vmatprep.subr.bf16.mxu0 %v1119
    %1570 = vmatpush1.bf16.msra.mxu0 %v1118
    %1571 = vmatprep.subr.bf16.mxu0 %v1124
    %1572 = vmatpush1.bf16.msra.mxu0 %v1123
    %1573 = vmatprep.subr.bf16.mxu0 %v1129
    %1574 = vmatpush1.bf16.msra.mxu0 %v1128
    %1575 = vmatprep.mubr.bf16.mxu0 %v89
    %1576 = vmatmul.mubr.bf16.gmra.mrb[0].mxu0 %v88
    %v1577 = vpop.f32.mrb[0].mxu0
    %v1578 = vadd.f32 %v1535, %v1577
    %v1579 = vpop.f32.mrb[0].mxu0
    %v1580 = vadd.f32 %v1537, %v1579
    %v1581 = vpop.f32.mrb[0].mxu0
    %v1582 = vadd.f32 %v1539, %v1581
    %v1583 = vpop.f32.mrb[0].mxu0
    %v1584 = vadd.f32 %v1541, %v1583
    %1585 = vdwg.mxu0
    %1586 = vmatprep.subr.bf16.mxu0 %v1134
    %1587 = vmatpush1.bf16.msra.mxu0 %v1133
    %1588 = vmatprep.subr.bf16.mxu0 %v1139
    %1589 = vmatpush1.bf16.msra.mxu0 %v1138
    %1590 = vmatprep.subr.bf16.mxu0 %v1144
    %1591 = vmatpush1.bf16.msra.mxu0 %v1143
    %1592 = vmatprep.subr.bf16.mxu0 %v1149
    %1593 = vmatpush1.bf16.msra.mxu0 %v1148
    %1594 = vmatprep.subr.bf16.mxu0 %v1154
    %1595 = vmatpush1.bf16.msra.mxu0 %v1153
    %1596 = vmatprep.subr.bf16.mxu0 %v1159
    %1597 = vmatpush1.bf16.msra.mxu0 %v1158
    %1598 = vmatprep.subr.bf16.mxu0 %v1164
    %1599 = vmatpush1.bf16.msra.mxu0 %v1163
    %1600 = vmatprep.subr.bf16.mxu0 %v1169
    %1601 = vmatpush1.bf16.msra.mxu0 %v1168
    %1602 = vmatprep.subr.bf16.mxu0 0
    %1603 = vmatpush1.bf16.msra.mxu0 0
    %1604 = vmatprep.subr.bf16.mxu0 0
    %1605 = vmatpush1.bf16.msra.mxu0 0
    %1606 = vmatprep.subr.bf16.mxu0 0
    %1607 = vmatpush1.bf16.msra.mxu0 0
    %1608 = vmatprep.subr.bf16.mxu0 0
    %1609 = vmatpush1.bf16.msra.mxu0 0
    %1610 = vmatprep.subr.bf16.mxu0 0
    %1611 = vmatpush1.bf16.msra.mxu0 0
    %1612 = vmatprep.subr.bf16.mxu0 0
    %1613 = vmatpush1.bf16.msra.mxu0 0
    %1614 = vmatprep.subr.bf16.mxu0 0
    %1615 = vmatpush1.bf16.msra.mxu0 0
    %1616 = vmatprep.subr.bf16.mxu0 0
    %1617 = vmatpush1.bf16.msra.mxu0 0
    %1618 = vmatprep.mubr.bf16.mxu0 0
    %1619 = vmatmul.mubr.bf16.gmra.mrb[0].mxu0 %v90
    %v1620 = vpop.f32.mrb[0].mxu0
    %v1621 = vadd.f32 %v1578, %v1620
    %v1622 = vpop.f32.mrb[0].mxu0
    %v1623 = vadd.f32 %v1580, %v1622
    %v1624 = vpop.f32.mrb[0].mxu0
    %v1625 = vadd.f32 %v1582, %v1624
    %v1626 = vpop.f32.mrb[0].mxu0
    %v1627 = vadd.f32 %v1584, %v1626
    %1628 = vdwg.mxu0
    %1629 = vmatprep.subr.bf16.mxu0 0
    %1630 = vmatpush1.bf16.msra.mxu0 %v975
    %1631 = vmatprep.subr.bf16.mxu0 0
    %1632 = vmatpush1.bf16.msra.mxu0 %v980
    %1633 = vmatprep.subr.bf16.mxu0 0
    %1634 = vmatpush1.bf16.msra.mxu0 %v985
    %1635 = vmatprep.subr.bf16.mxu0 0
    %1636 = vmatpush1.bf16.msra.mxu0 %v990
    %1637 = vmatprep.subr.bf16.mxu0 0
    %1638 = vmatpush1.bf16.msra.mxu0 %v995
    %1639 = vmatprep.subr.bf16.mxu0 0
    %1640 = vmatpush1.bf16.msra.mxu0 %v1000
    %1641 = vmatprep.subr.bf16.mxu0 0
    %1642 = vmatpush1.bf16.msra.mxu0 %v1005
    %1643 = vmatprep.subr.bf16.mxu0 0
    %1644 = vmatpush1.bf16.msra.mxu0 %v1010
    %1645 = vmatprep.subr.bf16.mxu0 0
    %1646 = vmatpush1.bf16.msra.mxu0 %v1015
    %1647 = vmatprep.subr.bf16.mxu0 0
    %1648 = vmatpush1.bf16.msra.mxu0 %v1020
    %1649 = vmatprep.subr.bf16.mxu0 0
    %1650 = vmatpush1.bf16.msra.mxu0 %v1025
    %1651 = vmatprep.subr.bf16.mxu0 0
    %1652 = vmatpush1.bf16.msra.mxu0 %v1030
    %1653 = vmatprep.subr.bf16.mxu0 0
    %1654 = vmatpush1.bf16.msra.mxu0 %v1035
    %1655 = vmatprep.subr.bf16.mxu0 0
    %1656 = vmatpush1.bf16.msra.mxu0 %v1040
    %1657 = vmatprep.subr.bf16.mxu0 0
    %1658 = vmatpush1.bf16.msra.mxu0 %v1045
    %1659 = vmatprep.subr.bf16.mxu0 0
    %1660 = vmatpush1.bf16.msra.mxu0 %v1050
    %1661 = vmatprep.mubr.bf16.mxu0 %v87
    %1662 = vmatmul.mubr.bf16.gmra.mrb[0].mxu0 %v86
    %v1663 = vpop.f32.mrb[0].mxu0
    %v1664 = vadd.f32 0.0, %v1663
    %v1665 = vpop.f32.mrb[0].mxu0
    %v1666 = vpop.f32.mrb[0].mxu0
    %v1667 = vadd.f32 0.0, %v1666
    %v1668 = vpop.f32.mrb[0].mxu0
    %1669 = vdwg.mxu0
    %1670 = vmatprep.subr.bf16.mxu0 0
    %1671 = vmatpush1.bf16.msra.mxu0 %v1055
    %1672 = vmatprep.subr.bf16.mxu0 0
    %1673 = vmatpush1.bf16.msra.mxu0 %v1060
    %1674 = vmatprep.subr.bf16.mxu0 0
    %1675 = vmatpush1.bf16.msra.mxu0 %v1065
    %1676 = vmatprep.subr.bf16.mxu0 0
    %1677 = vmatpush1.bf16.msra.mxu0 %v1070
    %1678 = vmatprep.subr.bf16.mxu0 0
    %1679 = vmatpush1.bf16.msra.mxu0 %v1075
    %1680 = vmatprep.subr.bf16.mxu0 0
    %1681 = vmatpush1.bf16.msra.mxu0 %v1080
    %1682 = vmatprep.subr.bf16.mxu0 0
    %1683 = vmatpush1.bf16.msra.mxu0 %v1085
    %1684 = vmatprep.subr.bf16.mxu0 0
    %1685 = vmatpush1.bf16.msra.mxu0 %v1090
    %1686 = vmatprep.subr.bf16.mxu0 0
    %1687 = vmatpush1.bf16.msra.mxu0 %v1095
    %1688 = vmatprep.subr.bf16.mxu0 0
    %1689 = vmatpush1.bf16.msra.mxu0 %v1100
    %1690 = vmatprep.subr.bf16.mxu0 0
    %1691 = vmatpush1.bf16.msra.mxu0 %v1105
    %1692 = vmatprep.subr.bf16.mxu0 0
    %1693 = vmatpush1.bf16.msra.mxu0 %v1110
    %1694 = vmatprep.subr.bf16.mxu0 0
    %1695 = vmatpush1.bf16.msra.mxu0 %v1115
    %1696 = vmatprep.subr.bf16.mxu0 0
    %1697 = vmatpush1.bf16.msra.mxu0 %v1120
    %1698 = vmatprep.subr.bf16.mxu0 0
    %1699 = vmatpush1.bf16.msra.mxu0 %v1125
    %1700 = vmatprep.subr.bf16.mxu0 0
    %1701 = vmatpush1.bf16.msra.mxu0 %v1130
    %1702 = vmatprep.mubr.bf16.mxu0 %v89
    %1703 = vmatmul.mubr.bf16.gmra.mrb[0].mxu0 %v88
    %v1704 = vpop.f32.mrb[0].mxu0
    %v1705 = vadd.f32 %v1664, %v1704
    %v1706 = vpop.f32.mrb[0].mxu0
    %v1707 = vpop.f32.mrb[0].mxu0
    %v1708 = vadd.f32 %v1667, %v1707
    %v1709 = vpop.f32.mrb[0].mxu0
    %1710 = vdwg.mxu0
    %1711 = vmatprep.subr.bf16.mxu0 0
    %1712 = vmatpush1.bf16.msra.mxu0 %v1135
    %1713 = vmatprep.subr.bf16.mxu0 0
    %1714 = vmatpush1.bf16.msra.mxu0 %v1140
    %1715 = vmatprep.subr.bf16.mxu0 0
    %1716 = vmatpush1.bf16.msra.mxu0 %v1145
    %1717 = vmatprep.subr.bf16.mxu0 0
    %1718 = vmatpush1.bf16.msra.mxu0 %v1150
    %1719 = vmatprep.subr.bf16.mxu0 0
    %1720 = vmatpush1.bf16.msra.mxu0 %v1155
    %1721 = vmatprep.subr.bf16.mxu0 0
    %1722 = vmatpush1.bf16.msra.mxu0 %v1160
    %1723 = vmatprep.subr.bf16.mxu0 0
    %1724 = vmatpush1.bf16.msra.mxu0 %v1165
    %1725 = vmatprep.subr.bf16.mxu0 0
    %1726 = vmatpush1.bf16.msra.mxu0 %v1170
    %1727 = vmatprep.subr.bf16.mxu0 0
    %1728 = vmatpush1.bf16.msra.mxu0 0
    %1729 = vmatprep.subr.bf16.mxu0 0
    %1730 = vmatpush1.bf16.msra.mxu0 0
    %1731 = vmatprep.subr.bf16.mxu0 0
    %1732 = vmatpush1.bf16.msra.mxu0 0
    %1733 = vmatprep.subr.bf16.mxu0 0
    %1734 = vmatpush1.bf16.msra.mxu0 0
    %1735 = vmatprep.subr.bf16.mxu0 0
    %1736 = vmatpush1.bf16.msra.mxu0 0
    %1737 = vmatprep.subr.bf16.mxu0 0
    %1738 = vmatpush1.bf16.msra.mxu0 0
    %1739 = vmatprep.subr.bf16.mxu0 0
    %1740 = vmatpush1.bf16.msra.mxu0 0
    %1741 = vmatprep.subr.bf16.mxu0 0
    %1742 = vmatpush1.bf16.msra.mxu0 0
    %1743 = vmatprep.mubr.bf16.mxu0 0
    %1744 = vmatmul.mubr.bf16.gmra.mrb[0].mxu0 %v90
    %v1745 = vpop.f32.mrb[0].mxu0
    %v1746 = vadd.f32 %v1705, %v1745
    %v1747 = vpop.f32.mrb[0].mxu0
    %v1748 = vpop.f32.mrb[0].mxu0
    %v1749 = vadd.f32 %v1708, %v1748
    %v1750 = vpop.f32.mrb[0].mxu0
    %1751 = vdwg.mxu0
    %v1752 = vpack.c.bf16 %v1492, %v1492
    %v1753 = vpack.c.bf16 %v1494, %v1494
    %v1754 = vpack.c.bf16 %v1621, %v1621
    %v1755 = vpack.c.bf16 %v1623, %v1623
    %v1756 = vpack.c.bf16 %v1746, %v1746
    %v1757 = vpack.c.bf16 %v1496, %v1496
    %v1758 = vpack.c.bf16 %v1498, %v1498
    %v1759 = vpack.c.bf16 %v1625, %v1625
    %v1760 = vpack.c.bf16 %v1627, %v1627
    %v1761 = vpack.c.bf16 %v1749, %v1749
    %v1763 = vsel %vm51, %v49, 0
    %vm1765 = vcmask 1043456
    %v1767 = vsel %vm1765, %v1752, 0
    %v1770 = vsel %vm1765, %v1753, 0
    %v1773 = vsel %vm1765, %v1754, 0
    %v1776 = vsel %vm1765, %v1755, 0
    %v1779 = vsel %vm1765, %v1756, 0
    %1781 = vmatprep.subr.bf16.mxu0 %v1770
    %1782 = vmatpush1.bf16.msra.mxu0 %v1767
    %1783 = vmatprep.subr.bf16.mxu0 0
    %1784 = vmatpush1.bf16.msra.mxu0 0
    %1785 = vmatprep.subr.bf16.mxu0 0
    %1786 = vmatpush1.bf16.msra.mxu0 0
    %1787 = vmatprep.subr.bf16.mxu0 0
    %1788 = vmatpush1.bf16.msra.mxu0 0
    %1789 = vmatprep.subr.bf16.mxu0 0
    %1790 = vmatpush1.bf16.msra.mxu0 0
    %1791 = vmatprep.subr.bf16.mxu0 0
    %1792 = vmatpush1.bf16.msra.mxu0 0
    %1793 = vmatprep.subr.bf16.mxu0 0
    %1794 = vmatpush1.bf16.msra.mxu0 0
    %1795 = vmatprep.subr.bf16.mxu0 0
    %1796 = vmatpush1.bf16.msra.mxu0 0
    %1797 = vmatprep.subr.bf16.mxu0 0
    %1798 = vmatpush1.bf16.msra.mxu0 0
    %1799 = vmatprep.subr.bf16.mxu0 0
    %1800 = vmatpush1.bf16.msra.mxu0 0
    %1801 = vmatprep.subr.bf16.mxu0 0
    %1802 = vmatpush1.bf16.msra.mxu0 0
    %1803 = vmatprep.subr.bf16.mxu0 0
    %1804 = vmatpush1.bf16.msra.mxu0 0
    %1805 = vmatprep.subr.bf16.mxu0 0
    %1806 = vmatpush1.bf16.msra.mxu0 0
    %1807 = vmatprep.subr.bf16.mxu0 0
    %1808 = vmatpush1.bf16.msra.mxu0 0
    %1809 = vmatprep.subr.bf16.mxu0 0
    %1810 = vmatpush1.bf16.msra.mxu0 0
    %1811 = vmatprep.subr.bf16.mxu0 0
    %1812 = vmatpush1.bf16.msra.mxu0 0
    %1813 = vmatprep.mubr.bf16.mxu0 0
    %1814 = vmatmul.mubr.bf16.gmra.mrb[0].mxu0 %v1763
    %v1815 = vpop.f32.mrb[0].mxu0
    %v1816 = vadd.f32 0.0, %v1815
    %v1817 = vpop.f32.mrb[0].mxu0
    %v1818 = vadd.f32 0.0, %v1817
    %v1819 = vpop.f32.mrb[0].mxu0
    %v1820 = vpop.f32.mrb[0].mxu0
    %1821 = vdwg.mxu0
    %1822 = vmatprep.subr.bf16.mxu0 %v1776
    %1823 = vmatpush1.bf16.msra.mxu0 %v1773
    %1824 = vmatprep.subr.bf16.mxu0 0
    %1825 = vmatpush1.bf16.msra.mxu0 0
    %1826 = vmatprep.subr.bf16.mxu0 0
    %1827 = vmatpush1.bf16.msra.mxu0 0
    %1828 = vmatprep.subr.bf16.mxu0 0
    %1829 = vmatpush1.bf16.msra.mxu0 0
    %1830 = vmatprep.subr.bf16.mxu0 0
    %1831 = vmatpush1.bf16.msra.mxu0 0
    %1832 = vmatprep.subr.bf16.mxu0 0
    %1833 = vmatpush1.bf16.msra.mxu0 0
    %1834 = vmatprep.subr.bf16.mxu0 0
    %1835 = vmatpush1.bf16.msra.mxu0 0
    %1836 = vmatprep.subr.bf16.mxu0 0
    %1837 = vmatpush1.bf16.msra.mxu0 0
    %1838 = vmatprep.subr.bf16.mxu0 0
    %1839 = vmatpush1.bf16.msra.mxu0 0
    %1840 = vmatprep.subr.bf16.mxu0 0
    %1841 = vmatpush1.bf16.msra.mxu0 0
    %1842 = vmatprep.subr.bf16.mxu0 0
    %1843 = vmatpush1.bf16.msra.mxu0 0
    %1844 = vmatprep.subr.bf16.mxu0 0
    %1845 = vmatpush1.bf16.msra.mxu0 0
    %1846 = vmatprep.subr.bf16.mxu0 0
    %1847 = vmatpush1.bf16.msra.mxu0 0
    %1848 = vmatprep.subr.bf16.mxu0 0
    %1849 = vmatpush1.bf16.msra.mxu0 0
    %1850 = vmatprep.subr.bf16.mxu0 0
    %1851 = vmatpush1.bf16.msra.mxu0 0
    %1852 = vmatprep.subr.bf16.mxu0 0
    %1853 = vmatpush1.bf16.msra.mxu0 0
    %1854 = vmatprep.mubr.bf16.mxu0 0
    %1855 = vmatmul.mubr.bf16.gmra.mrb[0].mxu0 %v1763
    %v1856 = vpop.f32.mrb[0].mxu0
    %v1857 = vadd.f32 0.0, %v1856
    %v1858 = vpop.f32.mrb[0].mxu0
    %v1859 = vadd.f32 0.0, %v1858
    %v1860 = vpop.f32.mrb[0].mxu0
    %v1861 = vpop.f32.mrb[0].mxu0
    %1862 = vdwg.mxu0
    %1863 = vmatprep.subr.bf16.mxu0 0
    %1864 = vmatpush1.bf16.msra.mxu0 %v1779
    %1865 = vmatprep.subr.bf16.mxu0 0
    %1866 = vmatpush1.bf16.msra.mxu0 0
    %1867 = vmatprep.subr.bf16.mxu0 0
    %1868 = vmatpush1.bf16.msra.mxu0 0
    %1869 = vmatprep.subr.bf16.mxu0 0
    %1870 = vmatpush1.bf16.msra.mxu0 0
    %1871 = vmatprep.subr.bf16.mxu0 0
    %1872 = vmatpush1.bf16.msra.mxu0 0
    %1873 = vmatprep.subr.bf16.mxu0 0
    %1874 = vmatpush1.bf16.msra.mxu0 0
    %1875 = vmatprep.subr.bf16.mxu0 0
    %1876 = vmatpush1.bf16.msra.mxu0 0
    %1877 = vmatprep.subr.bf16.mxu0 0
    %1878 = vmatpush1.bf16.msra.mxu0 0
    %1879 = vmatprep.subr.bf16.mxu0 0
    %1880 = vmatpush1.bf16.msra.mxu0 0
    %1881 = vmatprep.subr.bf16.mxu0 0
    %1882 = vmatpush1.bf16.msra.mxu0 0
    %1883 = vmatprep.subr.bf16.mxu0 0
    %1884 = vmatpush1.bf16.msra.mxu0 0
    %1885 = vmatprep.subr.bf16.mxu0 0
    %1886 = vmatpush1.bf16.msra.mxu0 0
    %1887 = vmatprep.subr.bf16.mxu0 0
    %1888 = vmatpush1.bf16.msra.mxu0 0
    %1889 = vmatprep.subr.bf16.mxu0 0
    %1890 = vmatpush1.bf16.msra.mxu0 0
    %1891 = vmatprep.subr.bf16.mxu0 0
    %1892 = vmatpush1.bf16.msra.mxu0 0
    %1893 = vmatprep.subr.bf16.mxu0 0
    %1894 = vmatpush1.bf16.msra.mxu0 0
    %1895 = vmatprep.mubr.bf16.mxu0 0
    %1896 = vmatmul.mubr.bf16.gmra.mrb[0].mxu0 %v1763
    %v1897 = vpop.f32.mrb[0].mxu0
    %v1898 = vadd.f32 0.0, %v1897
    %v1899 = vpop.f32.mrb[0].mxu0
    %v1900 = vpop.f32.mrb[0].mxu0
    %v1901 = vpop.f32.mrb[0].mxu0
    %1902 = vdwg.mxu0
    %v1904 = vsel %vm51, %v50, 0
    %v1907 = vsel %vm1765, %v1757, 0
    %v1910 = vsel %vm1765, %v1758, 0
    %v1913 = vsel %vm1765, %v1759, 0
    %v1916 = vsel %vm1765, %v1760, 0
    %v1919 = vsel %vm1765, %v1761, 0
    %1921 = vmatprep.subr.bf16.mxu0 %v1910
    %1922 = vmatpush1.bf16.msra.mxu0 %v1907
    %1923 = vmatprep.subr.bf16.mxu0 0
    %1924 = vmatpush1.bf16.msra.mxu0 0
    %1925 = vmatprep.subr.bf16.mxu0 0
    %1926 = vmatpush1.bf16.msra.mxu0 0
    %1927 = vmatprep.subr.bf16.mxu0 0
    %1928 = vmatpush1.bf16.msra.mxu0 0
    %1929 = vmatprep.subr.bf16.mxu0 0
    %1930 = vmatpush1.bf16.msra.mxu0 0
    %1931 = vmatprep.subr.bf16.mxu0 0
    %1932 = vmatpush1.bf16.msra.mxu0 0
    %1933 = vmatprep.subr.bf16.mxu0 0
    %1934 = vmatpush1.bf16.msra.mxu0 0
    %1935 = vmatprep.subr.bf16.mxu0 0
    %1936 = vmatpush1.bf16.msra.mxu0 0
    %1937 = vmatprep.subr.bf16.mxu0 0
    %1938 = vmatpush1.bf16.msra.mxu0 0
    %1939 = vmatprep.subr.bf16.mxu0 0
    %1940 = vmatpush1.bf16.msra.mxu0 0
    %1941 = vmatprep.subr.bf16.mxu0 0
    %1942 = vmatpush1.bf16.msra.mxu0 0
    %1943 = vmatprep.subr.bf16.mxu0 0
    %1944 = vmatpush1.bf16.msra.mxu0 0
    %1945 = vmatprep.subr.bf16.mxu0 0
    %1946 = vmatpush1.bf16.msra.mxu0 0
    %1947 = vmatprep.subr.bf16.mxu0 0
    %1948 = vmatpush1.bf16.msra.mxu0 0
    %1949 = vmatprep.subr.bf16.mxu0 0
    %1950 = vmatpush1.bf16.msra.mxu0 0
    %1951 = vmatprep.subr.bf16.mxu0 0
    %1952 = vmatpush1.bf16.msra.mxu0 0
    %1953 = vmatprep.mubr.bf16.mxu0 0
    %1954 = vmatmul.mubr.bf16.gmra.mrb[0].mxu0 %v1904
    %v1955 = vpop.f32.mrb[0].mxu0
    %v1956 = vadd.f32 0.0, %v1955
    %v1957 = vpop.f32.mrb[0].mxu0
    %v1958 = vadd.f32 0.0, %v1957
    %v1959 = vpop.f32.mrb[0].mxu0
    %v1960 = vpop.f32.mrb[0].mxu0
    %1961 = vdwg.mxu0
    %1962 = vmatprep.subr.bf16.mxu0 %v1916
    %1963 = vmatpush1.bf16.msra.mxu0 %v1913
    %1964 = vmatprep.subr.bf16.mxu0 0
    %1965 = vmatpush1.bf16.msra.mxu0 0
    %1966 = vmatprep.subr.bf16.mxu0 0
    %1967 = vmatpush1.bf16.msra.mxu0 0
    %1968 = vmatprep.subr.bf16.mxu0 0
    %1969 = vmatpush1.bf16.msra.mxu0 0
    %1970 = vmatprep.subr.bf16.mxu0 0
    %1971 = vmatpush1.bf16.msra.mxu0 0
    %1972 = vmatprep.subr.bf16.mxu0 0
    %1973 = vmatpush1.bf16.msra.mxu0 0
    %1974 = vmatprep.subr.bf16.mxu0 0
    %1975 = vmatpush1.bf16.msra.mxu0 0
    %1976 = vmatprep.subr.bf16.mxu0 0
    %1977 = vmatpush1.bf16.msra.mxu0 0
    %1978 = vmatprep.subr.bf16.mxu0 0
    %1979 = vmatpush1.bf16.msra.mxu0 0
    %1980 = vmatprep.subr.bf16.mxu0 0
    %1981 = vmatpush1.bf16.msra.mxu0 0
    %1982 = vmatprep.subr.bf16.mxu0 0
    %1983 = vmatpush1.bf16.msra.mxu0 0
    %1984 = vmatprep.subr.bf16.mxu0 0
    %1985 = vmatpush1.bf16.msra.mxu0 0
    %1986 = vmatprep.subr.bf16.mxu0 0
    %1987 = vmatpush1.bf16.msra.mxu0 0
    %1988 = vmatprep.subr.bf16.mxu0 0
    %1989 = vmatpush1.bf16.msra.mxu0 0
    %1990 = vmatprep.subr.bf16.mxu0 0
    %1991 = vmatpush1.bf16.msra.mxu0 0
    %1992 = vmatprep.subr.bf16.mxu0 0
    %1993 = vmatpush1.bf16.msra.mxu0 0
    %1994 = vmatprep.mubr.bf16.mxu0 0
    %1995 = vmatmul.mubr.bf16.gmra.mrb[0].mxu0 %v1904
    %v1996 = vpop.f32.mrb[0].mxu0
    %v1997 = vadd.f32 0.0, %v1996
    %v1998 = vpop.f32.mrb[0].mxu0
    %v1999 = vadd.f32 0.0, %v1998
    %v2000 = vpop.f32.mrb[0].mxu0
    %v2001 = vpop.f32.mrb[0].mxu0
    %2002 = vdwg.mxu0
    %2003 = vmatprep.subr.bf16.mxu0 0
    %2004 = vmatpush1.bf16.msra.mxu0 %v1919
    %2005 = vmatprep.subr.bf16.mxu0 0
    %2006 = vmatpush1.bf16.msra.mxu0 0
    %2007 = vmatprep.subr.bf16.mxu0 0
    %2008 = vmatpush1.bf16.msra.mxu0 0
    %2009 = vmatprep.subr.bf16.mxu0 0
    %2010 = vmatpush1.bf16.msra.mxu0 0
    %2011 = vmatprep.subr.bf16.mxu0 0
    %2012 = vmatpush1.bf16.msra.mxu0 0
    %2013 = vmatprep.subr.bf16.mxu0 0
    %2014 = vmatpush1.bf16.msra.mxu0 0
    %2015 = vmatprep.subr.bf16.mxu0 0
    %2016 = vmatpush1.bf16.msra.mxu0 0
    %2017 = vmatprep.subr.bf16.mxu0 0
    %2018 = vmatpush1.bf16.msra.mxu0 0
    %2019 = vmatprep.subr.bf16.mxu0 0
    %2020 = vmatpush1.bf16.msra.mxu0 0
    %2021 = vmatprep.subr.bf16.mxu0 0
    %2022 = vmatpush1.bf16.msra.mxu0 0
    %2023 = vmatprep.subr.bf16.mxu0 0
    %2024 = vmatpush1.bf16.msra.mxu0 0
    %2025 = vmatprep.subr.bf16.mxu0 0
    %2026 = vmatpush1.bf16.msra.mxu0 0
    %2027 = vmatprep.subr.bf16.mxu0 0
    %2028 = vmatpush1.bf16.msra.mxu0 0
    %2029 = vmatprep.subr.bf16.mxu0 0
    %2030 = vmatpush1.bf16.msra.mxu0 0
    %2031 = vmatprep.subr.bf16.mxu0 0
    %2032 = vmatpush1.bf16.msra.mxu0 0
    %2033 = vmatprep.subr.bf16.mxu0 0
    %2034 = vmatpush1.bf16.msra.mxu0 0
    %2035 = vmatprep.mubr.bf16.mxu0 0
    %2036 = vmatmul.mubr.bf16.gmra.mrb[0].mxu0 %v1904
    %v2037 = vpop.f32.mrb[0].mxu0
    %v2038 = vadd.f32 0.0, %v2037
    %v2039 = vpop.f32.mrb[0].mxu0
    %v2040 = vpop.f32.mrb[0].mxu0
    %v2041 = vpop.f32.mrb[0].mxu0
    %2042 = vdwg.mxu0
    %v2043 = vmul.f32 %v1816, %v60
    %v2044 = vmul.f32 %v1818, %v60
    %v2045 = vmul.f32 %v1857, %v60
    %v2046 = vmul.f32 %v1859, %v60
    %v2047 = vmul.f32 %v1898, %v60
    %v2048 = vmul.f32 %v1956, %v61
    %v2049 = vmul.f32 %v1958, %v61
    %v2050 = vmul.f32 %v1997, %v61
    %v2051 = vmul.f32 %v1999, %v61
    %v2052 = vmul.f32 %v2038, %v61
    %v2053 = vld [vmem:[%s5] sm:$0x1f]
    %v2055 = vlaneseq
    %v2056 = vshrl.u32 %v2055, 7
    %v2057 = vsub.s32 0, %v2056
    %v2058 = vrot.slane %v2053, %v2057
    %v2059 = vlaneseq
    %v2060 = vshrl.u32 %v2059, 7
    %v2061 = vsub.s32 1, %v2060
    %v2062 = vrot.slane %v2053, %v2061
    %v2063 = vlaneseq
    %v2064 = vshrl.u32 %v2063, 7
    %v2065 = vsub.s32 2, %v2064
    %v2066 = vrot.slane %v2053, %v2065
    %v2067 = vlaneseq
    %v2068 = vshrl.u32 %v2067, 7
    %v2069 = vsub.s32 3, %v2068
    %v2070 = vrot.slane %v2053, %v2069
    %v2071 = vlaneseq
    %v2072 = vshrl.u32 %v2071, 7
    %v2073 = vsub.s32 4, %v2072
    %v2074 = vrot.slane %v2053, %v2073
    %v2080 = vadd.f32 %v2043, %v2058
    %v2081 = vadd.f32 %v2044, %v2062
    %v2082 = vadd.f32 %v2045, %v2066
    %v2083 = vadd.f32 %v2046, %v2070
    %v2084 = vadd.f32 %v2047, %v2074
    %v2085 = vadd.f32 %v2048, %v2058
    %v2086 = vadd.f32 %v2049, %v2062
    %v2087 = vadd.f32 %v2050, %v2066
    %v2088 = vadd.f32 %v2051, %v2070
    %v2089 = vadd.f32 %v2052, %v2074
    %v2090 = vmax.f32 %v2080, 0.0
    %v2091 = vmax.f32 %v2081, 0.0
    %v2092 = vmax.f32 %v2082, 0.0
    %v2093 = vmax.f32 %v2083, 0.0
    %v2094 = vmax.f32 %v2084, 0.0
    %v2095 = vmax.f32 %v2085, 0.0
    %v2096 = vmax.f32 %v2086, 0.0
    %v2097 = vmax.f32 %v2087, 0.0
    %v2098 = vmax.f32 %v2088, 0.0
    %v2099 = vmax.f32 %v2089, 0.0
    %v2100 = vmul.f32 %v69, %v2090
    %v2101 = vmul.f32 %v69, %v2091
    %v2102 = vmul.f32 %v69, %v2092
    %v2103 = vmul.f32 %v69, %v2093
    %v2104 = vmul.f32 %v69, %v2094
    %v2105 = vmul.f32 %v74, %v2095
    %v2106 = vmul.f32 %v74, %v2096
    %v2107 = vmul.f32 %v74, %v2097
    %v2108 = vmul.f32 %v74, %v2098
    %v2109 = vmul.f32 %v74, %v2099
    %v2110 = vpack.c.bf16 %v2105, %v2100
    %v2111 = vpack.c.bf16 %v2106, %v2101
    %v2112 = vpack.c.bf16 %v2107, %v2102
    %v2113 = vpack.c.bf16 %v2108, %v2103
    %v2114 = vpack.c.bf16 %v2109, %v2104
    %v2115 = vld [vmem:[%s6] sm:$0xff]
    %v2116 = vld [vmem:[%s6 + $0x8] sm:$0xff]
    %v2117 = vld [vmem:[%s6 + $0x10] sm:$0xf]
    %v2118 = vld [vmem:[%s6 + $0x14] sm:$0xff]
    %v2119 = vld [vmem:[%s6 + $0x1c] sm:$0xff]
    %v2120 = vld [vmem:[%s6 + $0x24] sm:$0xf]
    %v2121 = vld [vmem:[%s6 + $0x28] sm:$0xff]
    %v2122 = vld [vmem:[%s6 + $0x30] sm:$0xff]
    %v2123 = vld [vmem:[%s6 + $0x38] sm:$0xf]
    %v2124 = vld [vmem:[%s6 + $0x3c] sm:$0xff]
    %v2125 = vld [vmem:[%s6 + $0x44] sm:$0xff]
    %v2126 = vld [vmem:[%s6 + $0x4c] sm:$0xf]
    %v2127 = vld [vmem:[%s6 + $0x50] sm:$0xff]
    %v2128 = vld [vmem:[%s6 + $0x58] sm:$0xff]
    %v2129 = vld [vmem:[%s6 + $0x60] sm:$0xf]
    %v2130 = vld [vmem:[%s6 + $0x64] sm:$0xff]
    %v2131 = vld [vmem:[%s6 + $0x6c] sm:$0xff]
    %v2132 = vld [vmem:[%s6 + $0x74] sm:$0xf]
    %v2133 = vld [vmem:[%s6 + $0x78] sm:$0xff]
    %v2134 = vld [vmem:[%s6 + $0x80] sm:$0xff]
    %v2135 = vld [vmem:[%s6 + $0x88] sm:$0xf]
    %v2136 = vld [vmem:[%s6 + $0x8c] sm:$0xff]
    %v2137 = vld [vmem:[%s6 + $0x94] sm:$0xff]
    %v2138 = vld [vmem:[%s6 + $0x9c] sm:$0xf]
    %v2139 = vld [vmem:[%s6 + $0xa0] sm:$0xff]
    %v2140 = vld [vmem:[%s6 + $0xa8] sm:$0xff]
    %v2141 = vld [vmem:[%s6 + $0xb0] sm:$0xf]
    %v2142 = vld [vmem:[%s6 + $0xb4] sm:$0xff]
    %v2143 = vld [vmem:[%s6 + $0xbc] sm:$0xff]
    %v2144 = vld [vmem:[%s6 + $0xc4] sm:$0xf]
    %v2145 = vld [vmem:[%s6 + $0xc8] sm:$0xff]
    %v2146 = vld [vmem:[%s6 + $0xd0] sm:$0xff]
    %v2147 = vld [vmem:[%s6 + $0xd8] sm:$0xf]
    %v2148 = vld [vmem:[%s6 + $0xdc] sm:$0xff]
    %v2149 = vld [vmem:[%s6 + $0xe4] sm:$0xff]
    %v2150 = vld [vmem:[%s6 + $0xec] sm:$0xf]
    %v2151 = vld [vmem:[%s6 + $0xf0] sm:$0xff]
    %v2152 = vld [vmem:[%s6 + $0xf8] sm:$0xff]
    %v2153 = vld [vmem:[%s6 + $0x100] sm:$0xf]
    %v2154 = vld [vmem:[%s6 + $0x104] sm:$0xff]
    %v2155 = vld [vmem:[%s6 + $0x10c] sm:$0xff]
    %v2156 = vld [vmem:[%s6 + $0x114] sm:$0xf]
    %v2157 = vld [vmem:[%s6 + $0x118] sm:$0xff]
    %v2158 = vld [vmem:[%s6 + $0x120] sm:$0xff]
    %v2159 = vld [vmem:[%s6 + $0x128] sm:$0xf]
    %v2160 = vld [vmem:[%s6 + $0x12c] sm:$0xff]
    %v2161 = vld [vmem:[%s6 + $0x134] sm:$0xff]
    %v2162 = vld [vmem:[%s6 + $0x13c] sm:$0xf]
    %v2163 = vld [vmem:[%s6 + $0x140] sm:$0xff]
    %v2164 = vld [vmem:[%s6 + $0x148] sm:$0xff]
    %v2165 = vld [vmem:[%s6 + $0x150] sm:$0xf]
    %v2166 = vld [vmem:[%s6 + $0x154] sm:$0xff]
    %v2167 = vld [vmem:[%s6 + $0x15c] sm:$0xff]
    %v2168 = vld [vmem:[%s6 + $0x164] sm:$0xf]
    %v2169 = vld [vmem:[%s6 + $0x168] sm:$0xff]
    %v2170 = vld [vmem:[%s6 + $0x170] sm:$0xff]
    %v2171 = vld [vmem:[%s6 + $0x178] sm:$0xf]
    %v2172 = vld [vmem:[%s6 + $0x17c] sm:$0xff]
    %v2173 = vld [vmem:[%s6 + $0x184] sm:$0xff]
    %v2174 = vld [vmem:[%s6 + $0x18c] sm:$0xf]
    %v2175 = vld [vmem:[%s6 + $0x190] sm:$0xff]
    %v2176 = vld [vmem:[%s6 + $0x198] sm:$0xff]
    %v2177 = vld [vmem:[%s6 + $0x1a0] sm:$0xf]
    %v2178 = vld [vmem:[%s6 + $0x1a4] sm:$0xff]
    %v2179 = vld [vmem:[%s6 + $0x1ac] sm:$0xff]
    %v2180 = vld [vmem:[%s6 + $0x1b4] sm:$0xf]
    %v2181 = vld [vmem:[%s6 + $0x1b8] sm:$0xff]
    %v2182 = vld [vmem:[%s6 + $0x1c0] sm:$0xff]
    %v2183 = vld [vmem:[%s6 + $0x1c8] sm:$0xf]
    %v2184 = vld [vmem:[%s6 + $0x1cc] sm:$0xff]
    %v2185 = vld [vmem:[%s6 + $0x1d4] sm:$0xff]
    %v2186 = vld [vmem:[%s6 + $0x1dc] sm:$0xf]
    %v2187 = vld [vmem:[%s6 + $0x1e0] sm:$0xff]
    %v2188 = vld [vmem:[%s6 + $0x1e8] sm:$0xff]
    %v2189 = vld [vmem:[%s6 + $0x1f0] sm:$0xf]
    %v2190 = vld [vmem:[%s6 + $0x1f4] sm:$0xff]
    %v2191 = vld [vmem:[%s6 + $0x1fc] sm:$0xff]
    %v2192 = vld [vmem:[%s6 + $0x204] sm:$0xf]
    %v2193 = vld [vmem:[%s6 + $0x208] sm:$0xff]
    %v2194 = vld [vmem:[%s6 + $0x210] sm:$0xff]
    %v2195 = vld [vmem:[%s6 + $0x218] sm:$0xf]
    %v2196 = vld [vmem:[%s6 + $0x21c] sm:$0xff]
    %v2197 = vld [vmem:[%s6 + $0x224] sm:$0xff]
    %v2198 = vld [vmem:[%s6 + $0x22c] sm:$0xf]
    %v2199 = vld [vmem:[%s6 + $0x230] sm:$0xff]
    %v2200 = vld [vmem:[%s6 + $0x238] sm:$0xff]
    %v2201 = vld [vmem:[%s6 + $0x240] sm:$0xf]
    %v2202 = vld [vmem:[%s6 + $0x244] sm:$0xff]
    %v2203 = vld [vmem:[%s6 + $0x24c] sm:$0xff]
    %v2204 = vld [vmem:[%s6 + $0x254] sm:$0xf]
    %v2205 = vld [vmem:[%s6 + $0x258] sm:$0xff]
    %v2206 = vld [vmem:[%s6 + $0x260] sm:$0xff]
    %v2207 = vld [vmem:[%s6 + $0x268] sm:$0xf]
    %v2208 = vld [vmem:[%s6 + $0x26c] sm:$0xff]
    %v2209 = vld [vmem:[%s6 + $0x274] sm:$0xff]
    %v2210 = vld [vmem:[%s6 + $0x27c] sm:$0xf]
    %v2211 = vld [vmem:[%s6 + $0x280] sm:$0xff]
    %v2212 = vld [vmem:[%s6 + $0x288] sm:$0xff]
    %v2213 = vld [vmem:[%s6 + $0x290] sm:$0xf]
    %v2214 = vld [vmem:[%s6 + $0x294] sm:$0xff]
    %v2215 = vld [vmem:[%s6 + $0x29c] sm:$0xff]
    %v2216 = vld [vmem:[%s6 + $0x2a4] sm:$0xf]
    %v2217 = vld [vmem:[%s6 + $0x2a8] sm:$0xff]
    %v2218 = vld [vmem:[%s6 + $0x2b0] sm:$0xff]
    %v2219 = vld [vmem:[%s6 + $0x2b8] sm:$0xf]
    %v2220 = vld [vmem:[%s6 + $0x2bc] sm:$0xff]
    %v2221 = vld [vmem:[%s6 + $0x2c4] sm:$0xff]
    %v2222 = vld [vmem:[%s6 + $0x2cc] sm:$0xf]
    %v2223 = vld [vmem:[%s6 + $0x2d0] sm:$0xff]
    %v2224 = vld [vmem:[%s6 + $0x2d8] sm:$0xff]
    %v2225 = vld [vmem:[%s6 + $0x2e0] sm:$0xf]
    %v2226 = vld [vmem:[%s6 + $0x2e4] sm:$0xff]
    %v2227 = vld [vmem:[%s6 + $0x2ec] sm:$0xff]
    %v2228 = vld [vmem:[%s6 + $0x2f4] sm:$0xf]
    %v2229 = vld [vmem:[%s6 + $0x2f8] sm:$0xff]
    %v2230 = vld [vmem:[%s6 + $0x300] sm:$0xff]
    %v2231 = vld [vmem:[%s6 + $0x308] sm:$0xf]
    %v2232 = vld [vmem:[%s6 + $0x30c] sm:$0xff]
    %v2233 = vld [vmem:[%s6 + $0x314] sm:$0xff]
    %v2234 = vld [vmem:[%s6 + $0x31c] sm:$0xf]
    %v2235 = vld [vmem:[%s6 + $0x320] sm:$0xff]
    %v2236 = vld [vmem:[%s6 + $0x328] sm:$0xff]
    %v2237 = vld [vmem:[%s6 + $0x330] sm:$0xf]
    %v2238 = vld [vmem:[%s6 + $0x334] sm:$0xff]
    %v2239 = vld [vmem:[%s6 + $0x33c] sm:$0xff]
    %v2240 = vld [vmem:[%s6 + $0x344] sm:$0xf]
    %v2241 = vld [vmem:[%s6 + $0x348] sm:$0xff]
    %v2242 = vld [vmem:[%s6 + $0x350] sm:$0xff]
    %v2243 = vld [vmem:[%s6 + $0x358] sm:$0xf]
    %v2244 = vld [vmem:[%s6 + $0x35c] sm:$0xff]
    %v2245 = vld [vmem:[%s6 + $0x364] sm:$0xff]
    %v2246 = vld [vmem:[%s6 + $0x36c] sm:$0xf]
    %v2247 = vld [vmem:[%s6 + $0x370] sm:$0xff]
    %v2248 = vld [vmem:[%s6 + $0x378] sm:$0xff]
    %v2249 = vld [vmem:[%s6 + $0x380] sm:$0xf]
    %v2250 = vld [vmem:[%s6 + $0x384] sm:$0xff]
    %v2251 = vld [vmem:[%s6 + $0x38c] sm:$0xff]
    %v2252 = vld [vmem:[%s6 + $0x394] sm:$0xf]
    %v2253 = vld [vmem:[%s6 + $0x398] sm:$0xff]
    %v2254 = vld [vmem:[%s6 + $0x3a0] sm:$0xff]
    %v2255 = vld [vmem:[%s6 + $0x3a8] sm:$0xf]
    %v2256 = vld [vmem:[%s6 + $0x3ac] sm:$0xff]
    %v2257 = vld [vmem:[%s6 + $0x3b4] sm:$0xff]
    %v2258 = vld [vmem:[%s6 + $0x3bc] sm:$0xf]
    %v2259 = vld [vmem:[%s6 + $0x3c0] sm:$0xff]
    %v2260 = vld [vmem:[%s6 + $0x3c8] sm:$0xff]
    %v2261 = vld [vmem:[%s6 + $0x3d0] sm:$0xf]
    %v2262 = vld [vmem:[%s6 + $0x3d4] sm:$0xff]
    %v2263 = vld [vmem:[%s6 + $0x3dc] sm:$0xff]
    %v2264 = vld [vmem:[%s6 + $0x3e4] sm:$0xf]
    %v2265 = vld [vmem:[%s6 + $0x3e8] sm:$0xff]
    %v2266 = vld [vmem:[%s6 + $0x3f0] sm:$0xff]
    %v2267 = vld [vmem:[%s6 + $0x3f8] sm:$0xf]
    %v2268 = vld [vmem:[%s6 + $0x3fc] sm:$0xff]
    %v2269 = vld [vmem:[%s6 + $0x404] sm:$0xff]
    %v2270 = vld [vmem:[%s6 + $0x40c] sm:$0xf]
    %v2271 = vld [vmem:[%s6 + $0x410] sm:$0xff]
    %v2272 = vld [vmem:[%s6 + $0x418] sm:$0xff]
    %v2273 = vld [vmem:[%s6 + $0x420] sm:$0xf]
    %v2274 = vld [vmem:[%s6 + $0x424] sm:$0xff]
    %v2275 = vld [vmem:[%s6 + $0x42c] sm:$0xff]
    %v2276 = vld [vmem:[%s6 + $0x434] sm:$0xf]
    %v2277 = vld [vmem:[%s6 + $0x438] sm:$0xff]
    %v2278 = vld [vmem:[%s6 + $0x440] sm:$0xff]
    %v2279 = vld [vmem:[%s6 + $0x448] sm:$0xf]
    %v2280 = vld [vmem:[%s6 + $0x44c] sm:$0xff]
    %v2281 = vld [vmem:[%s6 + $0x454] sm:$0xff]
    %v2282 = vld [vmem:[%s6 + $0x45c] sm:$0xf]
    %v2283 = vld [vmem:[%s6 + $0x460] sm:$0xff]
    %v2284 = vld [vmem:[%s6 + $0x468] sm:$0xff]
    %v2285 = vld [vmem:[%s6 + $0x470] sm:$0xf]
    %v2286 = vld [vmem:[%s6 + $0x474] sm:$0xff]
    %v2287 = vld [vmem:[%s6 + $0x47c] sm:$0xff]
    %v2288 = vld [vmem:[%s6 + $0x484] sm:$0xf]
    %v2289 = vld [vmem:[%s6 + $0x488] sm:$0xff]
    %v2290 = vld [vmem:[%s6 + $0x490] sm:$0xff]
    %v2291 = vld [vmem:[%s6 + $0x498] sm:$0xf]
    %v2292 = vld [vmem:[%s6 + $0x49c] sm:$0xff]
    %v2293 = vld [vmem:[%s6 + $0x4a4] sm:$0xff]
    %v2294 = vld [vmem:[%s6 + $0x4ac] sm:$0xf]
    %v2295 = vld [vmem:[%s6 + $0x4b0] sm:$0xff]
    %v2296 = vld [vmem:[%s6 + $0x4b8] sm:$0xff]
    %v2297 = vld [vmem:[%s6 + $0x4c0] sm:$0xf]
    %v2298 = vld [vmem:[%s6 + $0x4c4] sm:$0xff]
    %v2299 = vld [vmem:[%s6 + $0x4cc] sm:$0xff]
    %v2300 = vld [vmem:[%s6 + $0x4d4] sm:$0xf]
    %v2301 = vld [vmem:[%s6 + $0x4d8] sm:$0xff]
    %v2302 = vld [vmem:[%s6 + $0x4e0] sm:$0xff]
    %v2303 = vld [vmem:[%s6 + $0x4e8] sm:$0xf]
    %v2304 = vld [vmem:[%s6 + $0x4ec] sm:$0xff]
    %v2305 = vld [vmem:[%s6 + $0x4f4] sm:$0xff]
    %v2306 = vld [vmem:[%s6 + $0x4fc] sm:$0xf]
    %v2307 = vld [vmem:[%s6 + $0x500] sm:$0xff]
    %v2308 = vld [vmem:[%s6 + $0x508] sm:$0xff]
    %v2309 = vld [vmem:[%s6 + $0x510] sm:$0xf]
    %v2310 = vld [vmem:[%s6 + $0x514] sm:$0xff]
    %v2311 = vld [vmem:[%s6 + $0x51c] sm:$0xff]
    %v2312 = vld [vmem:[%s6 + $0x524] sm:$0xf]
    %v2313 = vld [vmem:[%s6 + $0x528] sm:$0xff]
    %v2314 = vld [vmem:[%s6 + $0x530] sm:$0xff]
    %v2315 = vld [vmem:[%s6 + $0x538] sm:$0xf]
    %v2316 = vld [vmem:[%s6 + $0x53c] sm:$0xff]
    %v2317 = vld [vmem:[%s6 + $0x544] sm:$0xff]
    %v2318 = vld [vmem:[%s6 + $0x54c] sm:$0xf]
    %v2319 = vld [vmem:[%s6 + $0x550] sm:$0xff]
    %v2320 = vld [vmem:[%s6 + $0x558] sm:$0xff]
    %v2321 = vld [vmem:[%s6 + $0x560] sm:$0xf]
    %v2322 = vld [vmem:[%s6 + $0x564] sm:$0xff]
    %v2323 = vld [vmem:[%s6 + $0x56c] sm:$0xff]
    %v2324 = vld [vmem:[%s6 + $0x574] sm:$0xf]
    %v2325 = vld [vmem:[%s6 + $0x578] sm:$0xff]
    %v2326 = vld [vmem:[%s6 + $0x580] sm:$0xff]
    %v2327 = vld [vmem:[%s6 + $0x588] sm:$0xf]
    %v2328 = vld [vmem:[%s6 + $0x58c] sm:$0xff]
    %v2329 = vld [vmem:[%s6 + $0x594] sm:$0xff]
    %v2330 = vld [vmem:[%s6 + $0x59c] sm:$0xf]
    %v2331 = vld [vmem:[%s6 + $0x5a0] sm:$0xff]
    %v2332 = vld [vmem:[%s6 + $0x5a8] sm:$0xff]
    %v2333 = vld [vmem:[%s6 + $0x5b0] sm:$0xf]
    %v2334 = vld [vmem:[%s6 + $0x5b4] sm:$0xff]
    %v2335 = vld [vmem:[%s6 + $0x5bc] sm:$0xff]
    %v2336 = vld [vmem:[%s6 + $0x5c4] sm:$0xf]
    %v2337 = vld [vmem:[%s6 + $0x5c8] sm:$0xff]
    %v2338 = vld [vmem:[%s6 + $0x5d0] sm:$0xff]
    %v2339 = vld [vmem:[%s6 + $0x5d8] sm:$0xf]
    %v2340 = vld [vmem:[%s6 + $0x5dc] sm:$0xff]
    %v2341 = vld [vmem:[%s6 + $0x5e4] sm:$0xff]
    %v2342 = vld [vmem:[%s6 + $0x5ec] sm:$0xf]
    %v2343 = vld [vmem:[%s6 + $0x5f0] sm:$0xff]
    %v2344 = vld [vmem:[%s6 + $0x5f8] sm:$0xff]
    %v2345 = vld [vmem:[%s6 + $0x600] sm:$0xf]
    %v2346 = vld [vmem:[%s6 + $0x604] sm:$0xff]
    %v2347 = vld [vmem:[%s6 + $0x60c] sm:$0xff]
    %v2348 = vld [vmem:[%s6 + $0x614] sm:$0xf]
    %v2349 = vld [vmem:[%s6 + $0x618] sm:$0xff]
    %v2350 = vld [vmem:[%s6 + $0x620] sm:$0xff]
    %v2351 = vld [vmem:[%s6 + $0x628] sm:$0xf]
    %v2352 = vld [vmem:[%s6 + $0x62c] sm:$0xff]
    %v2353 = vld [vmem:[%s6 + $0x634] sm:$0xff]
    %v2354 = vld [vmem:[%s6 + $0x63c] sm:$0xf]
    %v2595 = vunpack.c.l.b16 %v2115
    %v2596 = vunpack.c.h.b16 %v2115
    %v2597 = vunpack.c.l.b16 %v2116
    %v2598 = vunpack.c.h.b16 %v2116
    %v2599 = vunpack.c.l.b16 %v2117
    %v2600 = vunpack.c.l.b16 %v2118
    %v2601 = vunpack.c.h.b16 %v2118
    %v2602 = vunpack.c.l.b16 %v2119
    %v2603 = vunpack.c.h.b16 %v2119
    %v2604 = vunpack.c.l.b16 %v2120
    %v2605 = vunpack.c.l.b16 %v2121
    %v2606 = vunpack.c.h.b16 %v2121
    %v2607 = vunpack.c.l.b16 %v2122
    %v2608 = vunpack.c.h.b16 %v2122
    %v2609 = vunpack.c.l.b16 %v2123
    %v2610 = vunpack.c.l.b16 %v2124
    %v2611 = vunpack.c.h.b16 %v2124
    %v2612 = vunpack.c.l.b16 %v2125
    %v2613 = vunpack.c.h.b16 %v2125
    %v2614 = vunpack.c.l.b16 %v2126
    %v2615 = vunpack.c.l.b16 %v2127
    %v2616 = vunpack.c.h.b16 %v2127
    %v2617 = vunpack.c.l.b16 %v2128
    %v2618 = vunpack.c.h.b16 %v2128
    %v2619 = vunpack.c.l.b16 %v2129
    %v2620 = vunpack.c.l.b16 %v2130
    %v2621 = vunpack.c.h.b16 %v2130
    %v2622 = vunpack.c.l.b16 %v2131
    %v2623 = vunpack.c.h.b16 %v2131
    %v2624 = vunpack.c.l.b16 %v2132
    %v2625 = vunpack.c.l.b16 %v2133
    %v2626 = vunpack.c.h.b16 %v2133
    %v2627 = vunpack.c.l.b16 %v2134
    %v2628 = vunpack.c.h.b16 %v2134
    %v2629 = vunpack.c.l.b16 %v2135
    %v2630 = vunpack.c.l.b16 %v2136
    %v2631 = vunpack.c.h.b16 %v2136
    %v2632 = vunpack.c.l.b16 %v2137
    %v2633 = vunpack.c.h.b16 %v2137
    %v2634 = vunpack.c.l.b16 %v2138
    %v2635 = vunpack.c.l.b16 %v2139
    %v2636 = vunpack.c.h.b16 %v2139
    %v2637 = vunpack.c.l.b16 %v2140
    %v2638 = vunpack.c.h.b16 %v2140
    %v2639 = vunpack.c.l.b16 %v2141
    %v2640 = vunpack.c.l.b16 %v2142
    %v2641 = vunpack.c.h.b16 %v2142
    %v2642 = vunpack.c.l.b16 %v2143
    %v2643 = vunpack.c.h.b16 %v2143
    %v2644 = vunpack.c.l.b16 %v2144
    %v2645 = vunpack.c.l.b16 %v2145
    %v2646 = vunpack.c.h.b16 %v2145
    %v2647 = vunpack.c.l.b16 %v2146
    %v2648 = vunpack.c.h.b16 %v2146
    %v2649 = vunpack.c.l.b16 %v2147
    %v2650 = vunpack.c.l.b16 %v2148
    %v2651 = vunpack.c.h.b16 %v2148
    %v2652 = vunpack.c.l.b16 %v2149
    %v2653 = vunpack.c.h.b16 %v2149
    %v2654 = vunpack.c.l.b16 %v2150
    %v2655 = vunpack.c.l.b16 %v2151
    %v2656 = vunpack.c.h.b16 %v2151
    %v2657 = vunpack.c.l.b16 %v2152
    %v2658 = vunpack.c.h.b16 %v2152
    %v2659 = vunpack.c.l.b16 %v2153
    %v2660 = vunpack.c.l.b16 %v2154
    %v2661 = vunpack.c.h.b16 %v2154
    %v2662 = vunpack.c.l.b16 %v2155
    %v2663 = vunpack.c.h.b16 %v2155
    %v2664 = vunpack.c.l.b16 %v2156
    %v2665 = vunpack.c.l.b16 %v2157
    %v2666 = vunpack.c.h.b16 %v2157
    %v2667 = vunpack.c.l.b16 %v2158
    %v2668 = vunpack.c.h.b16 %v2158
    %v2669 = vunpack.c.l.b16 %v2159
    %v2670 = vunpack.c.l.b16 %v2160
    %v2671 = vunpack.c.h.b16 %v2160
    %v2672 = vunpack.c.l.b16 %v2161
    %v2673 = vunpack.c.h.b16 %v2161
    %v2674 = vunpack.c.l.b16 %v2162
    %v2675 = vunpack.c.l.b16 %v2163
    %v2676 = vunpack.c.h.b16 %v2163
    %v2677 = vunpack.c.l.b16 %v2164
    %v2678 = vunpack.c.h.b16 %v2164
    %v2679 = vunpack.c.l.b16 %v2165
    %v2680 = vunpack.c.l.b16 %v2166
    %v2681 = vunpack.c.h.b16 %v2166
    %v2682 = vunpack.c.l.b16 %v2167
    %v2683 = vunpack.c.h.b16 %v2167
    %v2684 = vunpack.c.l.b16 %v2168
    %v2685 = vunpack.c.l.b16 %v2169
    %v2686 = vunpack.c.h.b16 %v2169
    %v2687 = vunpack.c.l.b16 %v2170
    %v2688 = vunpack.c.h.b16 %v2170
    %v2689 = vunpack.c.l.b16 %v2171
    %v2690 = vunpack.c.l.b16 %v2172
    %v2691 = vunpack.c.h.b16 %v2172
    %v2692 = vunpack.c.l.b16 %v2173
    %v2693 = vunpack.c.h.b16 %v2173
    %v2694 = vunpack.c.l.b16 %v2174
    %v2695 = vunpack.c.l.b16 %v2175
    %v2696 = vunpack.c.h.b16 %v2175
    %v2697 = vunpack.c.l.b16 %v2176
    %v2698 = vunpack.c.h.b16 %v2176
    %v2699 = vunpack.c.l.b16 %v2177
    %v2700 = vunpack.c.l.b16 %v2178
    %v2701 = vunpack.c.h.b16 %v2178
    %v2702 = vunpack.c.l.b16 %v2179
    %v2703 = vunpack.c.h.b16 %v2179
    %v2704 = vunpack.c.l.b16 %v2180
    %v2705 = vunpack.c.l.b16 %v2181
    %v2706 = vunpack.c.h.b16 %v2181
    %v2707 = vunpack.c.l.b16 %v2182
    %v2708 = vunpack.c.h.b16 %v2182
    %v2709 = vunpack.c.l.b16 %v2183
    %v2710 = vunpack.c.l.b16 %v2184
    %v2711 = vunpack.c.h.b16 %v2184
    %v2712 = vunpack.c.l.b16 %v2185
    %v2713 = vunpack.c.h.b16 %v2185
    %v2714 = vunpack.c.l.b16 %v2186
    %v2715 = vunpack.c.l.b16 %v2187
    %v2716 = vunpack.c.h.b16 %v2187
    %v2717 = vunpack.c.l.b16 %v2188
    %v2718 = vunpack.c.h.b16 %v2188
    %v2719 = vunpack.c.l.b16 %v2189
    %v2720 = vunpack.c.l.b16 %v2190
    %v2721 = vunpack.c.h.b16 %v2190
    %v2722 = vunpack.c.l.b16 %v2191
    %v2723 = vunpack.c.h.b16 %v2191
    %v2724 = vunpack.c.l.b16 %v2192
    %v2725 = vunpack.c.l.b16 %v2193
    %v2726 = vunpack.c.h.b16 %v2193
    %v2727 = vunpack.c.l.b16 %v2194
    %v2728 = vunpack.c.h.b16 %v2194
    %v2729 = vunpack.c.l.b16 %v2195
    %v2730 = vunpack.c.l.b16 %v2196
    %v2731 = vunpack.c.h.b16 %v2196
    %v2732 = vunpack.c.l.b16 %v2197
    %v2733 = vunpack.c.h.b16 %v2197
    %v2734 = vunpack.c.l.b16 %v2198
    %v2735 = vunpack.c.l.b16 %v2199
    %v2736 = vunpack.c.h.b16 %v2199
    %v2737 = vunpack.c.l.b16 %v2200
    %v2738 = vunpack.c.h.b16 %v2200
    %v2739 = vunpack.c.l.b16 %v2201
    %v2740 = vunpack.c.l.b16 %v2202
    %v2741 = vunpack.c.h.b16 %v2202
    %v2742 = vunpack.c.l.b16 %v2203
    %v2743 = vunpack.c.h.b16 %v2203
    %v2744 = vunpack.c.l.b16 %v2204
    %v2745 = vunpack.c.l.b16 %v2205
    %v2746 = vunpack.c.h.b16 %v2205
    %v2747 = vunpack.c.l.b16 %v2206
    %v2748 = vunpack.c.h.b16 %v2206
    %v2749 = vunpack.c.l.b16 %v2207
    %v2750 = vunpack.c.l.b16 %v2208
    %v2751 = vunpack.c.h.b16 %v2208
    %v2752 = vunpack.c.l.b16 %v2209
    %v2753 = vunpack.c.h.b16 %v2209
    %v2754 = vunpack.c.l.b16 %v2210
    %v2755 = vunpack.c.l.b16 %v2211
    %v2756 = vunpack.c.h.b16 %v2211
    %v2757 = vunpack.c.l.b16 %v2212
    %v2758 = vunpack.c.h.b16 %v2212
    %v2759 = vunpack.c.l.b16 %v2213
    %v2760 = vunpack.c.l.b16 %v2214
    %v2761 = vunpack.c.h.b16 %v2214
    %v2762 = vunpack.c.l.b16 %v2215
    %v2763 = vunpack.c.h.b16 %v2215
    %v2764 = vunpack.c.l.b16 %v2216
    %v2765 = vunpack.c.l.b16 %v2217
    %v2766 = vunpack.c.h.b16 %v2217
    %v2767 = vunpack.c.l.b16 %v2218
    %v2768 = vunpack.c.h.b16 %v2218
    %v2769 = vunpack.c.l.b16 %v2219
    %v2770 = vunpack.c.l.b16 %v2220
    %v2771 = vunpack.c.h.b16 %v2220
    %v2772 = vunpack.c.l.b16 %v2221
    %v2773 = vunpack.c.h.b16 %v2221
    %v2774 = vunpack.c.l.b16 %v2222
    %v2775 = vunpack.c.l.b16 %v2223
    %v2776 = vunpack.c.h.b16 %v2223
    %v2777 = vunpack.c.l.b16 %v2224
    %v2778 = vunpack.c.h.b16 %v2224
    %v2779 = vunpack.c.l.b16 %v2225
    %v2780 = vunpack.c.l.b16 %v2226
    %v2781 = vunpack.c.h.b16 %v2226
    %v2782 = vunpack.c.l.b16 %v2227
    %v2783 = vunpack.c.h.b16 %v2227
    %v2784 = vunpack.c.l.b16 %v2228
    %v2785 = vunpack.c.l.b16 %v2229
    %v2786 = vunpack.c.h.b16 %v2229
    %v2787 = vunpack.c.l.b16 %v2230
    %v2788 = vunpack.c.h.b16 %v2230
    %v2789 = vunpack.c.l.b16 %v2231
    %v2790 = vunpack.c.l.b16 %v2232
    %v2791 = vunpack.c.h.b16 %v2232
    %v2792 = vunpack.c.l.b16 %v2233
    %v2793 = vunpack.c.h.b16 %v2233
    %v2794 = vunpack.c.l.b16 %v2234
    %v2795 = vunpack.c.l.b16 %v2235
    %v2796 = vunpack.c.h.b16 %v2235
    %v2797 = vunpack.c.l.b16 %v2236
    %v2798 = vunpack.c.h.b16 %v2236
    %v2799 = vunpack.c.l.b16 %v2237
    %v2800 = vunpack.c.l.b16 %v2238
    %v2801 = vunpack.c.h.b16 %v2238
    %v2802 = vunpack.c.l.b16 %v2239
    %v2803 = vunpack.c.h.b16 %v2239
    %v2804 = vunpack.c.l.b16 %v2240
    %v2805 = vunpack.c.l.b16 %v2241
    %v2806 = vunpack.c.h.b16 %v2241
    %v2807 = vunpack.c.l.b16 %v2242
    %v2808 = vunpack.c.h.b16 %v2242
    %v2809 = vunpack.c.l.b16 %v2243
    %v2810 = vunpack.c.l.b16 %v2244
    %v2811 = vunpack.c.h.b16 %v2244
    %v2812 = vunpack.c.l.b16 %v2245
    %v2813 = vunpack.c.h.b16 %v2245
    %v2814 = vunpack.c.l.b16 %v2246
    %v2815 = vunpack.c.l.b16 %v2247
    %v2816 = vunpack.c.h.b16 %v2247
    %v2817 = vunpack.c.l.b16 %v2248
    %v2818 = vunpack.c.h.b16 %v2248
    %v2819 = vunpack.c.l.b16 %v2249
    %v2820 = vunpack.c.l.b16 %v2250
    %v2821 = vunpack.c.h.b16 %v2250
    %v2822 = vunpack.c.l.b16 %v2251
    %v2823 = vunpack.c.h.b16 %v2251
    %v2824 = vunpack.c.l.b16 %v2252
    %v2825 = vunpack.c.l.b16 %v2253
    %v2826 = vunpack.c.h.b16 %v2253
    %v2827 = vunpack.c.l.b16 %v2254
    %v2828 = vunpack.c.h.b16 %v2254
    %v2829 = vunpack.c.l.b16 %v2255
    %v2830 = vunpack.c.l.b16 %v2256
    %v2831 = vunpack.c.h.b16 %v2256
    %v2832 = vunpack.c.l.b16 %v2257
    %v2833 = vunpack.c.h.b16 %v2257
    %v2834 = vunpack.c.l.b16 %v2258
    %v2835 = vunpack.c.l.b16 %v2259
    %v2836 = vunpack.c.h.b16 %v2259
    %v2837 = vunpack.c.l.b16 %v2260
    %v2838 = vunpack.c.h.b16 %v2260
    %v2839 = vunpack.c.l.b16 %v2261
    %v2840 = vunpack.c.l.b16 %v2262
    %v2841 = vunpack.c.h.b16 %v2262
    %v2842 = vunpack.c.l.b16 %v2263
    %v2843 = vunpack.c.h.b16 %v2263
    %v2844 = vunpack.c.l.b16 %v2264
    %v2845 = vunpack.c.l.b16 %v2265
    %v2846 = vunpack.c.h.b16 %v2265
    %v2847 = vunpack.c.l.b16 %v2266
    %v2848 = vunpack.c.h.b16 %v2266
    %v2849 = vunpack.c.l.b16 %v2267
    %v2850 = vunpack.c.l.b16 %v2268
    %v2851 = vunpack.c.h.b16 %v2268
    %v2852 = vunpack.c.l.b16 %v2269
    %v2853 = vunpack.c.h.b16 %v2269
    %v2854 = vunpack.c.l.b16 %v2270
    %v2855 = vunpack.c.l.b16 %v2271
    %v2856 = vunpack.c.h.b16 %v2271
    %v2857 = vunpack.c.l.b16 %v2272
    %v2858 = vunpack.c.h.b16 %v2272
    %v2859 = vunpack.c.l.b16 %v2273
    %v2860 = vunpack.c.l.b16 %v2274
    %v2861 = vunpack.c.h.b16 %v2274
    %v2862 = vunpack.c.l.b16 %v2275
    %v2863 = vunpack.c.h.b16 %v2275
    %v2864 = vunpack.c.l.b16 %v2276
    %v2865 = vunpack.c.l.b16 %v2277
    %v2866 = vunpack.c.h.b16 %v2277
    %v2867 = vunpack.c.l.b16 %v2278
    %v2868 = vunpack.c.h.b16 %v2278
    %v2869 = vunpack.c.l.b16 %v2279
    %v2870 = vunpack.c.l.b16 %v2280
    %v2871 = vunpack.c.h.b16 %v2280
    %v2872 = vunpack.c.l.b16 %v2281
    %v2873 = vunpack.c.h.b16 %v2281
    %v2874 = vunpack.c.l.b16 %v2282
    %v2875 = vunpack.c.l.b16 %v2283
    %v2876 = vunpack.c.h.b16 %v2283
    %v2877 = vunpack.c.l.b16 %v2284
    %v2878 = vunpack.c.h.b16 %v2284
    %v2879 = vunpack.c.l.b16 %v2285
    %v2880 = vunpack.c.l.b16 %v2286
    %v2881 = vunpack.c.h.b16 %v2286
    %v2882 = vunpack.c.l.b16 %v2287
    %v2883 = vunpack.c.h.b16 %v2287
    %v2884 = vunpack.c.l.b16 %v2288
    %v2885 = vunpack.c.l.b16 %v2289
    %v2886 = vunpack.c.h.b16 %v2289
    %v2887 = vunpack.c.l.b16 %v2290
    %v2888 = vunpack.c.h.b16 %v2290
    %v2889 = vunpack.c.l.b16 %v2291
    %v2890 = vunpack.c.l.b16 %v2292
    %v2891 = vunpack.c.h.b16 %v2292
    %v2892 = vunpack.c.l.b16 %v2293
    %v2893 = vunpack.c.h.b16 %v2293
    %v2894 = vunpack.c.l.b16 %v2294
    %v2895 = vunpack.c.l.b16 %v2295
    %v2896 = vunpack.c.h.b16 %v2295
    %v2897 = vunpack.c.l.b16 %v2296
    %v2898 = vunpack.c.h.b16 %v2296
    %v2899 = vunpack.c.l.b16 %v2297
    %v2900 = vunpack.c.l.b16 %v2298
    %v2901 = vunpack.c.h.b16 %v2298
    %v2902 = vunpack.c.l.b16 %v2299
    %v2903 = vunpack.c.h.b16 %v2299
    %v2904 = vunpack.c.l.b16 %v2300
    %v2905 = vunpack.c.l.b16 %v2301
    %v2906 = vunpack.c.h.b16 %v2301
    %v2907 = vunpack.c.l.b16 %v2302
    %v2908 = vunpack.c.h.b16 %v2302
    %v2909 = vunpack.c.l.b16 %v2303
    %v2910 = vunpack.c.l.b16 %v2304
    %v2911 = vunpack.c.h.b16 %v2304
    %v2912 = vunpack.c.l.b16 %v2305
    %v2913 = vunpack.c.h.b16 %v2305
    %v2914 = vunpack.c.l.b16 %v2306
    %v2915 = vunpack.c.l.b16 %v2307
    %v2916 = vunpack.c.h.b16 %v2307
    %v2917 = vunpack.c.l.b16 %v2308
    %v2918 = vunpack.c.h.b16 %v2308
    %v2919 = vunpack.c.l.b16 %v2309
    %v2920 = vunpack.c.l.b16 %v2310
    %v2921 = vunpack.c.h.b16 %v2310
    %v2922 = vunpack.c.l.b16 %v2311
    %v2923 = vunpack.c.h.b16 %v2311
    %v2924 = vunpack.c.l.b16 %v2312
    %v2925 = vunpack.c.l.b16 %v2313
    %v2926 = vunpack.c.h.b16 %v2313
    %v2927 = vunpack.c.l.b16 %v2314
    %v2928 = vunpack.c.h.b16 %v2314
    %v2929 = vunpack.c.l.b16 %v2315
    %v2930 = vunpack.c.l.b16 %v2316
    %v2931 = vunpack.c.h.b16 %v2316
    %v2932 = vunpack.c.l.b16 %v2317
    %v2933 = vunpack.c.h.b16 %v2317
    %v2934 = vunpack.c.l.b16 %v2318
    %v2935 = vunpack.c.l.b16 %v2319
    %v2936 = vunpack.c.h.b16 %v2319
    %v2937 = vunpack.c.l.b16 %v2320
    %v2938 = vunpack.c.h.b16 %v2320
    %v2939 = vunpack.c.l.b16 %v2321
    %v2940 = vunpack.c.l.b16 %v2322
    %v2941 = vunpack.c.h.b16 %v2322
    %v2942 = vunpack.c.l.b16 %v2323
    %v2943 = vunpack.c.h.b16 %v2323
    %v2944 = vunpack.c.l.b16 %v2324
    %v2945 = vunpack.c.l.b16 %v2325
    %v2946 = vunpack.c.h.b16 %v2325
    %v2947 = vunpack.c.l.b16 %v2326
    %v2948 = vunpack.c.h.b16 %v2326
    %v2949 = vunpack.c.l.b16 %v2327
    %v2950 = vunpack.c.l.b16 %v2328
    %v2951 = vunpack.c.h.b16 %v2328
    %v2952 = vunpack.c.l.b16 %v2329
    %v2953 = vunpack.c.h.b16 %v2329
    %v2954 = vunpack.c.l.b16 %v2330
    %v2955 = vunpack.c.l.b16 %v2331
    %v2956 = vunpack.c.h.b16 %v2331
    %v2957 = vunpack.c.l.b16 %v2332
    %v2958 = vunpack.c.h.b16 %v2332
    %v2959 = vunpack.c.l.b16 %v2333
    %v2960 = vunpack.c.l.b16 %v2334
    %v2961 = vunpack.c.h.b16 %v2334
    %v2962 = vunpack.c.l.b16 %v2335
    %v2963 = vunpack.c.h.b16 %v2335
    %v2964 = vunpack.c.l.b16 %v2336
    %v2965 = vunpack.c.l.b16 %v2337
    %v2966 = vunpack.c.h.b16 %v2337
    %v2967 = vunpack.c.l.b16 %v2338
    %v2968 = vunpack.c.h.b16 %v2338
    %v2969 = vunpack.c.l.b16 %v2339
    %v2970 = vunpack.c.l.b16 %v2340
    %v2971 = vunpack.c.h.b16 %v2340
    %v2972 = vunpack.c.l.b16 %v2341
    %v2973 = vunpack.c.h.b16 %v2341
    %v2974 = vunpack.c.l.b16 %v2342
    %v2975 = vunpack.c.l.b16 %v2343
    %v2976 = vunpack.c.h.b16 %v2343
    %v2977 = vunpack.c.l.b16 %v2344
    %v2978 = vunpack.c.h.b16 %v2344
    %v2979 = vunpack.c.l.b16 %v2345
    %v2980 = vunpack.c.l.b16 %v2346
    %v2981 = vunpack.c.h.b16 %v2346
    %v2982 = vunpack.c.l.b16 %v2347
    %v2983 = vunpack.c.h.b16 %v2347
    %v2984 = vunpack.c.l.b16 %v2348
    %v2985 = vunpack.c.l.b16 %v2349
    %v2986 = vunpack.c.h.b16 %v2349
    %v2987 = vunpack.c.l.b16 %v2350
    %v2988 = vunpack.c.h.b16 %v2350
    %v2989 = vunpack.c.l.b16 %v2351
    %v2990 = vunpack.c.l.b16 %v2352
    %v2991 = vunpack.c.h.b16 %v2352
    %v2992 = vunpack.c.l.b16 %v2353
    %v2993 = vunpack.c.h.b16 %v2353
    %v2994 = vunpack.c.l.b16 %v2354
    %v2995 = vpack.c.b16 %v2600, %v2595
    %v2996 = vpack.c.b16 %v2601, %v2596
    %v2997 = vpack.c.b16 %v2602, %v2597
    %v2998 = vpack.c.b16 %v2603, %v2598
    %v2999 = vpack.c.b16 %v2604, %v2599
    %v3000 = vpack.c.b16 %v2610, %v2605
    %v3001 = vpack.c.b16 %v2611, %v2606
    %v3002 = vpack.c.b16 %v2612, %v2607
    %v3003 = vpack.c.b16 %v2613, %v2608
    %v3004 = vpack.c.b16 %v2614, %v2609
    %v3005 = vpack.c.b16 %v2620, %v2615
    %v3006 = vpack.c.b16 %v2621, %v2616
    %v3007 = vpack.c.b16 %v2622, %v2617
    %v3008 = vpack.c.b16 %v2623, %v2618
    %v3009 = vpack.c.b16 %v2624, %v2619
    %v3010 = vpack.c.b16 %v2630, %v2625
    %v3011 = vpack.c.b16 %v2631, %v2626
    %v3012 = vpack.c.b16 %v2632, %v2627
    %v3013 = vpack.c.b16 %v2633, %v2628
    %v3014 = vpack.c.b16 %v2634, %v2629
    %v3015 = vpack.c.b16 %v2640, %v2635
    %v3016 = vpack.c.b16 %v2641, %v2636
    %v3017 = vpack.c.b16 %v2642, %v2637
    %v3018 = vpack.c.b16 %v2643, %v2638
    %v3019 = vpack.c.b16 %v2644, %v2639
    %v3020 = vpack.c.b16 %v2650, %v2645
    %v3021 = vpack.c.b16 %v2651, %v2646
    %v3022 = vpack.c.b16 %v2652, %v2647
    %v3023 = vpack.c.b16 %v2653, %v2648
    %v3024 = vpack.c.b16 %v2654, %v2649
    %v3025 = vpack.c.b16 %v2660, %v2655
    %v3026 = vpack.c.b16 %v2661, %v2656
    %v3027 = vpack.c.b16 %v2662, %v2657
    %v3028 = vpack.c.b16 %v2663, %v2658
    %v3029 = vpack.c.b16 %v2664, %v2659
    %v3030 = vpack.c.b16 %v2670, %v2665
    %v3031 = vpack.c.b16 %v2671, %v2666
    %v3032 = vpack.c.b16 %v2672, %v2667
    %v3033 = vpack.c.b16 %v2673, %v2668
    %v3034 = vpack.c.b16 %v2674, %v2669
    %v3035 = vpack.c.b16 %v2680, %v2675
    %v3036 = vpack.c.b16 %v2681, %v2676
    %v3037 = vpack.c.b16 %v2682, %v2677
    %v3038 = vpack.c.b16 %v2683, %v2678
    %v3039 = vpack.c.b16 %v2684, %v2679
    %v3040 = vpack.c.b16 %v2690, %v2685
    %v3041 = vpack.c.b16 %v2691, %v2686
    %v3042 = vpack.c.b16 %v2692, %v2687
    %v3043 = vpack.c.b16 %v2693, %v2688
    %v3044 = vpack.c.b16 %v2694, %v2689
    %v3045 = vpack.c.b16 %v2700, %v2695
    %v3046 = vpack.c.b16 %v2701, %v2696
    %v3047 = vpack.c.b16 %v2702, %v2697
    %v3048 = vpack.c.b16 %v2703, %v2698
    %v3049 = vpack.c.b16 %v2704, %v2699
    %v3050 = vpack.c.b16 %v2710, %v2705
    %v3051 = vpack.c.b16 %v2711, %v2706
    %v3052 = vpack.c.b16 %v2712, %v2707
    %v3053 = vpack.c.b16 %v2713, %v2708
    %v3054 = vpack.c.b16 %v2714, %v2709
    %v3055 = vpack.c.b16 %v2720, %v2715
    %v3056 = vpack.c.b16 %v2721, %v2716
    %v3057 = vpack.c.b16 %v2722, %v2717
    %v3058 = vpack.c.b16 %v2723, %v2718
    %v3059 = vpack.c.b16 %v2724, %v2719
    %v3060 = vpack.c.b16 %v2730, %v2725
    %v3061 = vpack.c.b16 %v2731, %v2726
    %v3062 = vpack.c.b16 %v2732, %v2727
    %v3063 = vpack.c.b16 %v2733, %v2728
    %v3064 = vpack.c.b16 %v2734, %v2729
    %v3065 = vpack.c.b16 %v2740, %v2735
    %v3066 = vpack.c.b16 %v2741, %v2736
    %v3067 = vpack.c.b16 %v2742, %v2737
    %v3068 = vpack.c.b16 %v2743, %v2738
    %v3069 = vpack.c.b16 %v2744, %v2739
    %v3070 = vpack.c.b16 %v2750, %v2745
    %v3071 = vpack.c.b16 %v2751, %v2746
    %v3072 = vpack.c.b16 %v2752, %v2747
    %v3073 = vpack.c.b16 %v2753, %v2748
    %v3074 = vpack.c.b16 %v2754, %v2749
    %v3075 = vpack.c.b16 %v2760, %v2755
    %v3076 = vpack.c.b16 %v2761, %v2756
    %v3077 = vpack.c.b16 %v2762, %v2757
    %v3078 = vpack.c.b16 %v2763, %v2758
    %v3079 = vpack.c.b16 %v2764, %v2759
    %v3080 = vpack.c.b16 %v2770, %v2765
    %v3081 = vpack.c.b16 %v2771, %v2766
    %v3082 = vpack.c.b16 %v2772, %v2767
    %v3083 = vpack.c.b16 %v2773, %v2768
    %v3084 = vpack.c.b16 %v2774, %v2769
    %v3085 = vpack.c.b16 %v2780, %v2775
    %v3086 = vpack.c.b16 %v2781, %v2776
    %v3087 = vpack.c.b16 %v2782, %v2777
    %v3088 = vpack.c.b16 %v2783, %v2778
    %v3089 = vpack.c.b16 %v2784, %v2779
    %v3090 = vpack.c.b16 %v2790, %v2785
    %v3091 = vpack.c.b16 %v2791, %v2786
    %v3092 = vpack.c.b16 %v2792, %v2787
    %v3093 = vpack.c.b16 %v2793, %v2788
    %v3094 = vpack.c.b16 %v2794, %v2789
    %v3095 = vpack.c.b16 %v2800, %v2795
    %v3096 = vpack.c.b16 %v2801, %v2796
    %v3097 = vpack.c.b16 %v2802, %v2797
    %v3098 = vpack.c.b16 %v2803, %v2798
    %v3099 = vpack.c.b16 %v2804, %v2799
    %v3100 = vpack.c.b16 %v2810, %v2805
    %v3101 = vpack.c.b16 %v2811, %v2806
    %v3102 = vpack.c.b16 %v2812, %v2807
    %v3103 = vpack.c.b16 %v2813, %v2808
    %v3104 = vpack.c.b16 %v2814, %v2809
    %v3105 = vpack.c.b16 %v2820, %v2815
    %v3106 = vpack.c.b16 %v2821, %v2816
    %v3107 = vpack.c.b16 %v2822, %v2817
    %v3108 = vpack.c.b16 %v2823, %v2818
    %v3109 = vpack.c.b16 %v2824, %v2819
    %v3110 = vpack.c.b16 %v2830, %v2825
    %v3111 = vpack.c.b16 %v2831, %v2826
    %v3112 = vpack.c.b16 %v2832, %v2827
    %v3113 = vpack.c.b16 %v2833, %v2828
    %v3114 = vpack.c.b16 %v2834, %v2829
    %v3115 = vpack.c.b16 %v2840, %v2835
    %v3116 = vpack.c.b16 %v2841, %v2836
    %v3117 = vpack.c.b16 %v2842, %v2837
    %v3118 = vpack.c.b16 %v2843, %v2838
    %v3119 = vpack.c.b16 %v2844, %v2839
    %v3120 = vpack.c.b16 %v2850, %v2845
    %v3121 = vpack.c.b16 %v2851, %v2846
    %v3122 = vpack.c.b16 %v2852, %v2847
    %v3123 = vpack.c.b16 %v2853, %v2848
    %v3124 = vpack.c.b16 %v2854, %v2849
    %v3125 = vpack.c.b16 %v2860, %v2855
    %v3126 = vpack.c.b16 %v2861, %v2856
    %v3127 = vpack.c.b16 %v2862, %v2857
    %v3128 = vpack.c.b16 %v2863, %v2858
    %v3129 = vpack.c.b16 %v2864, %v2859
    %v3130 = vpack.c.b16 %v2870, %v2865
    %v3131 = vpack.c.b16 %v2871, %v2866
    %v3132 = vpack.c.b16 %v2872, %v2867
    %v3133 = vpack.c.b16 %v2873, %v2868
    %v3134 = vpack.c.b16 %v2874, %v2869
    %v3135 = vpack.c.b16 %v2880, %v2875
    %v3136 = vpack.c.b16 %v2881, %v2876
    %v3137 = vpack.c.b16 %v2882, %v2877
    %v3138 = vpack.c.b16 %v2883, %v2878
    %v3139 = vpack.c.b16 %v2884, %v2879
    %v3140 = vpack.c.b16 %v2890, %v2885
    %v3141 = vpack.c.b16 %v2891, %v2886
    %v3142 = vpack.c.b16 %v2892, %v2887
    %v3143 = vpack.c.b16 %v2893, %v2888
    %v3144 = vpack.c.b16 %v2894, %v2889
    %v3145 = vpack.c.b16 %v2900, %v2895
    %v3146 = vpack.c.b16 %v2901, %v2896
    %v3147 = vpack.c.b16 %v2902, %v2897
    %v3148 = vpack.c.b16 %v2903, %v2898
    %v3149 = vpack.c.b16 %v2904, %v2899
    %v3150 = vpack.c.b16 %v2910, %v2905
    %v3151 = vpack.c.b16 %v2911, %v2906
    %v3152 = vpack.c.b16 %v2912, %v2907
    %v3153 = vpack.c.b16 %v2913, %v2908
    %v3154 = vpack.c.b16 %v2914, %v2909
    %v3155 = vpack.c.b16 %v2920, %v2915
    %v3156 = vpack.c.b16 %v2921, %v2916
    %v3157 = vpack.c.b16 %v2922, %v2917
    %v3158 = vpack.c.b16 %v2923, %v2918
    %v3159 = vpack.c.b16 %v2924, %v2919
    %v3160 = vpack.c.b16 %v2930, %v2925
    %v3161 = vpack.c.b16 %v2931, %v2926
    %v3162 = vpack.c.b16 %v2932, %v2927
    %v3163 = vpack.c.b16 %v2933, %v2928
    %v3164 = vpack.c.b16 %v2934, %v2929
    %v3165 = vpack.c.b16 %v2940, %v2935
    %v3166 = vpack.c.b16 %v2941, %v2936
    %v3167 = vpack.c.b16 %v2942, %v2937
    %v3168 = vpack.c.b16 %v2943, %v2938
    %v3169 = vpack.c.b16 %v2944, %v2939
    %v3170 = vpack.c.b16 %v2950, %v2945
    %v3171 = vpack.c.b16 %v2951, %v2946
    %v3172 = vpack.c.b16 %v2952, %v2947
    %v3173 = vpack.c.b16 %v2953, %v2948
    %v3174 = vpack.c.b16 %v2954, %v2949
    %v3175 = vpack.c.b16 %v2960, %v2955
    %v3176 = vpack.c.b16 %v2961, %v2956
    %v3177 = vpack.c.b16 %v2962, %v2957
    %v3178 = vpack.c.b16 %v2963, %v2958
    %v3179 = vpack.c.b16 %v2964, %v2959
    %v3180 = vpack.c.b16 %v2970, %v2965
    %v3181 = vpack.c.b16 %v2971, %v2966
    %v3182 = vpack.c.b16 %v2972, %v2967
    %v3183 = vpack.c.b16 %v2973, %v2968
    %v3184 = vpack.c.b16 %v2974, %v2969
    %v3185 = vpack.c.b16 %v2980, %v2975
    %v3186 = vpack.c.b16 %v2981, %v2976
    %v3187 = vpack.c.b16 %v2982, %v2977
    %v3188 = vpack.c.b16 %v2983, %v2978
    %v3189 = vpack.c.b16 %v2984, %v2979
    %v3190 = vpack.c.b16 %v2990, %v2985
    %v3191 = vpack.c.b16 %v2991, %v2986
    %v3192 = vpack.c.b16 %v2992, %v2987
    %v3193 = vpack.c.b16 %v2993, %v2988
    %v3194 = vpack.c.b16 %v2994, %v2989
    %3395 = vmatprep.subr.bf16.mxu0 %v2996
    %3396 = vmatpush1.bf16.msra.mxu0 %v2995
    %3397 = vmatprep.subr.bf16.mxu0 %v3001
    %3398 = vmatpush1.bf16.msra.mxu0 %v3000
    %3399 = vmatprep.subr.bf16.mxu0 %v3006
    %3400 = vmatpush1.bf16.msra.mxu0 %v3005
    %3401 = vmatprep.subr.bf16.mxu0 %v3011
    %3402 = vmatpush1.bf16.msra.mxu0 %v3010
    %3403 = vmatprep.subr.bf16.mxu0 %v3016
    %3404 = vmatpush1.bf16.msra.mxu0 %v3015
    %3405 = vmatprep.subr.bf16.mxu0 %v3021
    %3406 = vmatpush1.bf16.msra.mxu0 %v3020
    %3407 = vmatprep.subr.bf16.mxu0 %v3026
    %3408 = vmatpush1.bf16.msra.mxu0 %v3025
    %3409 = vmatprep.subr.bf16.mxu0 %v3031
    %3410 = vmatpush1.bf16.msra.mxu0 %v3030
    %3411 = vmatprep.subr.bf16.mxu0 %v3036
    %3412 = vmatpush1.bf16.msra.mxu0 %v3035
    %3413 = vmatprep.subr.bf16.mxu0 %v3041
    %3414 = vmatpush1.bf16.msra.mxu0 %v3040
    %3415 = vmatprep.subr.bf16.mxu0 %v3046
    %3416 = vmatpush1.bf16.msra.mxu0 %v3045
    %3417 = vmatprep.subr.bf16.mxu0 %v3051
    %3418 = vmatpush1.bf16.msra.mxu0 %v3050
    %3419 = vmatprep.subr.bf16.mxu0 %v3056
    %3420 = vmatpush1.bf16.msra.mxu0 %v3055
    %3421 = vmatprep.subr.bf16.mxu0 %v3061
    %3422 = vmatpush1.bf16.msra.mxu0 %v3060
    %3423 = vmatprep.subr.bf16.mxu0 %v3066
    %3424 = vmatpush1.bf16.msra.mxu0 %v3065
    %3425 = vmatprep.subr.bf16.mxu0 %v3071
    %3426 = vmatpush1.bf16.msra.mxu0 %v3070
    %3427 = vmatprep.mubr.bf16.mxu0 %v2111
    %3428 = vmatmul.mubr.bf16.gmra.mrb[0].mxu0 %v2110
    %v3429 = vpop.f32.mrb[0].mxu0
    %v3430 = vadd.f32 0.0, %v3429
    %v3431 = vpop.f32.mrb[0].mxu0
    %v3432 = vadd.f32 0.0, %v3431
    %v3433 = vpop.f32.mrb[0].mxu0
    %v3434 = vadd.f32 0.0, %v3433
    %v3435 = vpop.f32.mrb[0].mxu0
    %v3436 = vadd.f32 0.0, %v3435
    %3437 = vdwg.mxu0
    %3438 = vmatprep.subr.bf16.mxu0 %v3076
    %3439 = vmatpush1.bf16.msra.mxu0 %v3075
    %3440 = vmatprep.subr.bf16.mxu0 %v3081
    %3441 = vmatpush1.bf16.msra.mxu0 %v3080
    %3442 = vmatprep.subr.bf16.mxu0 %v3086
    %3443 = vmatpush1.bf16.msra.mxu0 %v3085
    %3444 = vmatprep.subr.bf16.mxu0 %v3091
    %3445 = vmatpush1.bf16.msra.mxu0 %v3090
    %3446 = vmatprep.subr.bf16.mxu0 %v3096
    %3447 = vmatpush1.bf16.msra.mxu0 %v3095
    %3448 = vmatprep.subr.bf16.mxu0 %v3101
    %3449 = vmatpush1.bf16.msra.mxu0 %v3100
    %3450 = vmatprep.subr.bf16.mxu0 %v3106
    %3451 = vmatpush1.bf16.msra.mxu0 %v3105
    %3452 = vmatprep.subr.bf16.mxu0 %v3111
    %3453 = vmatpush1.bf16.msra.mxu0 %v3110
    %3454 = vmatprep.subr.bf16.mxu0 %v3116
    %3455 = vmatpush1.bf16.msra.mxu0 %v3115
    %3456 = vmatprep.subr.bf16.mxu0 %v3121
    %3457 = vmatpush1.bf16.msra.mxu0 %v3120
    %3458 = vmatprep.subr.bf16.mxu0 %v3126
    %3459 = vmatpush1.bf16.msra.mxu0 %v3125
    %3460 = vmatprep.subr.bf16.mxu0 %v3131
    %3461 = vmatpush1.bf16.msra.mxu0 %v3130
    %3462 = vmatprep.subr.bf16.mxu0 %v3136
    %3463 = vmatpush1.bf16.msra.mxu0 %v3135
    %3464 = vmatprep.subr.bf16.mxu0 %v3141
    %3465 = vmatpush1.bf16.msra.mxu0 %v3140
    %3466 = vmatprep.subr.bf16.mxu0 %v3146
    %3467 = vmatpush1.bf16.msra.mxu0 %v3145
    %3468 = vmatprep.subr.bf16.mxu0 %v3151
    %3469 = vmatpush1.bf16.msra.mxu0 %v3150
    %3470 = vmatprep.mubr.bf16.mxu0 %v2113
    %3471 = vmatmul.mubr.bf16.gmra.mrb[0].mxu0 %v2112
    %v3472 = vpop.f32.mrb[0].mxu0
    %v3473 = vadd.f32 %v3430, %v3472
    %v3474 = vpop.f32.mrb[0].mxu0
    %v3475 = vadd.f32 %v3432, %v3474
    %v3476 = vpop.f32.mrb[0].mxu0
    %v3477 = vadd.f32 %v3434, %v3476
    %v3478 = vpop.f32.mrb[0].mxu0
    %v3479 = vadd.f32 %v3436, %v3478
    %3480 = vdwg.mxu0
    %3481 = vmatprep.subr.bf16.mxu0 %v3156
    %3482 = vmatpush1.bf16.msra.mxu0 %v3155
    %3483 = vmatprep.subr.bf16.mxu0 %v3161
    %3484 = vmatpush1.bf16.msra.mxu0 %v3160
    %3485 = vmatprep.subr.bf16.mxu0 %v3166
    %3486 = vmatpush1.bf16.msra.mxu0 %v3165
    %3487 = vmatprep.subr.bf16.mxu0 %v3171
    %3488 = vmatpush1.bf16.msra.mxu0 %v3170
    %3489 = vmatprep.subr.bf16.mxu0 %v3176
    %3490 = vmatpush1.bf16.msra.mxu0 %v3175
    %3491 = vmatprep.subr.bf16.mxu0 %v3181
    %3492 = vmatpush1.bf16.msra.mxu0 %v3180
    %3493 = vmatprep.subr.bf16.mxu0 %v3186
    %3494 = vmatpush1.bf16.msra.mxu0 %v3185
    %3495 = vmatprep.subr.bf16.mxu0 %v3191
    %3496 = vmatpush1.bf16.msra.mxu0 %v3190
    %3497 = vmatprep.subr.bf16.mxu0 0
    %3498 = vmatpush1.bf16.msra.mxu0 0
    %3499 = vmatprep.subr.bf16.mxu0 0
    %3500 = vmatpush1.bf16.msra.mxu0 0
    %3501 = vmatprep.subr.bf16.mxu0 0
    %3502 = vmatpush1.bf16.msra.mxu0 0
    %3503 = vmatprep.subr.bf16.mxu0 0
    %3504 = vmatpush1.bf16.msra.mxu0 0
    %3505 = vmatprep.subr.bf16.mxu0 0
    %3506 = vmatpush1.bf16.msra.mxu0 0
    %3507 = vmatprep.subr.bf16.mxu0 0
    %3508 = vmatpush1.bf16.msra.mxu0 0
    %3509 = vmatprep.subr.bf16.mxu0 0
    %3510 = vmatpush1.bf16.msra.mxu0 0
    %3511 = vmatprep.subr.bf16.mxu0 0
    %3512 = vmatpush1.bf16.msra.mxu0 0
    %3513 = vmatprep.mubr.bf16.mxu0 0
    %3514 = vmatmul.mubr.bf16.gmra.mrb[0].mxu0 %v2114
    %v3515 = vpop.f32.mrb[0].mxu0
    %v3516 = vadd.f32 %v3473, %v3515
    %v3517 = vpop.f32.mrb[0].mxu0
    %v3518 = vadd.f32 %v3475, %v3517
    %v3519 = vpop.f32.mrb[0].mxu0
    %v3520 = vadd.f32 %v3477, %v3519
    %v3521 = vpop.f32.mrb[0].mxu0
    %v3522 = vadd.f32 %v3479, %v3521
    %3523 = vdwg.mxu0
    %3524 = vmatprep.subr.bf16.mxu0 %v2998
    %3525 = vmatpush1.bf16.msra.mxu0 %v2997
    %3526 = vmatprep.subr.bf16.mxu0 %v3003
    %3527 = vmatpush1.bf16.msra.mxu0 %v3002
    %3528 = vmatprep.subr.bf16.mxu0 %v3008
    %3529 = vmatpush1.bf16.msra.mxu0 %v3007
    %3530 = vmatprep.subr.bf16.mxu0 %v3013
    %3531 = vmatpush1.bf16.msra.mxu0 %v3012
    %3532 = vmatprep.subr.bf16.mxu0 %v3018
    %3533 = vmatpush1.bf16.msra.mxu0 %v3017
    %3534 = vmatprep.subr.bf16.mxu0 %v3023
    %3535 = vmatpush1.bf16.msra.mxu0 %v3022
    %3536 = vmatprep.subr.bf16.mxu0 %v3028
    %3537 = vmatpush1.bf16.msra.mxu0 %v3027
    %3538 = vmatprep.subr.bf16.mxu0 %v3033
    %3539 = vmatpush1.bf16.msra.mxu0 %v3032
    %3540 = vmatprep.subr.bf16.mxu0 %v3038
    %3541 = vmatpush1.bf16.msra.mxu0 %v3037
    %3542 = vmatprep.subr.bf16.mxu0 %v3043
    %3543 = vmatpush1.bf16.msra.mxu0 %v3042
    %3544 = vmatprep.subr.bf16.mxu0 %v3048
    %3545 = vmatpush1.bf16.msra.mxu0 %v3047
    %3546 = vmatprep.subr.bf16.mxu0 %v3053
    %3547 = vmatpush1.bf16.msra.mxu0 %v3052
    %3548 = vmatprep.subr.bf16.mxu0 %v3058
    %3549 = vmatpush1.bf16.msra.mxu0 %v3057
    %3550 = vmatprep.subr.bf16.mxu0 %v3063
    %3551 = vmatpush1.bf16.msra.mxu0 %v3062
    %3552 = vmatprep.subr.bf16.mxu0 %v3068
    %3553 = vmatpush1.bf16.msra.mxu0 %v3067
    %3554 = vmatprep.subr.bf16.mxu0 %v3073
    %3555 = vmatpush1.bf16.msra.mxu0 %v3072
    %3556 = vmatprep.mubr.bf16.mxu0 %v2111
    %3557 = vmatmul.mubr.bf16.gmra.mrb[0].mxu0 %v2110
    %v3558 = vpop.f32.mrb[0].mxu0
    %v3559 = vadd.f32 0.0, %v3558
    %v3560 = vpop.f32.mrb[0].mxu0
    %v3561 = vadd.f32 0.0, %v3560
    %v3562 = vpop.f32.mrb[0].mxu0
    %v3563 = vadd.f32 0.0, %v3562
    %v3564 = vpop.f32.mrb[0].mxu0
    %v3565 = vadd.f32 0.0, %v3564
    %3566 = vdwg.mxu0
    %3567 = vmatprep.subr.bf16.mxu0 %v3078
    %3568 = vmatpush1.bf16.msra.mxu0 %v3077
    %3569 = vmatprep.subr.bf16.mxu0 %v3083
    %3570 = vmatpush1.bf16.msra.mxu0 %v3082
    %3571 = vmatprep.subr.bf16.mxu0 %v3088
    %3572 = vmatpush1.bf16.msra.mxu0 %v3087
    %3573 = vmatprep.subr.bf16.mxu0 %v3093
    %3574 = vmatpush1.bf16.msra.mxu0 %v3092
    %3575 = vmatprep.subr.bf16.mxu0 %v3098
    %3576 = vmatpush1.bf16.msra.mxu0 %v3097
    %3577 = vmatprep.subr.bf16.mxu0 %v3103
    %3578 = vmatpush1.bf16.msra.mxu0 %v3102
    %3579 = vmatprep.subr.bf16.mxu0 %v3108
    %3580 = vmatpush1.bf16.msra.mxu0 %v3107
    %3581 = vmatprep.subr.bf16.mxu0 %v3113
    %3582 = vmatpush1.bf16.msra.mxu0 %v3112
    %3583 = vmatprep.subr.bf16.mxu0 %v3118
    %3584 = vmatpush1.bf16.msra.mxu0 %v3117
    %3585 = vmatprep.subr.bf16.mxu0 %v3123
    %3586 = vmatpush1.bf16.msra.mxu0 %v3122
    %3587 = vmatprep.subr.bf16.mxu0 %v3128
    %3588 = vmatpush1.bf16.msra.mxu0 %v3127
    %3589 = vmatprep.subr.bf16.mxu0 %v3133
    %3590 = vmatpush1.bf16.msra.mxu0 %v3132
    %3591 = vmatprep.subr.bf16.mxu0 %v3138
    %3592 = vmatpush1.bf16.msra.mxu0 %v3137
    %3593 = vmatprep.subr.bf16.mxu0 %v3143
    %3594 = vmatpush1.bf16.msra.mxu0 %v3142
    %3595 = vmatprep.subr.bf16.mxu0 %v3148
    %3596 = vmatpush1.bf16.msra.mxu0 %v3147
    %3597 = vmatprep.subr.bf16.mxu0 %v3153
    %3598 = vmatpush1.bf16.msra.mxu0 %v3152
    %3599 = vmatprep.mubr.bf16.mxu0 %v2113
    %3600 = vmatmul.mubr.bf16.gmra.mrb[0].mxu0 %v2112
    %v3601 = vpop.f32.mrb[0].mxu0
    %v3602 = vadd.f32 %v3559, %v3601
    %v3603 = vpop.f32.mrb[0].mxu0
    %v3604 = vadd.f32 %v3561, %v3603
    %v3605 = vpop.f32.mrb[0].mxu0
    %v3606 = vadd.f32 %v3563, %v3605
    %v3607 = vpop.f32.mrb[0].mxu0
    %v3608 = vadd.f32 %v3565, %v3607
    %3609 = vdwg.mxu0
    %3610 = vmatprep.subr.bf16.mxu0 %v3158
    %3611 = vmatpush1.bf16.msra.mxu0 %v3157
    %3612 = vmatprep.subr.bf16.mxu0 %v3163
    %3613 = vmatpush1.bf16.msra.mxu0 %v3162
    %3614 = vmatprep.subr.bf16.mxu0 %v3168
    %3615 = vmatpush1.bf16.msra.mxu0 %v3167
    %3616 = vmatprep.subr.bf16.mxu0 %v3173
    %3617 = vmatpush1.bf16.msra.mxu0 %v3172
    %3618 = vmatprep.subr.bf16.mxu0 %v3178
    %3619 = vmatpush1.bf16.msra.mxu0 %v3177
    %3620 = vmatprep.subr.bf16.mxu0 %v3183
    %3621 = vmatpush1.bf16.msra.mxu0 %v3182
    %3622 = vmatprep.subr.bf16.mxu0 %v3188
    %3623 = vmatpush1.bf16.msra.mxu0 %v3187
    %3624 = vmatprep.subr.bf16.mxu0 %v3193
    %3625 = vmatpush1.bf16.msra.mxu0 %v3192
    %3626 = vmatprep.subr.bf16.mxu0 0
    %3627 = vmatpush1.bf16.msra.mxu0 0
    %3628 = vmatprep.subr.bf16.mxu0 0
    %3629 = vmatpush1.bf16.msra.mxu0 0
    %3630 = vmatprep.subr.bf16.mxu0 0
    %3631 = vmatpush1.bf16.msra.mxu0 0
    %3632 = vmatprep.subr.bf16.mxu0 0
    %3633 = vmatpush1.bf16.msra.mxu0 0
    %3634 = vmatprep.subr.bf16.mxu0 0
    %3635 = vmatpush1.bf16.msra.mxu0 0
    %3636 = vmatprep.subr.bf16.mxu0 0
    %3637 = vmatpush1.bf16.msra.mxu0 0
    %3638 = vmatprep.subr.bf16.mxu0 0
    %3639 = vmatpush1.bf16.msra.mxu0 0
    %3640 = vmatprep.subr.bf16.mxu0 0
    %3641 = vmatpush1.bf16.msra.mxu0 0
    %3642 = vmatprep.mubr.bf16.mxu0 0
    %3643 = vmatmul.mubr.bf16.gmra.mrb[0].mxu0 %v2114
    %v3644 = vpop.f32.mrb[0].mxu0
    %v3645 = vadd.f32 %v3602, %v3644
    %v3646 = vpop.f32.mrb[0].mxu0
    %v3647 = vadd.f32 %v3604, %v3646
    %v3648 = vpop.f32.mrb[0].mxu0
    %v3649 = vadd.f32 %v3606, %v3648
    %v3650 = vpop.f32.mrb[0].mxu0
    %v3651 = vadd.f32 %v3608, %v3650
    %3652 = vdwg.mxu0
    %3653 = vmatprep.subr.bf16.mxu0 0
    %3654 = vmatpush1.bf16.msra.mxu0 %v2999
    %3655 = vmatprep.subr.bf16.mxu0 0
    %3656 = vmatpush1.bf16.msra.mxu0 %v3004
    %3657 = vmatprep.subr.bf16.mxu0 0
    %3658 = vmatpush1.bf16.msra.mxu0 %v3009
    %3659 = vmatprep.subr.bf16.mxu0 0
    %3660 = vmatpush1.bf16.msra.mxu0 %v3014
    %3661 = vmatprep.subr.bf16.mxu0 0
    %3662 = vmatpush1.bf16.msra.mxu0 %v3019
    %3663 = vmatprep.subr.bf16.mxu0 0
    %3664 = vmatpush1.bf16.msra.mxu0 %v3024
    %3665 = vmatprep.subr.bf16.mxu0 0
    %3666 = vmatpush1.bf16.msra.mxu0 %v3029
    %3667 = vmatprep.subr.bf16.mxu0 0
    %3668 = vmatpush1.bf16.msra.mxu0 %v3034
    %3669 = vmatprep.subr.bf16.mxu0 0
    %3670 = vmatpush1.bf16.msra.mxu0 %v3039
    %3671 = vmatprep.subr.bf16.mxu0 0
    %3672 = vmatpush1.bf16.msra.mxu0 %v3044
    %3673 = vmatprep.subr.bf16.mxu0 0
    %3674 = vmatpush1.bf16.msra.mxu0 %v3049
    %3675 = vmatprep.subr.bf16.mxu0 0
    %3676 = vmatpush1.bf16.msra.mxu0 %v3054
    %3677 = vmatprep.subr.bf16.mxu0 0
    %3678 = vmatpush1.bf16.msra.mxu0 %v3059
    %3679 = vmatprep.subr.bf16.mxu0 0
    %3680 = vmatpush1.bf16.msra.mxu0 %v3064
    %3681 = vmatprep.subr.bf16.mxu0 0
    %3682 = vmatpush1.bf16.msra.mxu0 %v3069
    %3683 = vmatprep.subr.bf16.mxu0 0
    %3684 = vmatpush1.bf16.msra.mxu0 %v3074
    %3685 = vmatprep.mubr.bf16.mxu0 %v2111
    %3686 = vmatmul.mubr.bf16.gmra.mrb[0].mxu0 %v2110
    %v3687 = vpop.f32.mrb[0].mxu0
    %v3688 = vadd.f32 0.0, %v3687
    %v3689 = vpop.f32.mrb[0].mxu0
    %v3690 = vpop.f32.mrb[0].mxu0
    %v3691 = vadd.f32 0.0, %v3690
    %v3692 = vpop.f32.mrb[0].mxu0
    %3693 = vdwg.mxu0
    %3694 = vmatprep.subr.bf16.mxu0 0
    %3695 = vmatpush1.bf16.msra.mxu0 %v3079
    %3696 = vmatprep.subr.bf16.mxu0 0
    %3697 = vmatpush1.bf16.msra.mxu0 %v3084
    %3698 = vmatprep.subr.bf16.mxu0 0
    %3699 = vmatpush1.bf16.msra.mxu0 %v3089
    %3700 = vmatprep.subr.bf16.mxu0 0
    %3701 = vmatpush1.bf16.msra.mxu0 %v3094
    %3702 = vmatprep.subr.bf16.mxu0 0
    %3703 = vmatpush1.bf16.msra.mxu0 %v3099
    %3704 = vmatprep.subr.bf16.mxu0 0
    %3705 = vmatpush1.bf16.msra.mxu0 %v3104
    %3706 = vmatprep.subr.bf16.mxu0 0
    %3707 = vmatpush1.bf16.msra.mxu0 %v3109
    %3708 = vmatprep.subr.bf16.mxu0 0
    %3709 = vmatpush1.bf16.msra.mxu0 %v3114
    %3710 = vmatprep.subr.bf16.mxu0 0
    %3711 = vmatpush1.bf16.msra.mxu0 %v3119
    %3712 = vmatprep.subr.bf16.mxu0 0
    %3713 = vmatpush1.bf16.msra.mxu0 %v3124
    %3714 = vmatprep.subr.bf16.mxu0 0
    %3715 = vmatpush1.bf16.msra.mxu0 %v3129
    %3716 = vmatprep.subr.bf16.mxu0 0
    %3717 = vmatpush1.bf16.msra.mxu0 %v3134
    %3718 = vmatprep.subr.bf16.mxu0 0
    %3719 = vmatpush1.bf16.msra.mxu0 %v3139
    %3720 = vmatprep.subr.bf16.mxu0 0
    %3721 = vmatpush1.bf16.msra.mxu0 %v3144
    %3722 = vmatprep.subr.bf16.mxu0 0
    %3723 = vmatpush1.bf16.msra.mxu0 %v3149
    %3724 = vmatprep.subr.bf16.mxu0 0
    %3725 = vmatpush1.bf16.msra.mxu0 %v3154
    %3726 = vmatprep.mubr.bf16.mxu0 %v2113
    %3727 = vmatmul.mubr.bf16.gmra.mrb[0].mxu0 %v2112
    %v3728 = vpop.f32.mrb[0].mxu0
    %v3729 = vadd.f32 %v3688, %v3728
    %v3730 = vpop.f32.mrb[0].mxu0
    %v3731 = vpop.f32.mrb[0].mxu0
    %v3732 = vadd.f32 %v3691, %v3731
    %v3733 = vpop.f32.mrb[0].mxu0
    %3734 = vdwg.mxu0
    %3735 = vmatprep.subr.bf16.mxu0 0
    %3736 = vmatpush1.bf16.msra.mxu0 %v3159
    %3737 = vmatprep.subr.bf16.mxu0 0
    %3738 = vmatpush1.bf16.msra.mxu0 %v3164
    %3739 = vmatprep.subr.bf16.mxu0 0
    %3740 = vmatpush1.bf16.msra.mxu0 %v3169
    %3741 = vmatprep.subr.bf16.mxu0 0
    %3742 = vmatpush1.bf16.msra.mxu0 %v3174
    %3743 = vmatprep.subr.bf16.mxu0 0
    %3744 = vmatpush1.bf16.msra.mxu0 %v3179
    %3745 = vmatprep.subr.bf16.mxu0 0
    %3746 = vmatpush1.bf16.msra.mxu0 %v3184
    %3747 = vmatprep.subr.bf16.mxu0 0
    %3748 = vmatpush1.bf16.msra.mxu0 %v3189
    %3749 = vmatprep.subr.bf16.mxu0 0
    %3750 = vmatpush1.bf16.msra.mxu0 %v3194
    %3751 = vmatprep.subr.bf16.mxu0 0
    %3752 = vmatpush1.bf16.msra.mxu0 0
    %3753 = vmatprep.subr.bf16.mxu0 0
    %3754 = vmatpush1.bf16.msra.mxu0 0
    %3755 = vmatprep.subr.bf16.mxu0 0
    %3756 = vmatpush1.bf16.msra.mxu0 0
    %3757 = vmatprep.subr.bf16.mxu0 0
    %3758 = vmatpush1.bf16.msra.mxu0 0
    %3759 = vmatprep.subr.bf16.mxu0 0
    %3760 = vmatpush1.bf16.msra.mxu0 0
    %3761 = vmatprep.subr.bf16.mxu0 0
    %3762 = vmatpush1.bf16.msra.mxu0 0
    %3763 = vmatprep.subr.bf16.mxu0 0
    %3764 = vmatpush1.bf16.msra.mxu0 0
    %3765 = vmatprep.subr.bf16.mxu0 0
    %3766 = vmatpush1.bf16.msra.mxu0 0
    %3767 = vmatprep.mubr.bf16.mxu0 0
    %3768 = vmatmul.mubr.bf16.gmra.mrb[0].mxu0 %v2114
    %v3769 = vpop.f32.mrb[0].mxu0
    %v3770 = vadd.f32 %v3729, %v3769
    %v3771 = vpop.f32.mrb[0].mxu0
    %v3772 = vpop.f32.mrb[0].mxu0
    %v3773 = vadd.f32 %v3732, %v3772
    %v3774 = vpop.f32.mrb[0].mxu0
    %3775 = vdwg.mxu0
    %v3776 = vpack.c.bf16 %v3516, %v3516
    %v3777 = vpack.c.bf16 %v3518, %v3518
    %v3778 = vpack.c.bf16 %v3645, %v3645
    %v3779 = vpack.c.bf16 %v3647, %v3647
    %v3780 = vpack.c.bf16 %v3770, %v3770
    %v3781 = vpack.c.bf16 %v3520, %v3520
    %v3782 = vpack.c.bf16 %v3522, %v3522
    %v3783 = vpack.c.bf16 %v3649, %v3649
    %v3784 = vpack.c.bf16 %v3651, %v3651
    %v3785 = vpack.c.bf16 %v3773, %v3773
    %v3787 = vsel %vm1765, %v3776, 0
    %v3790 = vsel %vm1765, %v3777, 0
    %v3793 = vsel %vm1765, %v3778, 0
    %v3796 = vsel %vm1765, %v3779, 0
    %v3799 = vsel %vm1765, %v3780, 0
    %3801 = vmatprep.subr.bf16.mxu0 %v3790
    %3802 = vmatpush1.bf16.msra.mxu0 %v3787
    %3803 = vmatprep.subr.bf16.mxu0 0
    %3804 = vmatpush1.bf16.msra.mxu0 0
    %3805 = vmatprep.subr.bf16.mxu0 0
    %3806 = vmatpush1.bf16.msra.mxu0 0
    %3807 = vmatprep.subr.bf16.mxu0 0
    %3808 = vmatpush1.bf16.msra.mxu0 0
    %3809 = vmatprep.subr.bf16.mxu0 0
    %3810 = vmatpush1.bf16.msra.mxu0 0
    %3811 = vmatprep.subr.bf16.mxu0 0
    %3812 = vmatpush1.bf16.msra.mxu0 0
    %3813 = vmatprep.subr.bf16.mxu0 0
    %3814 = vmatpush1.bf16.msra.mxu0 0
    %3815 = vmatprep.subr.bf16.mxu0 0
    %3816 = vmatpush1.bf16.msra.mxu0 0
    %3817 = vmatprep.subr.bf16.mxu0 0
    %3818 = vmatpush1.bf16.msra.mxu0 0
    %3819 = vmatprep.subr.bf16.mxu0 0
    %3820 = vmatpush1.bf16.msra.mxu0 0
    %3821 = vmatprep.subr.bf16.mxu0 0
    %3822 = vmatpush1.bf16.msra.mxu0 0
    %3823 = vmatprep.subr.bf16.mxu0 0
    %3824 = vmatpush1.bf16.msra.mxu0 0
    %3825 = vmatprep.subr.bf16.mxu0 0
    %3826 = vmatpush1.bf16.msra.mxu0 0
    %3827 = vmatprep.subr.bf16.mxu0 0
    %3828 = vmatpush1.bf16.msra.mxu0 0
    %3829 = vmatprep.subr.bf16.mxu0 0
    %3830 = vmatpush1.bf16.msra.mxu0 0
    %3831 = vmatprep.subr.bf16.mxu0 0
    %3832 = vmatpush1.bf16.msra.mxu0 0
    %3833 = vmatprep.mubr.bf16.mxu0 0
    %3834 = vmatmul.mubr.bf16.gmra.mrb[0].mxu0 %v1763
    %v3835 = vpop.f32.mrb[0].mxu0
    %v3836 = vadd.f32 0.0, %v3835
    %v3837 = vpop.f32.mrb[0].mxu0
    %v3838 = vadd.f32 0.0, %v3837
    %v3839 = vpop.f32.mrb[0].mxu0
    %v3840 = vpop.f32.mrb[0].mxu0
    %3841 = vdwg.mxu0
    %3842 = vmatprep.subr.bf16.mxu0 %v3796
    %3843 = vmatpush1.bf16.msra.mxu0 %v3793
    %3844 = vmatprep.subr.bf16.mxu0 0
    %3845 = vmatpush1.bf16.msra.mxu0 0
    %3846 = vmatprep.subr.bf16.mxu0 0
    %3847 = vmatpush1.bf16.msra.mxu0 0
    %3848 = vmatprep.subr.bf16.mxu0 0
    %3849 = vmatpush1.bf16.msra.mxu0 0
    %3850 = vmatprep.subr.bf16.mxu0 0
    %3851 = vmatpush1.bf16.msra.mxu0 0
    %3852 = vmatprep.subr.bf16.mxu0 0
    %3853 = vmatpush1.bf16.msra.mxu0 0
    %3854 = vmatprep.subr.bf16.mxu0 0
    %3855 = vmatpush1.bf16.msra.mxu0 0
    %3856 = vmatprep.subr.bf16.mxu0 0
    %3857 = vmatpush1.bf16.msra.mxu0 0
    %3858 = vmatprep.subr.bf16.mxu0 0
    %3859 = vmatpush1.bf16.msra.mxu0 0
    %3860 = vmatprep.subr.bf16.mxu0 0
    %3861 = vmatpush1.bf16.msra.mxu0 0
    %3862 = vmatprep.subr.bf16.mxu0 0
    %3863 = vmatpush1.bf16.msra.mxu0 0
    %3864 = vmatprep.subr.bf16.mxu0 0
    %3865 = vmatpush1.bf16.msra.mxu0 0
    %3866 = vmatprep.subr.bf16.mxu0 0
    %3867 = vmatpush1.bf16.msra.mxu0 0
    %3868 = vmatprep.subr.bf16.mxu0 0
    %3869 = vmatpush1.bf16.msra.mxu0 0
    %3870 = vmatprep.subr.bf16.mxu0 0
    %3871 = vmatpush1.bf16.msra.mxu0 0
    %3872 = vmatprep.subr.bf16.mxu0 0
    %3873 = vmatpush1.bf16.msra.mxu0 0
    %3874 = vmatprep.mubr.bf16.mxu0 0
    %3875 = vmatmul.mubr.bf16.gmra.mrb[0].mxu0 %v1763
    %v3876 = vpop.f32.mrb[0].mxu0
    %v3877 = vadd.f32 0.0, %v3876
    %v3878 = vpop.f32.mrb[0].mxu0
    %v3879 = vadd.f32 0.0, %v3878
    %v3880 = vpop.f32.mrb[0].mxu0
    %v3881 = vpop.f32.mrb[0].mxu0
    %3882 = vdwg.mxu0
    %3883 = vmatprep.subr.bf16.mxu0 0
    %3884 = vmatpush1.bf16.msra.mxu0 %v3799
    %3885 = vmatprep.subr.bf16.mxu0 0
    %3886 = vmatpush1.bf16.msra.mxu0 0
    %3887 = vmatprep.subr.bf16.mxu0 0
    %3888 = vmatpush1.bf16.msra.mxu0 0
    %3889 = vmatprep.subr.bf16.mxu0 0
    %3890 = vmatpush1.bf16.msra.mxu0 0
    %3891 = vmatprep.subr.bf16.mxu0 0
    %3892 = vmatpush1.bf16.msra.mxu0 0
    %3893 = vmatprep.subr.bf16.mxu0 0
    %3894 = vmatpush1.bf16.msra.mxu0 0
    %3895 = vmatprep.subr.bf16.mxu0 0
    %3896 = vmatpush1.bf16.msra.mxu0 0
    %3897 = vmatprep.subr.bf16.mxu0 0
    %3898 = vmatpush1.bf16.msra.mxu0 0
    %3899 = vmatprep.subr.bf16.mxu0 0
    %3900 = vmatpush1.bf16.msra.mxu0 0
    %3901 = vmatprep.subr.bf16.mxu0 0
    %3902 = vmatpush1.bf16.msra.mxu0 0
    %3903 = vmatprep.subr.bf16.mxu0 0
    %3904 = vmatpush1.bf16.msra.mxu0 0
    %3905 = vmatprep.subr.bf16.mxu0 0
    %3906 = vmatpush1.bf16.msra.mxu0 0
    %3907 = vmatprep.subr.bf16.mxu0 0
    %3908 = vmatpush1.bf16.msra.mxu0 0
    %3909 = vmatprep.subr.bf16.mxu0 0
    %3910 = vmatpush1.bf16.msra.mxu0 0
    %3911 = vmatprep.subr.bf16.mxu0 0
    %3912 = vmatpush1.bf16.msra.mxu0 0
    %3913 = vmatprep.subr.bf16.mxu0 0
    %3914 = vmatpush1.bf16.msra.mxu0 0
    %3915 = vmatprep.mubr.bf16.mxu0 0
    %3916 = vmatmul.mubr.bf16.gmra.mrb[0].mxu0 %v1763
    %v3917 = vpop.f32.mrb[0].mxu0
    %v3918 = vadd.f32 0.0, %v3917
    %v3919 = vpop.f32.mrb[0].mxu0
    %v3920 = vpop.f32.mrb[0].mxu0
    %v3921 = vpop.f32.mrb[0].mxu0
    %3922 = vdwg.mxu0
    %v3924 = vsel %vm1765, %v3781, 0
    %v3927 = vsel %vm1765, %v3782, 0
    %v3930 = vsel %vm1765, %v3783, 0
    %v3933 = vsel %vm1765, %v3784, 0
    %v3936 = vsel %vm1765, %v3785, 0
    %3938 = vmatprep.subr.bf16.mxu0 %v3927
    %3939 = vmatpush1.bf16.msra.mxu0 %v3924
    %3940 = vmatprep.subr.bf16.mxu0 0
    %3941 = vmatpush1.bf16.msra.mxu0 0
    %3942 = vmatprep.subr.bf16.mxu0 0
    %3943 = vmatpush1.bf16.msra.mxu0 0
    %3944 = vmatprep.subr.bf16.mxu0 0
    %3945 = vmatpush1.bf16.msra.mxu0 0
    %3946 = vmatprep.subr.bf16.mxu0 0
    %3947 = vmatpush1.bf16.msra.mxu0 0
    %3948 = vmatprep.subr.bf16.mxu0 0
    %3949 = vmatpush1.bf16.msra.mxu0 0
    %3950 = vmatprep.subr.bf16.mxu0 0
    %3951 = vmatpush1.bf16.msra.mxu0 0
    %3952 = vmatprep.subr.bf16.mxu0 0
    %3953 = vmatpush1.bf16.msra.mxu0 0
    %3954 = vmatprep.subr.bf16.mxu0 0
    %3955 = vmatpush1.bf16.msra.mxu0 0
    %3956 = vmatprep.subr.bf16.mxu0 0
    %3957 = vmatpush1.bf16.msra.mxu0 0
    %3958 = vmatprep.subr.bf16.mxu0 0
    %3959 = vmatpush1.bf16.msra.mxu0 0
    %3960 = vmatprep.subr.bf16.mxu0 0
    %3961 = vmatpush1.bf16.msra.mxu0 0
    %3962 = vmatprep.subr.bf16.mxu0 0
    %3963 = vmatpush1.bf16.msra.mxu0 0
    %3964 = vmatprep.subr.bf16.mxu0 0
    %3965 = vmatpush1.bf16.msra.mxu0 0
    %3966 = vmatprep.subr.bf16.mxu0 0
    %3967 = vmatpush1.bf16.msra.mxu0 0
    %3968 = vmatprep.subr.bf16.mxu0 0
    %3969 = vmatpush1.bf16.msra.mxu0 0
    %3970 = vmatprep.mubr.bf16.mxu0 0
    %3971 = vmatmul.mubr.bf16.gmra.mrb[0].mxu0 %v1904
    %v3972 = vpop.f32.mrb[0].mxu0
    %v3973 = vadd.f32 0.0, %v3972
    %v3974 = vpop.f32.mrb[0].mxu0
    %v3975 = vadd.f32 0.0, %v3974
    %v3976 = vpop.f32.mrb[0].mxu0
    %v3977 = vpop.f32.mrb[0].mxu0
    %3978 = vdwg.mxu0
    %3979 = vmatprep.subr.bf16.mxu0 %v3933
    %3980 = vmatpush1.bf16.msra.mxu0 %v3930
    %3981 = vmatprep.subr.bf16.mxu0 0
    %3982 = vmatpush1.bf16.msra.mxu0 0
    %3983 = vmatprep.subr.bf16.mxu0 0
    %3984 = vmatpush1.bf16.msra.mxu0 0
    %3985 = vmatprep.subr.bf16.mxu0 0
    %3986 = vmatpush1.bf16.msra.mxu0 0
    %3987 = vmatprep.subr.bf16.mxu0 0
    %3988 = vmatpush1.bf16.msra.mxu0 0
    %3989 = vmatprep.subr.bf16.mxu0 0
    %3990 = vmatpush1.bf16.msra.mxu0 0
    %3991 = vmatprep.subr.bf16.mxu0 0
    %3992 = vmatpush1.bf16.msra.mxu0 0
    %3993 = vmatprep.subr.bf16.mxu0 0
    %3994 = vmatpush1.bf16.msra.mxu0 0
    %3995 = vmatprep.subr.bf16.mxu0 0
    %3996 = vmatpush1.bf16.msra.mxu0 0
    %3997 = vmatprep.subr.bf16.mxu0 0
    %3998 = vmatpush1.bf16.msra.mxu0 0
    %3999 = vmatprep.subr.bf16.mxu0 0
    %4000 = vmatpush1.bf16.msra.mxu0 0
    %4001 = vmatprep.subr.bf16.mxu0 0
    %4002 = vmatpush1.bf16.msra.mxu0 0
    %4003 = vmatprep.subr.bf16.mxu0 0
    %4004 = vmatpush1.bf16.msra.mxu0 0
    %4005 = vmatprep.subr.bf16.mxu0 0
    %4006 = vmatpush1.bf16.msra.mxu0 0
    %4007 = vmatprep.subr.bf16.mxu0 0
    %4008 = vmatpush1.bf16.msra.mxu0 0
    %4009 = vmatprep.subr.bf16.mxu0 0
    %4010 = vmatpush1.bf16.msra.mxu0 0
    %4011 = vmatprep.mubr.bf16.mxu0 0
    %4012 = vmatmul.mubr.bf16.gmra.mrb[0].mxu0 %v1904
    %v4013 = vpop.f32.mrb[0].mxu0
    %v4014 = vadd.f32 0.0, %v4013
    %v4015 = vpop.f32.mrb[0].mxu0
    %v4016 = vadd.f32 0.0, %v4015
    %v4017 = vpop.f32.mrb[0].mxu0
    %v4018 = vpop.f32.mrb[0].mxu0
    %4019 = vdwg.mxu0
    %4020 = vmatprep.subr.bf16.mxu0 0
    %4021 = vmatpush1.bf16.msra.mxu0 %v3936
    %4022 = vmatprep.subr.bf16.mxu0 0
    %4023 = vmatpush1.bf16.msra.mxu0 0
    %4024 = vmatprep.subr.bf16.mxu0 0
    %4025 = vmatpush1.bf16.msra.mxu0 0
    %4026 = vmatprep.subr.bf16.mxu0 0
    %4027 = vmatpush1.bf16.msra.mxu0 0
    %4028 = vmatprep.subr.bf16.mxu0 0
    %4029 = vmatpush1.bf16.msra.mxu0 0
    %4030 = vmatprep.subr.bf16.mxu0 0
    %4031 = vmatpush1.bf16.msra.mxu0 0
    %4032 = vmatprep.subr.bf16.mxu0 0
    %4033 = vmatpush1.bf16.msra.mxu0 0
    %4034 = vmatprep.subr.bf16.mxu0 0
    %4035 = vmatpush1.bf16.msra.mxu0 0
    %4036 = vmatprep.subr.bf16.mxu0 0
    %4037 = vmatpush1.bf16.msra.mxu0 0
    %4038 = vmatprep.subr.bf16.mxu0 0
    %4039 = vmatpush1.bf16.msra.mxu0 0
    %4040 = vmatprep.subr.bf16.mxu0 0
    %4041 = vmatpush1.bf16.msra.mxu0 0
    %4042 = vmatprep.subr.bf16.mxu0 0
    %4043 = vmatpush1.bf16.msra.mxu0 0
    %4044 = vmatprep.subr.bf16.mxu0 0
    %4045 = vmatpush1.bf16.msra.mxu0 0
    %4046 = vmatprep.subr.bf16.mxu0 0
    %4047 = vmatpush1.bf16.msra.mxu0 0
    %4048 = vmatprep.subr.bf16.mxu0 0
    %4049 = vmatpush1.bf16.msra.mxu0 0
    %4050 = vmatprep.subr.bf16.mxu0 0
    %4051 = vmatpush1.bf16.msra.mxu0 0
    %4052 = vmatprep.mubr.bf16.mxu0 0
    %4053 = vmatmul.mubr.bf16.gmra.mrb[0].mxu0 %v1904
    %v4054 = vpop.f32.mrb[0].mxu0
    %v4055 = vadd.f32 0.0, %v4054
    %v4056 = vpop.f32.mrb[0].mxu0
    %v4057 = vpop.f32.mrb[0].mxu0
    %v4058 = vpop.f32.mrb[0].mxu0
    %4059 = vdwg.mxu0
    %v4060 = vmul.f32 %v3836, %v60
    %v4061 = vmul.f32 %v3838, %v60
    %v4062 = vmul.f32 %v3877, %v60
    %v4063 = vmul.f32 %v3879, %v60
    %v4064 = vmul.f32 %v3918, %v60
    %v4065 = vmul.f32 %v3973, %v61
    %v4066 = vmul.f32 %v3975, %v61
    %v4067 = vmul.f32 %v4014, %v61
    %v4068 = vmul.f32 %v4016, %v61
    %v4069 = vmul.f32 %v4055, %v61
    %v4070 = vld [vmem:[%s7] sm:$0x1f]
    %v4072 = vlaneseq
    %v4073 = vshrl.u32 %v4072, 7
    %v4074 = vsub.s32 0, %v4073
    %v4075 = vrot.slane %v4070, %v4074
    %v4076 = vlaneseq
    %v4077 = vshrl.u32 %v4076, 7
    %v4078 = vsub.s32 1, %v4077
    %v4079 = vrot.slane %v4070, %v4078
    %v4080 = vlaneseq
    %v4081 = vshrl.u32 %v4080, 7
    %v4082 = vsub.s32 2, %v4081
    %v4083 = vrot.slane %v4070, %v4082
    %v4084 = vlaneseq
    %v4085 = vshrl.u32 %v4084, 7
    %v4086 = vsub.s32 3, %v4085
    %v4087 = vrot.slane %v4070, %v4086
    %v4088 = vlaneseq
    %v4089 = vshrl.u32 %v4088, 7
    %v4090 = vsub.s32 4, %v4089
    %v4091 = vrot.slane %v4070, %v4090
    %v4097 = vadd.f32 %v4060, %v4075
    %v4098 = vadd.f32 %v4061, %v4079
    %v4099 = vadd.f32 %v4062, %v4083
    %v4100 = vadd.f32 %v4063, %v4087
    %v4101 = vadd.f32 %v4064, %v4091
    %v4102 = vadd.f32 %v4065, %v4075
    %v4103 = vadd.f32 %v4066, %v4079
    %v4104 = vadd.f32 %v4067, %v4083
    %v4105 = vadd.f32 %v4068, %v4087
    %v4106 = vadd.f32 %v4069, %v4091
    %v4107 = vmax.f32 %v4097, 0.0
    %v4108 = vmax.f32 %v4098, 0.0
    %v4109 = vmax.f32 %v4099, 0.0
    %v4110 = vmax.f32 %v4100, 0.0
    %v4111 = vmax.f32 %v4101, 0.0
    %v4112 = vmax.f32 %v4102, 0.0
    %v4113 = vmax.f32 %v4103, 0.0
    %v4114 = vmax.f32 %v4104, 0.0
    %v4115 = vmax.f32 %v4105, 0.0
    %v4116 = vmax.f32 %v4106, 0.0
    %4118 = vset.pattern.permute.xlu0 0
    %4119 = vperm.xlu0 %4118, %v64
    %v4120 = vpop.permute.xlu0 %4119
    %4123 = vset.pattern.permute.xlu0 0
    %4124 = vperm.xlu0 %4123, %v65
    %v4125 = vpop.permute.xlu0 %4124
    %v4127 = vmul.f32 %v4120, %v4107
    %v4128 = vmul.f32 %v4120, %v4108
    %v4129 = vmul.f32 %v4120, %v4109
    %v4130 = vmul.f32 %v4120, %v4110
    %v4131 = vmul.f32 %v4120, %v4111
    %v4132 = vmul.f32 %v4125, %v4112
    %v4133 = vmul.f32 %v4125, %v4113
    %v4134 = vmul.f32 %v4125, %v4114
    %v4135 = vmul.f32 %v4125, %v4115
    %v4136 = vmul.f32 %v4125, %v4116
    %v4137 = vrot.slane %v4127, 4
    %v4138 = vadd.f32 %v4127, %v4137
    %v4139 = vrot.slane %v4138, 2
    %v4140 = vadd.f32 %v4138, %v4139
    %v4141 = vrot.slane %v4140, 1
    %v4142 = vadd.f32 %v4140, %v4141
    %v4143 = vrot.slane %v4128, 4
    %v4144 = vadd.f32 %v4128, %v4143
    %v4145 = vrot.slane %v4144, 2
    %v4146 = vadd.f32 %v4144, %v4145
    %v4147 = vrot.slane %v4146, 1
    %v4148 = vadd.f32 %v4146, %v4147
    %v4149 = vrot.slane %v4129, 4
    %v4150 = vadd.f32 %v4129, %v4149
    %v4151 = vrot.slane %v4150, 2
    %v4152 = vadd.f32 %v4150, %v4151
    %v4153 = vrot.slane %v4152, 1
    %v4154 = vadd.f32 %v4152, %v4153
    %v4155 = vrot.slane %v4130, 4
    %v4156 = vadd.f32 %v4130, %v4155
    %v4157 = vrot.slane %v4156, 2
    %v4158 = vadd.f32 %v4156, %v4157
    %v4159 = vrot.slane %v4158, 1
    %v4160 = vadd.f32 %v4158, %v4159
    %v4161 = vrot.slane %v4131, 4
    %v4162 = vadd.f32 %v4131, %v4161
    %v4163 = vrot.slane %v4162, 2
    %v4164 = vadd.f32 %v4162, %v4163
    %v4165 = vrot.slane %v4164, 1
    %v4166 = vadd.f32 %v4164, %v4165
    %v4167 = vrot.slane %v4132, 4
    %v4168 = vadd.f32 %v4132, %v4167
    %v4169 = vrot.slane %v4168, 2
    %v4170 = vadd.f32 %v4168, %v4169
    %v4171 = vrot.slane %v4170, 1
    %v4172 = vadd.f32 %v4170, %v4171
    %v4173 = vrot.slane %v4133, 4
    %v4174 = vadd.f32 %v4133, %v4173
    %v4175 = vrot.slane %v4174, 2
    %v4176 = vadd.f32 %v4174, %v4175
    %v4177 = vrot.slane %v4176, 1
    %v4178 = vadd.f32 %v4176, %v4177
    %v4179 = vrot.slane %v4134, 4
    %v4180 = vadd.f32 %v4134, %v4179
    %v4181 = vrot.slane %v4180, 2
    %v4182 = vadd.f32 %v4180, %v4181
    %v4183 = vrot.slane %v4182, 1
    %v4184 = vadd.f32 %v4182, %v4183
    %v4185 = vrot.slane %v4135, 4
    %v4186 = vadd.f32 %v4135, %v4185
    %v4187 = vrot.slane %v4186, 2
    %v4188 = vadd.f32 %v4186, %v4187
    %v4189 = vrot.slane %v4188, 1
    %v4190 = vadd.f32 %v4188, %v4189
    %v4191 = vrot.slane %v4136, 4
    %v4192 = vadd.f32 %v4136, %v4191
    %v4193 = vrot.slane %v4192, 2
    %v4194 = vadd.f32 %v4192, %v4193
    %v4195 = vrot.slane %v4194, 1
    %v4196 = vadd.f32 %v4194, %v4195
    %v4197 = vmul.f32 %v4142, %v37
    %v4198 = vmul.f32 %v4148, %v38
    %v4199 = vmul.f32 %v4154, %v39
    %v4200 = vmul.f32 %v4160, %v40
    %v4201 = vmul.f32 %v4166, %v41
    %v4202 = vmul.f32 %v4172, %v42
    %v4203 = vmul.f32 %v4178, %v43
    %v4204 = vmul.f32 %v4184, %v44
    %v4205 = vmul.f32 %v4190, %v45
    %v4206 = vmul.f32 %v4196, %v46
    %v4207 = vadd.f32 %v4197, %v4198
    %v4208 = vadd.f32 %v4207, %v4199
    %v4209 = vadd.f32 %v4208, %v4200
    %v4210 = vadd.f32 %v4209, %v4201
    %4211 = vadd.xlane.f32.xlu0 %v4210
    %v4212 = vpop.xlane.xlu0 %4211
    %v4213 = vadd.f32 %v4202, %v4203
    %v4214 = vadd.f32 %v4213, %v4204
    %v4215 = vadd.f32 %v4214, %v4205
    %v4216 = vadd.f32 %v4215, %v4206
    %4217 = vadd.xlane.f32.xlu0 %v4216
    %v4218 = vpop.xlane.xlu0 %4217
    %v4221 = vlaneseq
    %v4222 = vand.u32 %v4221, 127
    %v4223 = vlaneseq
    %v4224 = vshrl.u32 %v4223, 7
    %v4225 = vsub.s32 %v4222, %v4224
    %v4226 = vrot.slane %v4212, %v4225
    %v4227 = vlaneseq
    %v4228 = vshrl.u32 %v4227, 7
    %v4229 = vsub.s32 %v4222, %v4228
    %v4230 = vrot.slane %v4218, %v4229
    %vm4231 = vcmask 1041409
    %v4232 = vsel %vm4231, %v4230, %v4226
    %vm4234 = vcmask 58368
    %v4235 = vsel %vm4234, %v4232, -inf
    %4236 = vmax.xlane.f32.xlu0 %v4235
    %v4237 = vpop.xlane.xlu0 %4236
    %v4239 = vlaneseq
    %v4240 = vshrl.u32 %v4239, 7
    %v4241 = vsub.s32 0, %v4240
    %v4242 = vrot.slane %v4237, %v4241
    %v4243 = vlaneseq
    %v4244 = vshrl.u32 %v4243, 7
    %v4245 = vsub.s32 1, %v4244
    %v4246 = vrot.slane %v4237, %v4245
    %v4249 = vsub.f32 %v4212, %v4242
    %v4250 = vsub.f32 %v4218, %v4246
    %v4251 = vmul.f32 %v4249, 1.442695
    %v4252 = vpow.pop %v4251
    %v4253 = vmul.f32 %v4250, 1.442695
    %v4254 = vpow.pop %v4253
    %4257 = vset.pattern.permute.xlu0 0
    %4258 = vperm.xlu0 %4257, %v4252
    %v4259 = vpop.permute.xlu0 %4258
    %4260 = vset.pattern.permute.xlu0 0
    %4261 = vperm.xlu0 %4260, %v4254
    %v4262 = vpop.permute.xlu0 %4261
    %v4263 = vlaneseq
    %v4264 = vshrl.u32 %v4263, 7
    %v4265 = vsub.s32 %v4222, %v4264
    %v4266 = vrot.slane %v4259, %v4265
    %v4267 = vlaneseq
    %v4268 = vshrl.u32 %v4267, 7
    %v4269 = vsub.s32 %v4222, %v4268
    %v4270 = vrot.slane %v4262, %v4269
    %v4271 = vsel %vm4231, %v4270, %v4266
    %v4273 = vsel %vm4234, %v4271, 0.0
    %4274 = vadd.xlane.f32.xlu0 %v4273
    %v4275 = vpop.xlane.xlu0 %4274
    %v4276 = vrcp.pop %v4275
    %v4278 = vlaneseq
    %v4279 = vshrl.u32 %v4278, 7
    %v4280 = vsub.s32 0, %v4279
    %v4281 = vrot.slane %v4276, %v4280
    %v4282 = vlaneseq
    %v4283 = vshrl.u32 %v4282, 7
    %v4284 = vsub.s32 1, %v4283
    %v4285 = vrot.slane %v4276, %v4284
    %v4288 = vmul.f32 %v4252, %v4281
    %v4289 = vmul.f32 %v4254, %v4285
    %4291 = vset.pattern.permute.xlu0 0
    %4292 = vperm.xlu0 %4291, %v4288
    %v4293 = vpop.permute.xlu0 %4292
    %4296 = vset.pattern.permute.xlu0 0
    %4297 = vperm.xlu0 %4296, %v4289
    %v4298 = vpop.permute.xlu0 %4297
    %v4300 = vmul.f32 %v4293, %v37
    %v4301 = vmul.f32 %v4293, %v38
    %v4302 = vmul.f32 %v4293, %v39
    %v4303 = vmul.f32 %v4293, %v40
    %v4304 = vmul.f32 %v4293, %v41
    %v4305 = vmul.f32 %v4298, %v42
    %v4306 = vmul.f32 %v4298, %v43
    %v4307 = vmul.f32 %v4298, %v44
    %v4308 = vmul.f32 %v4298, %v45
    %v4309 = vmul.f32 %v4298, %v46
    %v4310 = vrot.slane %v4300, 4
    %v4311 = vadd.f32 %v4300, %v4310
    %v4312 = vrot.slane %v4311, 2
    %v4313 = vadd.f32 %v4311, %v4312
    %v4314 = vrot.slane %v4313, 1
    %v4315 = vadd.f32 %v4313, %v4314
    %v4316 = vrot.slane %v4301, 4
    %v4317 = vadd.f32 %v4301, %v4316
    %v4318 = vrot.slane %v4317, 2
    %v4319 = vadd.f32 %v4317, %v4318
    %v4320 = vrot.slane %v4319, 1
    %v4321 = vadd.f32 %v4319, %v4320
    %v4322 = vrot.slane %v4302, 4
    %v4323 = vadd.f32 %v4302, %v4322
    %v4324 = vrot.slane %v4323, 2
    %v4325 = vadd.f32 %v4323, %v4324
    %v4326 = vrot.slane %v4325, 1
    %v4327 = vadd.f32 %v4325, %v4326
    %v4328 = vrot.slane %v4303, 4
    %v4329 = vadd.f32 %v4303, %v4328
    %v4330 = vrot.slane %v4329, 2
    %v4331 = vadd.f32 %v4329, %v4330
    %v4332 = vrot.slane %v4331, 1
    %v4333 = vadd.f32 %v4331, %v4332
    %v4334 = vrot.slane %v4304, 4
    %v4335 = vadd.f32 %v4304, %v4334
    %v4336 = vrot.slane %v4335, 2
    %v4337 = vadd.f32 %v4335, %v4336
    %v4338 = vrot.slane %v4337, 1
    %v4339 = vadd.f32 %v4337, %v4338
    %v4340 = vrot.slane %v4305, 4
    %v4341 = vadd.f32 %v4305, %v4340
    %v4342 = vrot.slane %v4341, 2
    %v4343 = vadd.f32 %v4341, %v4342
    %v4344 = vrot.slane %v4343, 1
    %v4345 = vadd.f32 %v4343, %v4344
    %v4346 = vrot.slane %v4306, 4
    %v4347 = vadd.f32 %v4306, %v4346
    %v4348 = vrot.slane %v4347, 2
    %v4349 = vadd.f32 %v4347, %v4348
    %v4350 = vrot.slane %v4349, 1
    %v4351 = vadd.f32 %v4349, %v4350
    %v4352 = vrot.slane %v4307, 4
    %v4353 = vadd.f32 %v4307, %v4352
    %v4354 = vrot.slane %v4353, 2
    %v4355 = vadd.f32 %v4353, %v4354
    %v4356 = vrot.slane %v4355, 1
    %v4357 = vadd.f32 %v4355, %v4356
    %v4358 = vrot.slane %v4308, 4
    %v4359 = vadd.f32 %v4308, %v4358
    %v4360 = vrot.slane %v4359, 2
    %v4361 = vadd.f32 %v4359, %v4360
    %v4362 = vrot.slane %v4361, 1
    %v4363 = vadd.f32 %v4361, %v4362
    %v4364 = vrot.slane %v4309, 4
    %v4365 = vadd.f32 %v4309, %v4364
    %v4366 = vrot.slane %v4365, 2
    %v4367 = vadd.f32 %v4365, %v4366
    %v4368 = vrot.slane %v4367, 1
    %v4369 = vadd.f32 %v4367, %v4368
    %v4370 = vpack.c.bf16 %v4315, %v4315
    %v4371 = vpack.c.bf16 %v4321, %v4321
    %v4372 = vpack.c.bf16 %v4327, %v4327
    %v4373 = vpack.c.bf16 %v4333, %v4333
    %v4374 = vpack.c.bf16 %v4339, %v4339
    %v4375 = vpack.c.bf16 %v4345, %v4345
    %v4376 = vpack.c.bf16 %v4351, %v4351
    %v4377 = vpack.c.bf16 %v4357, %v4357
    %v4378 = vpack.c.bf16 %v4363, %v4363
    %v4379 = vpack.c.bf16 %v4369, %v4369
    %v4380 = vld [vmem:[%s8] sm:$0xf]
    %v4381 = vld [vmem:[%s8 + $0x4] sm:$0xf]
    %v4382 = vld [vmem:[%s8 + $0x8] sm:$0xf]
    %v4383 = vld [vmem:[%s8 + $0xc] sm:$0xf]
    %v4384 = vld [vmem:[%s8 + $0x10] sm:$0xf]
    %v4385 = vld [vmem:[%s8 + $0x14] sm:$0xf]
    %v4386 = vld [vmem:[%s8 + $0x18] sm:$0xf]
    %v4387 = vld [vmem:[%s8 + $0x1c] sm:$0xf]
    %v4388 = vld [vmem:[%s8 + $0x20] sm:$0xf]
    %v4389 = vld [vmem:[%s8 + $0x24] sm:$0xf]
    %v4390 = vld [vmem:[%s8 + $0x28] sm:$0xf]
    %v4391 = vld [vmem:[%s8 + $0x2c] sm:$0xf]
    %v4392 = vld [vmem:[%s8 + $0x30] sm:$0xf]
    %v4393 = vld [vmem:[%s8 + $0x34] sm:$0xf]
    %v4394 = vld [vmem:[%s8 + $0x38] sm:$0xf]
    %v4395 = vld [vmem:[%s8 + $0x3c] sm:$0xf]
    %v4396 = vld [vmem:[%s8 + $0x40] sm:$0xf]
    %v4397 = vld [vmem:[%s8 + $0x44] sm:$0xf]
    %v4398 = vld [vmem:[%s8 + $0x48] sm:$0xf]
    %v4399 = vld [vmem:[%s8 + $0x4c] sm:$0xf]
    %v4400 = vld [vmem:[%s8 + $0x50] sm:$0xf]
    %v4401 = vld [vmem:[%s8 + $0x54] sm:$0xf]
    %v4402 = vld [vmem:[%s8 + $0x58] sm:$0xf]
    %v4403 = vld [vmem:[%s8 + $0x5c] sm:$0xf]
    %v4404 = vld [vmem:[%s8 + $0x60] sm:$0xf]
    %v4405 = vld [vmem:[%s8 + $0x64] sm:$0xf]
    %v4406 = vld [vmem:[%s8 + $0x68] sm:$0xf]
    %v4407 = vld [vmem:[%s8 + $0x6c] sm:$0xf]
    %v4408 = vld [vmem:[%s8 + $0x70] sm:$0xf]
    %v4409 = vld [vmem:[%s8 + $0x74] sm:$0xf]
    %v4410 = vld [vmem:[%s8 + $0x78] sm:$0xf]
    %v4411 = vld [vmem:[%s8 + $0x7c] sm:$0xf]
    %v4412 = vld [vmem:[%s8 + $0x80] sm:$0xf]
    %v4413 = vld [vmem:[%s8 + $0x84] sm:$0xf]
    %v4414 = vld [vmem:[%s8 + $0x88] sm:$0xf]
    %v4415 = vld [vmem:[%s8 + $0x8c] sm:$0xf]
    %v4416 = vld [vmem:[%s8 + $0x90] sm:$0xf]
    %v4417 = vld [vmem:[%s8 + $0x94] sm:$0xf]
    %v4418 = vld [vmem:[%s8 + $0x98] sm:$0xf]
    %v4419 = vld [vmem:[%s8 + $0x9c] sm:$0xf]
    %v4420 = vld [vmem:[%s8 + $0xa0] sm:$0xf]
    %v4421 = vld [vmem:[%s8 + $0xa4] sm:$0xf]
    %v4422 = vld [vmem:[%s8 + $0xa8] sm:$0xf]
    %v4423 = vld [vmem:[%s8 + $0xac] sm:$0xf]
    %v4424 = vld [vmem:[%s8 + $0xb0] sm:$0xf]
    %v4425 = vld [vmem:[%s8 + $0xb4] sm:$0xf]
    %v4426 = vld [vmem:[%s8 + $0xb8] sm:$0xf]
    %v4427 = vld [vmem:[%s8 + $0xbc] sm:$0xf]
    %v4428 = vld [vmem:[%s8 + $0xc0] sm:$0xf]
    %v4429 = vld [vmem:[%s8 + $0xc4] sm:$0xf]
    %v4430 = vld [vmem:[%s8 + $0xc8] sm:$0xf]
    %v4431 = vld [vmem:[%s8 + $0xcc] sm:$0xf]
    %v4432 = vld [vmem:[%s8 + $0xd0] sm:$0xf]
    %v4433 = vld [vmem:[%s8 + $0xd4] sm:$0xf]
    %v4434 = vld [vmem:[%s8 + $0xd8] sm:$0xf]
    %v4435 = vld [vmem:[%s8 + $0xdc] sm:$0xf]
    %v4436 = vld [vmem:[%s8 + $0xe0] sm:$0xf]
    %v4437 = vld [vmem:[%s8 + $0xe4] sm:$0xf]
    %v4438 = vld [vmem:[%s8 + $0xe8] sm:$0xf]
    %v4439 = vld [vmem:[%s8 + $0xec] sm:$0xf]
    %v4440 = vld [vmem:[%s8 + $0xf0] sm:$0xf]
    %v4441 = vld [vmem:[%s8 + $0xf4] sm:$0xf]
    %v4442 = vld [vmem:[%s8 + $0xf8] sm:$0xf]
    %v4443 = vld [vmem:[%s8 + $0xfc] sm:$0xf]
    %v4444 = vld [vmem:[%s8 + $0x100] sm:$0xf]
    %v4445 = vld [vmem:[%s8 + $0x104] sm:$0xf]
    %v4446 = vld [vmem:[%s8 + $0x108] sm:$0xf]
    %v4447 = vld [vmem:[%s8 + $0x10c] sm:$0xf]
    %v4448 = vld [vmem:[%s8 + $0x110] sm:$0xf]
    %v4449 = vld [vmem:[%s8 + $0x114] sm:$0xf]
    %v4450 = vld [vmem:[%s8 + $0x118] sm:$0xf]
    %v4451 = vld [vmem:[%s8 + $0x11c] sm:$0xf]
    %v4452 = vld [vmem:[%s8 + $0x120] sm:$0xf]
    %v4453 = vld [vmem:[%s8 + $0x124] sm:$0xf]
    %v4454 = vld [vmem:[%s8 + $0x128] sm:$0xf]
    %v4455 = vld [vmem:[%s8 + $0x12c] sm:$0xf]
    %v4456 = vld [vmem:[%s8 + $0x130] sm:$0xf]
    %v4457 = vld [vmem:[%s8 + $0x134] sm:$0xf]
    %v4458 = vld [vmem:[%s8 + $0x138] sm:$0xf]
    %v4459 = vld [vmem:[%s8 + $0x13c] sm:$0xf]
    %v4460 = vld [vmem:[%s9] sm:$0x1]
    %v4462 = vlaneseq
    %v4463 = vshrl.u32 %v4462, 7
    %v4464 = vsub.s32 0, %v4463
    %v4465 = vrot.slane %v4460, %v4464
    %v4477 = vunpack.c.l.b16 %v4370
    %v4478 = vunpack.c.l.b16 %v4371
    %v4479 = vunpack.c.l.b16 %v4372
    %v4480 = vunpack.c.l.b16 %v4373
    %v4481 = vunpack.c.l.b16 %v4374
    %v4482 = vunpack.c.l.b16 %v4375
    %v4483 = vunpack.c.l.b16 %v4376
    %v4484 = vunpack.c.l.b16 %v4377
    %v4485 = vunpack.c.l.b16 %v4378
    %v4486 = vunpack.c.l.b16 %v4379
    %v4487 = vsel %vm4231, %v4482, %v4477
    %v4488 = vsel %vm4231, %v4483, %v4478
    %v4489 = vsel %vm4231, %v4484, %v4479
    %v4490 = vsel %vm4231, %v4485, %v4480
    %v4491 = vsel %vm4231, %v4486, %v4481
    %v4492 = vpack.c.b16 %v4487, %v4487
    %v4493 = vpack.c.b16 %v4488, %v4488
    %v4494 = vpack.c.b16 %v4489, %v4489
    %v4495 = vpack.c.b16 %v4490, %v4490
    %v4496 = vpack.c.b16 %v4491, %v4491
    %v4582 = vunpack.c.l.b16 %v4380
    %v4583 = vunpack.c.l.b16 %v4381
    %v4584 = vunpack.c.l.b16 %v4382
    %v4585 = vunpack.c.l.b16 %v4383
    %v4586 = vunpack.c.l.b16 %v4384
    %v4587 = vunpack.c.l.b16 %v4385
    %v4588 = vunpack.c.l.b16 %v4386
    %v4589 = vunpack.c.l.b16 %v4387
    %v4590 = vunpack.c.l.b16 %v4388
    %v4591 = vunpack.c.l.b16 %v4389
    %v4592 = vunpack.c.l.b16 %v4390
    %v4593 = vunpack.c.l.b16 %v4391
    %v4594 = vunpack.c.l.b16 %v4392
    %v4595 = vunpack.c.l.b16 %v4393
    %v4596 = vunpack.c.l.b16 %v4394
    %v4597 = vunpack.c.l.b16 %v4395
    %v4598 = vunpack.c.l.b16 %v4396
    %v4599 = vunpack.c.l.b16 %v4397
    %v4600 = vunpack.c.l.b16 %v4398
    %v4601 = vunpack.c.l.b16 %v4399
    %v4602 = vunpack.c.l.b16 %v4400
    %v4603 = vunpack.c.l.b16 %v4401
    %v4604 = vunpack.c.l.b16 %v4402
    %v4605 = vunpack.c.l.b16 %v4403
    %v4606 = vunpack.c.l.b16 %v4404
    %v4607 = vunpack.c.l.b16 %v4405
    %v4608 = vunpack.c.l.b16 %v4406
    %v4609 = vunpack.c.l.b16 %v4407
    %v4610 = vunpack.c.l.b16 %v4408
    %v4611 = vunpack.c.l.b16 %v4409
    %v4612 = vunpack.c.l.b16 %v4410
    %v4613 = vunpack.c.l.b16 %v4411
    %v4614 = vunpack.c.l.b16 %v4412
    %v4615 = vunpack.c.l.b16 %v4413
    %v4616 = vunpack.c.l.b16 %v4414
    %v4617 = vunpack.c.l.b16 %v4415
    %v4618 = vunpack.c.l.b16 %v4416
    %v4619 = vunpack.c.l.b16 %v4417
    %v4620 = vunpack.c.l.b16 %v4418
    %v4621 = vunpack.c.l.b16 %v4419
    %v4622 = vunpack.c.l.b16 %v4420
    %v4623 = vunpack.c.l.b16 %v4421
    %v4624 = vunpack.c.l.b16 %v4422
    %v4625 = vunpack.c.l.b16 %v4423
    %v4626 = vunpack.c.l.b16 %v4424
    %v4627 = vunpack.c.l.b16 %v4425
    %v4628 = vunpack.c.l.b16 %v4426
    %v4629 = vunpack.c.l.b16 %v4427
    %v4630 = vunpack.c.l.b16 %v4428
    %v4631 = vunpack.c.l.b16 %v4429
    %v4632 = vunpack.c.l.b16 %v4430
    %v4633 = vunpack.c.l.b16 %v4431
    %v4634 = vunpack.c.l.b16 %v4432
    %v4635 = vunpack.c.l.b16 %v4433
    %v4636 = vunpack.c.l.b16 %v4434
    %v4637 = vunpack.c.l.b16 %v4435
    %v4638 = vunpack.c.l.b16 %v4436
    %v4639 = vunpack.c.l.b16 %v4437
    %v4640 = vunpack.c.l.b16 %v4438
    %v4641 = vunpack.c.l.b16 %v4439
    %v4642 = vunpack.c.l.b16 %v4440
    %v4643 = vunpack.c.l.b16 %v4441
    %v4644 = vunpack.c.l.b16 %v4442
    %v4645 = vunpack.c.l.b16 %v4443
    %v4646 = vunpack.c.l.b16 %v4444
    %v4647 = vunpack.c.l.b16 %v4445
    %v4648 = vunpack.c.l.b16 %v4446
    %v4649 = vunpack.c.l.b16 %v4447
    %v4650 = vunpack.c.l.b16 %v4448
    %v4651 = vunpack.c.l.b16 %v4449
    %v4652 = vunpack.c.l.b16 %v4450
    %v4653 = vunpack.c.l.b16 %v4451
    %v4654 = vunpack.c.l.b16 %v4452
    %v4655 = vunpack.c.l.b16 %v4453
    %v4656 = vunpack.c.l.b16 %v4454
    %v4657 = vunpack.c.l.b16 %v4455
    %v4658 = vunpack.c.l.b16 %v4456
    %v4659 = vunpack.c.l.b16 %v4457
    %v4660 = vunpack.c.l.b16 %v4458
    %v4661 = vunpack.c.l.b16 %v4459
    %v4662 = vpack.c.b16 %v4583, %v4582
    %v4663 = vpack.c.b16 %v4585, %v4584
    %v4664 = vpack.c.b16 %v4587, %v4586
    %v4665 = vpack.c.b16 %v4589, %v4588
    %v4666 = vpack.c.b16 %v4591, %v4590
    %v4667 = vpack.c.b16 %v4593, %v4592
    %v4668 = vpack.c.b16 %v4595, %v4594
    %v4669 = vpack.c.b16 %v4597, %v4596
    %v4670 = vpack.c.b16 %v4599, %v4598
    %v4671 = vpack.c.b16 %v4601, %v4600
    %v4672 = vpack.c.b16 %v4603, %v4602
    %v4673 = vpack.c.b16 %v4605, %v4604
    %v4674 = vpack.c.b16 %v4607, %v4606
    %v4675 = vpack.c.b16 %v4609, %v4608
    %v4676 = vpack.c.b16 %v4611, %v4610
    %v4677 = vpack.c.b16 %v4613, %v4612
    %v4678 = vpack.c.b16 %v4615, %v4614
    %v4679 = vpack.c.b16 %v4617, %v4616
    %v4680 = vpack.c.b16 %v4619, %v4618
    %v4681 = vpack.c.b16 %v4621, %v4620
    %v4682 = vpack.c.b16 %v4623, %v4622
    %v4683 = vpack.c.b16 %v4625, %v4624
    %v4684 = vpack.c.b16 %v4627, %v4626
    %v4685 = vpack.c.b16 %v4629, %v4628
    %v4686 = vpack.c.b16 %v4631, %v4630
    %v4687 = vpack.c.b16 %v4633, %v4632
    %v4688 = vpack.c.b16 %v4635, %v4634
    %v4689 = vpack.c.b16 %v4637, %v4636
    %v4690 = vpack.c.b16 %v4639, %v4638
    %v4691 = vpack.c.b16 %v4641, %v4640
    %v4692 = vpack.c.b16 %v4643, %v4642
    %v4693 = vpack.c.b16 %v4645, %v4644
    %v4694 = vpack.c.b16 %v4647, %v4646
    %v4695 = vpack.c.b16 %v4649, %v4648
    %v4696 = vpack.c.b16 %v4651, %v4650
    %v4697 = vpack.c.b16 %v4653, %v4652
    %v4698 = vpack.c.b16 %v4655, %v4654
    %v4699 = vpack.c.b16 %v4657, %v4656
    %v4700 = vpack.c.b16 %v4659, %v4658
    %v4701 = vpack.c.b16 %v4661, %v4660
    %4742 = vmatprep.subr.bf16.mxu0 0
    %4743 = vmatpush1.bf16.msra.mxu0 %v4662
    %4744 = vmatprep.subr.bf16.mxu0 0
    %4745 = vmatpush1.bf16.msra.mxu0 %v4663
    %4746 = vmatprep.subr.bf16.mxu0 0
    %4747 = vmatpush1.bf16.msra.mxu0 %v4664
    %4748 = vmatprep.subr.bf16.mxu0 0
    %4749 = vmatpush1.bf16.msra.mxu0 %v4665
    %4750 = vmatprep.subr.bf16.mxu0 0
    %4751 = vmatpush1.bf16.msra.mxu0 %v4666
    %4752 = vmatprep.subr.bf16.mxu0 0
    %4753 = vmatpush1.bf16.msra.mxu0 %v4667
    %4754 = vmatprep.subr.bf16.mxu0 0
    %4755 = vmatpush1.bf16.msra.mxu0 %v4668
    %4756 = vmatprep.subr.bf16.mxu0 0
    %4757 = vmatpush1.bf16.msra.mxu0 %v4669
    %4758 = vmatprep.subr.bf16.mxu0 0
    %4759 = vmatpush1.bf16.msra.mxu0 %v4670
    %4760 = vmatprep.subr.bf16.mxu0 0
    %4761 = vmatpush1.bf16.msra.mxu0 %v4671
    %4762 = vmatprep.subr.bf16.mxu0 0
    %4763 = vmatpush1.bf16.msra.mxu0 %v4672
    %4764 = vmatprep.subr.bf16.mxu0 0
    %4765 = vmatpush1.bf16.msra.mxu0 %v4673
    %4766 = vmatprep.subr.bf16.mxu0 0
    %4767 = vmatpush1.bf16.msra.mxu0 %v4674
    %4768 = vmatprep.subr.bf16.mxu0 0
    %4769 = vmatpush1.bf16.msra.mxu0 %v4675
    %4770 = vmatprep.subr.bf16.mxu0 0
    %4771 = vmatpush1.bf16.msra.mxu0 %v4676
    %4772 = vmatprep.subr.bf16.mxu0 0
    %4773 = vmatpush1.bf16.msra.mxu0 %v4677
    %4774 = vmatprep.mubr.bf16.mxu0 %v4493
    %4775 = vmatmul.mubr.bf16.gmra.mrb[0].mxu0 %v4492
    %v4776 = vpop.f32.mrb[0].mxu0
    %v4777 = vadd.f32 %v4465, %v4776
    %v4778 = vpop.f32.mrb[0].mxu0
    %v4779 = vpop.f32.mrb[0].mxu0
    %v4780 = vpop.f32.mrb[0].mxu0
    %4781 = vdwg.mxu0
    %4782 = vmatprep.subr.bf16.mxu0 0
    %4783 = vmatpush1.bf16.msra.mxu0 %v4678
    %4784 = vmatprep.subr.bf16.mxu0 0
    %4785 = vmatpush1.bf16.msra.mxu0 %v4679
    %4786 = vmatprep.subr.bf16.mxu0 0
    %4787 = vmatpush1.bf16.msra.mxu0 %v4680
    %4788 = vmatprep.subr.bf16.mxu0 0
    %4789 = vmatpush1.bf16.msra.mxu0 %v4681
    %4790 = vmatprep.subr.bf16.mxu0 0
    %4791 = vmatpush1.bf16.msra.mxu0 %v4682
    %4792 = vmatprep.subr.bf16.mxu0 0
    %4793 = vmatpush1.bf16.msra.mxu0 %v4683
    %4794 = vmatprep.subr.bf16.mxu0 0
    %4795 = vmatpush1.bf16.msra.mxu0 %v4684
    %4796 = vmatprep.subr.bf16.mxu0 0
    %4797 = vmatpush1.bf16.msra.mxu0 %v4685
    %4798 = vmatprep.subr.bf16.mxu0 0
    %4799 = vmatpush1.bf16.msra.mxu0 %v4686
    %4800 = vmatprep.subr.bf16.mxu0 0
    %4801 = vmatpush1.bf16.msra.mxu0 %v4687
    %4802 = vmatprep.subr.bf16.mxu0 0
    %4803 = vmatpush1.bf16.msra.mxu0 %v4688
    %4804 = vmatprep.subr.bf16.mxu0 0
    %4805 = vmatpush1.bf16.msra.mxu0 %v4689
    %4806 = vmatprep.subr.bf16.mxu0 0
    %4807 = vmatpush1.bf16.msra.mxu0 %v4690
    %4808 = vmatprep.subr.bf16.mxu0 0
    %4809 = vmatpush1.bf16.msra.mxu0 %v4691
    %4810 = vmatprep.subr.bf16.mxu0 0
    %4811 = vmatpush1.bf16.msra.mxu0 %v4692
    %4812 = vmatprep.subr.bf16.mxu0 0
    %4813 = vmatpush1.bf16.msra.mxu0 %v4693
    %4814 = vmatprep.mubr.bf16.mxu0 %v4495
    %4815 = vmatmul.mubr.bf16.gmra.mrb[0].mxu0 %v4494
    %v4816 = vpop.f32.mrb[0].mxu0
    %v4817 = vadd.f32 %v4777, %v4816
    %v4818 = vpop.f32.mrb[0].mxu0
    %v4819 = vpop.f32.mrb[0].mxu0
    %v4820 = vpop.f32.mrb[0].mxu0
    %4821 = vdwg.mxu0
    %4822 = vmatprep.subr.bf16.mxu0 0
    %4823 = vmatpush1.bf16.msra.mxu0 %v4694
    %4824 = vmatprep.subr.bf16.mxu0 0
    %4825 = vmatpush1.bf16.msra.mxu0 %v4695
    %4826 = vmatprep.subr.bf16.mxu0 0
    %4827 = vmatpush1.bf16.msra.mxu0 %v4696
    %4828 = vmatprep.subr.bf16.mxu0 0
    %4829 = vmatpush1.bf16.msra.mxu0 %v4697
    %4830 = vmatprep.subr.bf16.mxu0 0
    %4831 = vmatpush1.bf16.msra.mxu0 %v4698
    %4832 = vmatprep.subr.bf16.mxu0 0
    %4833 = vmatpush1.bf16.msra.mxu0 %v4699
    %4834 = vmatprep.subr.bf16.mxu0 0
    %4835 = vmatpush1.bf16.msra.mxu0 %v4700
    %4836 = vmatprep.subr.bf16.mxu0 0
    %4837 = vmatpush1.bf16.msra.mxu0 %v4701
    %4838 = vmatprep.subr.bf16.mxu0 0
    %4839 = vmatpush1.bf16.msra.mxu0 0
    %4840 = vmatprep.subr.bf16.mxu0 0
    %4841 = vmatpush1.bf16.msra.mxu0 0
    %4842 = vmatprep.subr.bf16.mxu0 0
    %4843 = vmatpush1.bf16.msra.mxu0 0
    %4844 = vmatprep.subr.bf16.mxu0 0
    %4845 = vmatpush1.bf16.msra.mxu0 0
    %4846 = vmatprep.subr.bf16.mxu0 0
    %4847 = vmatpush1.bf16.msra.mxu0 0
    %4848 = vmatprep.subr.bf16.mxu0 0
    %4849 = vmatpush1.bf16.msra.mxu0 0
    %4850 = vmatprep.subr.bf16.mxu0 0
    %4851 = vmatpush1.bf16.msra.mxu0 0
    %4852 = vmatprep.subr.bf16.mxu0 0
    %4853 = vmatpush1.bf16.msra.mxu0 0
    %4854 = vmatprep.mubr.bf16.mxu0 0
    %4855 = vmatmul.mubr.bf16.gmra.mrb[0].mxu0 %v4496
    %v4856 = vpop.f32.mrb[0].mxu0
    %v4857 = vadd.f32 %v4817, %v4856
    %v4858 = vpop.f32.mrb[0].mxu0
    %v4859 = vpop.f32.mrb[0].mxu0
    %v4860 = vpop.f32.mrb[0].mxu0
    %4861 = vdwg.mxu0
    %4862 = vst [vmem:[#allocation2] sm:$0x3] %v4857
    // Predicated region
    $region42: #{asgcn_forward.3} parent=1 // pred_check
      _
    $region43: #{asgcn_forward.3} parent=1 // pred_check_branch
      %4864 = sbr.rel (0) target = $region45
    $region44: #{asgcn_forward.3} parent=1 // pred_region
      %s4866 = ssub.s32 32, 32
      %4867 = vsyncadd [#allocation3], %s4866
      %s4869 = sshll.u32 [#allocation2], 4
      %s4870 = int_to_ptr.vmem [resolvable:$true] %s4869
      %4872 = dma.vmem_to_hbm [thread:$0]  %s4870, 32, %s10, [#allocation3]
    $region45: #{asgcn_forward.3} parent=1 // pred_fallthru
      _
    // Predicated region
    $region46: #{asgcn_forward.3} parent=1 // pred_check
      _
    $region47: #{asgcn_forward.3} parent=1 // pred_check_branch
      %4874 = sbr.rel (0) target = $region49
    $region48: #{asgcn_forward.3} parent=1 // pred_region
      %4875 = dma.done [#allocation3], 32
    $region49: #{asgcn_forward.3} parent=1 // pred_fallthru
      _
    %4876 = vsyncpa [#allocation3], 1

</llo_original>
